<compile_context>
chip_gen: v6e
topology: v6e:2x2x1
jax: 0.10.0
libtpu: 0.0.40
codegen_flags: <defaults>
</compile_context>

<pallas_src>
import numpy as np
import jax
import jax.numpy as jnp
from jax.experimental import pallas as pl
from jax.experimental.pallas import tpu as pltpu

_INV_SQRT2 = 0.7071067811865476


def _gelu_exact(x):
    # PyTorch nn.GELU() default: 0.5*x*(1+erf(x/sqrt(2)))
    return 0.5 * x * (1.0 + jax.lax.erf(x * _INV_SQRT2))


# ----------------------------------------------------------------------------
# Fused kernel: all conv_3x3_bn blocks + pool + fc, one batch element per step.
# ----------------------------------------------------------------------------
def _make_fused_kernel(block_cfgs):
    """block_cfgs: tuple of (cin, cout, stride, H_in, W_in) per conv block."""
    n = len(block_cfgs)
    cin0, _, _, H0, W0 = block_cfgs[0]

    def kernel(*args):
        # args = [x, M_0, bias_0, ..., M_{n-1}, bias_{n-1}, w_fc, out,
        #         scratch_0, ..., scratch_{n-1}]
        x_ref = args[0]
        wfc_ref = args[1 + 2 * n]
        o_ref = args[2 + 2 * n]
        scrs = args[3 + 2 * n:]

        # Stage the NHWC input (flattened to (H, W*C)) into block 0's
        # zero-padded activation slab.
        scr0 = scrs[0]
        scr0[...] = jnp.zeros(scr0.shape, scr0.dtype)
        scr0[1:1 + H0, cin0:(W0 + 1) * cin0] = x_ref[0]

        cur = scr0
        y = None
        for i, (cin, cout, stride, Hi, Wi) in enumerate(block_cfgs):
            m_ref = args[1 + 2 * i]   # (3, (Wi+2)*cin, Wo*cout), BN scale folded in
            b_ref = args[2 + 2 * i]   # (1, Wo*cout) folded BN bias (tiled per column)
            Hp = Hi + 2
            Ho = Hi // stride
            Wo = Wi // stride

            if stride == 2:
                x_full = cur[...]                                   # (Hp, (Wi+2)*cin)
                row_id = jax.lax.broadcasted_iota(jnp.int32, (Ho, Hp), 1)
                out_id = jax.lax.broadcasted_iota(jnp.int32, (Ho, Hp), 0)

            acc = None
            for ki in range(3):
                if stride == 1:
                    rows = cur[ki:ki + Ho, :]                       # contiguous rows
                else:
                    # 0/1 row-selection matrix: rows[oh, :] = x_pad[2*oh+ki, :]
                    sel = (row_id == 2 * out_id + ki).astype(jnp.float32)
                    rows = jnp.dot(sel, x_full,
                                   preferred_element_type=jnp.float32)
                part = jnp.dot(rows, m_ref[ki],
                               preferred_element_type=jnp.float32)  # (Ho, Wo*cout)
                acc = part if acc is None else acc + part

            y = _gelu_exact(acc + b_ref[...])                       # conv + BN + GELU

            if i < n - 1:   # stage into the next block's zero-padded slab
                nxt = scrs[i + 1]
                nxt[...] = jnp.zeros(nxt.shape, nxt.dtype)
                nxt[1:1 + Ho, cout:(Wo + 1) * cout] = y
                cur = nxt

        # Head: AvgPool2d over the remaining (Ho, Wo) extent + bias-free Linear.
        _, c_last, stride_l, Hl, Wl = block_cfgs[-1]
        Ho = Hl // stride_l
        Wo = Wl // stride_l
        csum = y[:, 0:c_last]
        for wb in range(1, Wo):
            csum = csum + y[:, wb * c_last:(wb + 1) * c_last]       # (Ho, c_last)
        pooled = jnp.sum(csum, axis=0, keepdims=True) * (1.0 / (Ho * Wo))
        o_ref[0] = jnp.dot(pooled, wfc_ref[...],
                           preferred_element_type=jnp.float32)      # (1, classes)

    return kernel


# ----------------------------------------------------------------------------
# Wrapper
# ----------------------------------------------------------------------------
def coatnet_forward(x_nchw, fused_blocks, w_fc, block_cfgs, num_classes):
    B, C_in, H, W = x_nchw.shape
    # NCHW -> NHWC -> (B, H, W*C): row-major (w, c) flattening matches the
    # kernel's lane layout.
    x = jnp.transpose(x_nchw, (0, 2, 3, 1)).astype(jnp.float32)
    x = x.reshape(B, H, W * C_in)

    kernel = _make_fused_kernel(block_cfgs)

    inputs = [x]
    in_specs = [pl.BlockSpec((1, H, W * C_in), lambda b: (b, 0, 0))]
    for m, bias_t in fused_blocks:
        inputs.append(m)
        in_specs.append(pl.BlockSpec(m.shape, lambda b: (0, 0, 0)))
        inputs.append(bias_t)
        in_specs.append(pl.BlockSpec(bias_t.shape, lambda b: (0, 0)))
    inputs.append(w_fc)
    in_specs.append(pl.BlockSpec(w_fc.shape, lambda b: (0, 0)))

    # One zero-padded VMEM activation slab per conv-block input (~50 KiB total).
    scratch_shapes = [
        pltpu.VMEM((Hi + 2, (Wi + 2) * cin), jnp.float32)
        for (cin, _, _, Hi, Wi) in block_cfgs
    ]

    out = pl.pallas_call(
        kernel,
        out_shape=jax.ShapeDtypeStruct((B, 1, num_classes), jnp.float32),
        grid=(B,),
        in_specs=in_specs,
        out_specs=pl.BlockSpec((1, 1, num_classes), lambda b: (b, 0, 0)),
        scratch_shapes=scratch_shapes,
        compiler_params=pltpu.CompilerParams(
            dimension_semantics=("parallel",)),
    )(*inputs)
    return out.reshape(B, num_classes)


# ----------------------------------------------------------------------------
# Deterministic synthetic parameters (mirror module __init__ shapes) + folding
# ----------------------------------------------------------------------------
def init_raw_params(key, in_channels, num_blocks, channels, num_classes,
                    eps=1e-5):
    """Per-block (w(3,3,cin,cout), bn_scale, bn_bias, stride) with BatchNorm
    running stats folded to an inference-time affine, plus FC weight."""
    raw = []
    cin = in_channels
    for stage in range(5):
        cout = channels[stage]
        for blk in range(num_blocks[stage]):
            key, k1, k2, k3, k4, k5 = jax.random.split(key, 6)
            inp = cin if blk == 0 else cout
            w = jax.random.normal(k1, (3, 3, inp, cout), jnp.float32) \
                * np.sqrt(2.0 / (9 * inp))
            gamma = jax.random.uniform(k2, (cout,), jnp.float32, 0.5, 1.5)
            beta = 0.1 * jax.random.normal(k3, (cout,), jnp.float32)
            rmean = 0.1 * jax.random.normal(k4, (cout,), jnp.float32)
            rvar = jax.random.uniform(k5, (cout,), jnp.float32, 0.5, 1.5)
            scale = gamma / jnp.sqrt(rvar + eps)
            bias = beta - rmean * scale
            raw.append((np.asarray(w), np.asarray(scale), np.asarray(bias),
                        2 if blk == 0 else 1))
        cin = cout
    key, kf = jax.random.split(key)
    w_fc = jax.random.normal(kf, (channels[-1], num_classes), jnp.float32) \
        * np.sqrt(1.0 / channels[-1])
    return raw, w_fc


def fold_params(raw_blocks, image_size):
    """Build per-block 'lowered convolution' matrices.

    M_ki[j*Cin + ci, ow*Cout + co] = bn_scale[co] * W[ki, j - stride*ow, ci, co]
    (zero when j - stride*ow is not in {0,1,2}), so a 3x3/pad-1 conv over the
    zero-padded (H+2, (W+2)*Cin) slab is exactly
        out[oh, ow*Cout + co] = sum_ki  X_pad[stride*oh + ki, :] @ M_ki .
    """
    H, W = image_size
    fused, cfgs = [], []
    for w, scale, bias, stride in raw_blocks:
        _, _, cin, cout = w.shape
        cfgs.append((cin, cout, stride, H, W))
        Wp = W + 2
        Wo = W // stride
        w_s = (w * scale[None, None, None, :]).astype(np.float32)
        m = np.zeros((3, Wp * cin, Wo * cout), np.float32)
        for ki in range(3):
            for ow in range(Wo):
                for kj in range(3):
                    j = stride * ow + kj
                    m[ki, j * cin:(j + 1) * cin,
                      ow * cout:(ow + 1) * cout] = w_s[ki, kj]
        bias_t = np.tile(bias, Wo).reshape(1, Wo * cout).astype(np.float32)
        fused.append((jnp.asarray(m), jnp.asarray(bias_t)))
        H //= stride
        W //= stride
    return fused, tuple(cfgs)


# ----------------------------------------------------------------------------
# Pure-JAX reference (same inference-mode BN folding), for correctness check.
# ----------------------------------------------------------------------------
def reference_forward(x_nchw, raw_blocks, w_fc):
    x = jnp.transpose(x_nchw, (0, 2, 3, 1)).astype(jnp.float32)   # NHWC
    for w, scale, bias, stride in raw_blocks:
        y = jax.lax.conv_general_dilated(
            x, jnp.asarray(w),
            window_strides=(stride, stride),
            padding=((1, 1), (1, 1)),
            dimension_numbers=("NHWC", "HWIO", "NHWC"),
            precision=jax.lax.Precision.HIGHEST)
        y = y * jnp.asarray(scale)[None, None, None, :] \
            + jnp.asarray(bias)[None, None, None, :]
        x = _gelu_exact(y)
    pooled = jnp.mean(x, axis=(1, 2))                             # (B, C_last)
    return pooled @ jnp.asarray(w_fc)


# ----------------------------------------------------------------------------
if __name__ == "__main__":
    IMAGE_SIZE = (32, 32)          # must be divisible by 32 (5 stride-2 stages)
    IN_CHANNELS = 3
    NUM_BLOCKS = [1, 2, 1, 2, 1]
    CHANNELS = [8, 8, 16, 16, 32]
    NUM_CLASSES = 26
    BATCH = 2

    key = jax.random.PRNGKey(0)
    key, kx = jax.random.split(key)
    x = jax.random.normal(kx, (BATCH, IN_CHANNELS) + IMAGE_SIZE, jnp.float32)

    raw_blocks, w_fc = init_raw_params(key, IN_CHANNELS, NUM_BLOCKS, CHANNELS,
                                       NUM_CLASSES)
    fused_blocks, block_cfgs = fold_params(raw_blocks, IMAGE_SIZE)

    fwd = jax.jit(lambda inp: coatnet_forward(inp, fused_blocks, w_fc,
                                              block_cfgs, NUM_CLASSES))
    out = fwd(x)
    jax.block_until_ready(out)

    assert out.shape == (BATCH, NUM_CLASSES), out.shape
    assert bool(jnp.all(jnp.isfinite(out)))

    # Correctness check against the pure-JAX reference forward.
    ref = reference_forward(x, raw_blocks, w_fc)
    jax.block_until_ready(ref)
    np.testing.assert_allclose(np.asarray(out), np.asarray(ref),
                               rtol=5e-2, atol=5e-2)

    print("KERNEL_OK")
</pallas_src>

<mosaic_0001>
module attributes {stable_mosaic.version = 11 : i64} {
  func.func @kernel(%arg0: i32, %arg1: memref<1x32x96xf32, #tpu.memory_space<vmem>>, %arg2: memref<3x102x128xf32, #tpu.memory_space<vmem>>, %arg3: memref<1x128xf32, #tpu.memory_space<vmem>>, %arg4: memref<3x144x64xf32, #tpu.memory_space<vmem>>, %arg5: memref<1x64xf32, #tpu.memory_space<vmem>>, %arg6: memref<3x80x64xf32, #tpu.memory_space<vmem>>, %arg7: memref<1x64xf32, #tpu.memory_space<vmem>>, %arg8: memref<3x80x64xf32, #tpu.memory_space<vmem>>, %arg9: memref<1x64xf32, #tpu.memory_space<vmem>>, %arg10: memref<3x96x32xf32, #tpu.memory_space<vmem>>, %arg11: memref<1x32xf32, #tpu.memory_space<vmem>>, %arg12: memref<3x64x32xf32, #tpu.memory_space<vmem>>, %arg13: memref<1x32xf32, #tpu.memory_space<vmem>>, %arg14: memref<3x64x32xf32, #tpu.memory_space<vmem>>, %arg15: memref<1x32xf32, #tpu.memory_space<vmem>>, %arg16: memref<32x26xf32, #tpu.memory_space<vmem>>, %arg17: memref<1x1x26xf32, #tpu.memory_space<vmem>>, %arg18: memref<34x102xf32, #tpu.memory_space<vmem>>, %arg19: memref<18x144xf32, #tpu.memory_space<vmem>>, %arg20: memref<10x80xf32, #tpu.memory_space<vmem>>, %arg21: memref<10x80xf32, #tpu.memory_space<vmem>>, %arg22: memref<6x96xf32, #tpu.memory_space<vmem>>, %arg23: memref<4x64xf32, #tpu.memory_space<vmem>>, %arg24: memref<4x64xf32, #tpu.memory_space<vmem>>) attributes {dimension_semantics = [#tpu.dimension_semantics<parallel>], iteration_bounds = array<i64: 2>, scalar_prefetch = 0 : i64, scratch_operands = 7 : i64, tpu.core_type = #tpu.core_type<tc>, window_params = [{transform_indices = @transform_0, window_bounds = array<i64: 1, 32, 96>}, {pipeline_mode = #tpu.pipeline_mode<synchronous>, transform_indices = @transform_1, window_bounds = array<i64: 3, 102, 128>}, {pipeline_mode = #tpu.pipeline_mode<synchronous>, transform_indices = @transform_2, window_bounds = array<i64: 1, 128>}, {pipeline_mode = #tpu.pipeline_mode<synchronous>, transform_indices = @transform_3, window_bounds = array<i64: 3, 144, 64>}, {pipeline_mode = #tpu.pipeline_mode<synchronous>, transform_indices = @transform_4, window_bounds = array<i64: 1, 64>}, {pipeline_mode = #tpu.pipeline_mode<synchronous>, transform_indices = @transform_5, window_bounds = array<i64: 3, 80, 64>}, {pipeline_mode = #tpu.pipeline_mode<synchronous>, transform_indices = @transform_6, window_bounds = array<i64: 1, 64>}, {pipeline_mode = #tpu.pipeline_mode<synchronous>, transform_indices = @transform_7, window_bounds = array<i64: 3, 80, 64>}, {pipeline_mode = #tpu.pipeline_mode<synchronous>, transform_indices = @transform_8, window_bounds = array<i64: 1, 64>}, {pipeline_mode = #tpu.pipeline_mode<synchronous>, transform_indices = @transform_9, window_bounds = array<i64: 3, 96, 32>}, {pipeline_mode = #tpu.pipeline_mode<synchronous>, transform_indices = @transform_10, window_bounds = array<i64: 1, 32>}, {pipeline_mode = #tpu.pipeline_mode<synchronous>, transform_indices = @transform_11, window_bounds = array<i64: 3, 64, 32>}, {pipeline_mode = #tpu.pipeline_mode<synchronous>, transform_indices = @transform_12, window_bounds = array<i64: 1, 32>}, {pipeline_mode = #tpu.pipeline_mode<synchronous>, transform_indices = @transform_13, window_bounds = array<i64: 3, 64, 32>}, {pipeline_mode = #tpu.pipeline_mode<synchronous>, transform_indices = @transform_14, window_bounds = array<i64: 1, 32>}, {pipeline_mode = #tpu.pipeline_mode<synchronous>, transform_indices = @transform_15, window_bounds = array<i64: 32, 26>}, {transform_indices = @transform_16, window_bounds = array<i64: 1, 1, 26>}]} {
    %cst = arith.constant 0.000000e+00 : f32
    %0 = vector.broadcast %cst : f32 to vector<34x102xf32>
    %c0 = arith.constant 0 : index
    %c0_0 = arith.constant 0 : index
    %1 = vector.load %arg18[%c0, %c0_0] : memref<34x102xf32, #tpu.memory_space<vmem>>, vector<34x102xf32>
    tpu.vector_store %arg18[%c0, %c0_0], %0 {strides = array<i32>} : memref<34x102xf32, #tpu.memory_space<vmem>>, vector<34x102xf32>,
    %c0_1 = arith.constant 0 : index
    %c0_2 = arith.constant 0 : index
    %c0_3 = arith.constant 0 : index
    %2 = vector.load %arg1[%c0_1, %c0_2, %c0_3] : memref<1x32x96xf32, #tpu.memory_space<vmem>>, vector<1x32x96xf32>
    %3 = vector.shape_cast %2 : vector<1x32x96xf32> to vector<32x96xf32>
    %c1 = arith.constant 1 : index
    %c3 = arith.constant 3 : index
    %4 = vector.load %arg18[%c1, %c3] : memref<34x102xf32, #tpu.memory_space<vmem>>, vector<32x96xf32>
    tpu.vector_store %arg18[%c1, %c3], %3 {strides = array<i32>} : memref<34x102xf32, #tpu.memory_space<vmem>>, vector<32x96xf32>,
    %c0_4 = arith.constant 0 : index
    %c0_5 = arith.constant 0 : index
    %5 = vector.load %arg18[%c0_4, %c0_5] : memref<34x102xf32, #tpu.memory_space<vmem>>, vector<34x102xf32>
    %6 = tpu.iota {dimensions = array<i32: 1>} : vector<16x34xi32>
    %7 = tpu.iota {dimensions = array<i32: 0>} : vector<16x34xi32>
    %c2_i32 = arith.constant 2 : i32
    %8 = vector.broadcast %c2_i32 : i32 to vector<16x34xi32>
    %9 = arith.muli %8, %7 : vector<16x34xi32>
    %c0_i32 = arith.constant 0 : i32
    %10 = vector.broadcast %c0_i32 : i32 to vector<16x34xi32>
    %11 = arith.addi %9, %10 : vector<16x34xi32>
    %12 = arith.cmpi eq, %6, %11 : vector<16x34xi32>
    %13 = arith.extui %12 : vector<16x34xi1> to vector<16x34xi32>
    %14 = arith.sitofp %13 : vector<16x34xi32> to vector<16x34xf32>
    %cst_6 = arith.constant dense<0.000000e+00> : vector<16x102xf32>
    %15 = tpu.matmul %14, %5, %cst_6 {dimension_numbers = #tpu.dot_dimension_numbers<[1], [0], [0], [1], [0, 0, 1, 1], [], []>} : vector<16x34xf32>, vector<34x102xf32>, vector<16x102xf32> -> vector<16x102xf32>
    %c0_7 = arith.constant 0 : index
    %c0_8 = arith.constant 0 : index
    %c0_9 = arith.constant 0 : index
    %16 = vector.load %arg2[%c0_7, %c0_8, %c0_9] : memref<3x102x128xf32, #tpu.memory_space<vmem>>, vector<1x102x128xf32>
    %17 = vector.shape_cast %16 : vector<1x102x128xf32> to vector<102x128xf32>
    %cst_10 = arith.constant dense<0.000000e+00> : vector<16x128xf32>
    %18 = tpu.matmul %15, %17, %cst_10 {dimension_numbers = #tpu.dot_dimension_numbers<[1], [0], [0], [1], [0, 0, 1, 1], [], []>} : vector<16x102xf32>, vector<102x128xf32>, vector<16x128xf32> -> vector<16x128xf32>
    %c2_i32_11 = arith.constant 2 : i32
    %19 = vector.broadcast %c2_i32_11 : i32 to vector<16x34xi32>
    %20 = arith.muli %19, %7 : vector<16x34xi32>
    %c1_i32 = arith.constant 1 : i32
    %21 = vector.broadcast %c1_i32 : i32 to vector<16x34xi32>
    %22 = arith.addi %20, %21 : vector<16x34xi32>
    %23 = arith.cmpi eq, %6, %22 : vector<16x34xi32>
    %24 = arith.extui %23 : vector<16x34xi1> to vector<16x34xi32>
    %25 = arith.sitofp %24 : vector<16x34xi32> to vector<16x34xf32>
    %cst_12 = arith.constant dense<0.000000e+00> : vector<16x102xf32>
    %26 = tpu.matmul %25, %5, %cst_12 {dimension_numbers = #tpu.dot_dimension_numbers<[1], [0], [0], [1], [0, 0, 1, 1], [], []>} : vector<16x34xf32>, vector<34x102xf32>, vector<16x102xf32> -> vector<16x102xf32>
    %c1_13 = arith.constant 1 : index
    %c0_14 = arith.constant 0 : index
    %c0_15 = arith.constant 0 : index
    %27 = vector.load %arg2[%c1_13, %c0_14, %c0_15] : memref<3x102x128xf32, #tpu.memory_space<vmem>>, vector<1x102x128xf32>
    %28 = vector.shape_cast %27 : vector<1x102x128xf32> to vector<102x128xf32>
    %cst_16 = arith.constant dense<0.000000e+00> : vector<16x128xf32>
    %29 = tpu.matmul %26, %28, %cst_16 {dimension_numbers = #tpu.dot_dimension_numbers<[1], [0], [0], [1], [0, 0, 1, 1], [], []>} : vector<16x102xf32>, vector<102x128xf32>, vector<16x128xf32> -> vector<16x128xf32>
    %30 = arith.addf %18, %29 : vector<16x128xf32>
    %c2_i32_17 = arith.constant 2 : i32
    %31 = vector.broadcast %c2_i32_17 : i32 to vector<16x34xi32>
    %32 = arith.muli %31, %7 : vector<16x34xi32>
    %c2_i32_18 = arith.constant 2 : i32
    %33 = vector.broadcast %c2_i32_18 : i32 to vector<16x34xi32>
    %34 = arith.addi %32, %33 : vector<16x34xi32>
    %35 = arith.cmpi eq, %6, %34 : vector<16x34xi32>
    %36 = arith.extui %35 : vector<16x34xi1> to vector<16x34xi32>
    %37 = arith.sitofp %36 : vector<16x34xi32> to vector<16x34xf32>
    %cst_19 = arith.constant dense<0.000000e+00> : vector<16x102xf32>
    %38 = tpu.matmul %37, %5, %cst_19 {dimension_numbers = #tpu.dot_dimension_numbers<[1], [0], [0], [1], [0, 0, 1, 1], [], []>} : vector<16x34xf32>, vector<34x102xf32>, vector<16x102xf32> -> vector<16x102xf32>
    %c2 = arith.constant 2 : index
    %c0_20 = arith.constant 0 : index
    %c0_21 = arith.constant 0 : index
    %39 = vector.load %arg2[%c2, %c0_20, %c0_21] : memref<3x102x128xf32, #tpu.memory_space<vmem>>, vector<1x102x128xf32>
    %40 = vector.shape_cast %39 : vector<1x102x128xf32> to vector<102x128xf32>
    %cst_22 = arith.constant dense<0.000000e+00> : vector<16x128xf32>
    %41 = tpu.matmul %38, %40, %cst_22 {dimension_numbers = #tpu.dot_dimension_numbers<[1], [0], [0], [1], [0, 0, 1, 1], [], []>} : vector<16x102xf32>, vector<102x128xf32>, vector<16x128xf32> -> vector<16x128xf32>
    %42 = arith.addf %30, %41 : vector<16x128xf32>
    %c0_23 = arith.constant 0 : index
    %c0_24 = arith.constant 0 : index
    %43 = vector.load %arg3[%c0_23, %c0_24] : memref<1x128xf32, #tpu.memory_space<vmem>>, vector<1x128xf32>
    %44 = vector.broadcast %43 : vector<1x128xf32> to vector<16x128xf32>
    %45 = arith.addf %42, %44 : vector<16x128xf32>
    %cst_25 = arith.constant 5.000000e-01 : f32
    %46 = vector.broadcast %cst_25 : f32 to vector<16x128xf32>
    %47 = arith.mulf %46, %45 : vector<16x128xf32>
    %cst_26 = arith.constant 0.707106769 : f32
    %48 = vector.broadcast %cst_26 : f32 to vector<16x128xf32>
    %49 = arith.mulf %45, %48 : vector<16x128xf32>
    %50 = math.erf %49 : vector<16x128xf32>
    %cst_27 = arith.constant 1.000000e+00 : f32
    %51 = vector.broadcast %cst_27 : f32 to vector<16x128xf32>
    %52 = arith.addf %51, %50 : vector<16x128xf32>
    %53 = arith.mulf %47, %52 : vector<16x128xf32>
    %cst_28 = arith.constant 0.000000e+00 : f32
    %54 = vector.broadcast %cst_28 : f32 to vector<18x144xf32>
    %c0_29 = arith.constant 0 : index
    %c0_30 = arith.constant 0 : index
    %55 = vector.load %arg19[%c0_29, %c0_30] : memref<18x144xf32, #tpu.memory_space<vmem>>, vector<18x144xf32>
    tpu.vector_store %arg19[%c0_29, %c0_30], %54 {strides = array<i32>} : memref<18x144xf32, #tpu.memory_space<vmem>>, vector<18x144xf32>,
    %c1_31 = arith.constant 1 : index
    %c8 = arith.constant 8 : index
    %56 = vector.load %arg19[%c1_31, %c8] : memref<18x144xf32, #tpu.memory_space<vmem>>, vector<16x128xf32>
    tpu.vector_store %arg19[%c1_31, %c8], %53 {strides = array<i32>} : memref<18x144xf32, #tpu.memory_space<vmem>>, vector<16x128xf32>,
    %c0_32 = arith.constant 0 : index
    %c0_33 = arith.constant 0 : index
    %57 = vector.load %arg19[%c0_32, %c0_33] : memref<18x144xf32, #tpu.memory_space<vmem>>, vector<18x144xf32>
    %58 = tpu.iota {dimensions = array<i32: 1>} : vector<8x18xi32>
    %59 = tpu.iota {dimensions = array<i32: 0>} : vector<8x18xi32>
    %c2_i32_34 = arith.constant 2 : i32
    %60 = vector.broadcast %c2_i32_34 : i32 to vector<8x18xi32>
    %61 = arith.muli %60, %59 : vector<8x18xi32>
    %c0_i32_35 = arith.constant 0 : i32
    %62 = vector.broadcast %c0_i32_35 : i32 to vector<8x18xi32>
    %63 = arith.addi %61, %62 : vector<8x18xi32>
    %64 = arith.cmpi eq, %58, %63 : vector<8x18xi32>
    %65 = arith.extui %64 : vector<8x18xi1> to vector<8x18xi32>
    %66 = arith.sitofp %65 : vector<8x18xi32> to vector<8x18xf32>
    %cst_36 = arith.constant dense<0.000000e+00> : vector<8x144xf32>
    %67 = tpu.matmul %66, %57, %cst_36 {dimension_numbers = #tpu.dot_dimension_numbers<[1], [0], [0], [1], [0, 0, 1, 1], [], []>} : vector<8x18xf32>, vector<18x144xf32>, vector<8x144xf32> -> vector<8x144xf32>
    %c0_37 = arith.constant 0 : index
    %c0_38 = arith.constant 0 : index
    %c0_39 = arith.constant 0 : index
    %68 = vector.load %arg4[%c0_37, %c0_38, %c0_39] : memref<3x144x64xf32, #tpu.memory_space<vmem>>, vector<1x144x64xf32>
    %69 = vector.shape_cast %68 : vector<1x144x64xf32> to vector<144x64xf32>
    %cst_40 = arith.constant dense<0.000000e+00> : vector<8x64xf32>
    %70 = tpu.matmul %67, %69, %cst_40 {dimension_numbers = #tpu.dot_dimension_numbers<[1], [0], [0], [1], [0, 0, 1, 1], [], []>} : vector<8x144xf32>, vector<144x64xf32>, vector<8x64xf32> -> vector<8x64xf32>
    %c2_i32_41 = arith.constant 2 : i32
    %71 = vector.broadcast %c2_i32_41 : i32 to vector<8x18xi32>
    %72 = arith.muli %71, %59 : vector<8x18xi32>
    %c1_i32_42 = arith.constant 1 : i32
    %73 = vector.broadcast %c1_i32_42 : i32 to vector<8x18xi32>
    %74 = arith.addi %72, %73 : vector<8x18xi32>
    %75 = arith.cmpi eq, %58, %74 : vector<8x18xi32>
    %76 = arith.extui %75 : vector<8x18xi1> to vector<8x18xi32>
    %77 = arith.sitofp %76 : vector<8x18xi32> to vector<8x18xf32>
    %cst_43 = arith.constant dense<0.000000e+00> : vector<8x144xf32>
    %78 = tpu.matmul %77, %57, %cst_43 {dimension_numbers = #tpu.dot_dimension_numbers<[1], [0], [0], [1], [0, 0, 1, 1], [], []>} : vector<8x18xf32>, vector<18x144xf32>, vector<8x144xf32> -> vector<8x144xf32>
    %c1_44 = arith.constant 1 : index
    %c0_45 = arith.constant 0 : index
    %c0_46 = arith.constant 0 : index
    %79 = vector.load %arg4[%c1_44, %c0_45, %c0_46] : memref<3x144x64xf32, #tpu.memory_space<vmem>>, vector<1x144x64xf32>
    %80 = vector.shape_cast %79 : vector<1x144x64xf32> to vector<144x64xf32>
    %cst_47 = arith.constant dense<0.000000e+00> : vector<8x64xf32>
    %81 = tpu.matmul %78, %80, %cst_47 {dimension_numbers = #tpu.dot_dimension_numbers<[1], [0], [0], [1], [0, 0, 1, 1], [], []>} : vector<8x144xf32>, vector<144x64xf32>, vector<8x64xf32> -> vector<8x64xf32>
    %82 = arith.addf %70, %81 : vector<8x64xf32>
    %c2_i32_48 = arith.constant 2 : i32
    %83 = vector.broadcast %c2_i32_48 : i32 to vector<8x18xi32>
    %84 = arith.muli %83, %59 : vector<8x18xi32>
    %c2_i32_49 = arith.constant 2 : i32
    %85 = vector.broadcast %c2_i32_49 : i32 to vector<8x18xi32>
    %86 = arith.addi %84, %85 : vector<8x18xi32>
    %87 = arith.cmpi eq, %58, %86 : vector<8x18xi32>
    %88 = arith.extui %87 : vector<8x18xi1> to vector<8x18xi32>
    %89 = arith.sitofp %88 : vector<8x18xi32> to vector<8x18xf32>
    %cst_50 = arith.constant dense<0.000000e+00> : vector<8x144xf32>
    %90 = tpu.matmul %89, %57, %cst_50 {dimension_numbers = #tpu.dot_dimension_numbers<[1], [0], [0], [1], [0, 0, 1, 1], [], []>} : vector<8x18xf32>, vector<18x144xf32>, vector<8x144xf32> -> vector<8x144xf32>
    %c2_51 = arith.constant 2 : index
    %c0_52 = arith.constant 0 : index
    %c0_53 = arith.constant 0 : index
    %91 = vector.load %arg4[%c2_51, %c0_52, %c0_53] : memref<3x144x64xf32, #tpu.memory_space<vmem>>, vector<1x144x64xf32>
    %92 = vector.shape_cast %91 : vector<1x144x64xf32> to vector<144x64xf32>
    %cst_54 = arith.constant dense<0.000000e+00> : vector<8x64xf32>
    %93 = tpu.matmul %90, %92, %cst_54 {dimension_numbers = #tpu.dot_dimension_numbers<[1], [0], [0], [1], [0, 0, 1, 1], [], []>} : vector<8x144xf32>, vector<144x64xf32>, vector<8x64xf32> -> vector<8x64xf32>
    %94 = arith.addf %82, %93 : vector<8x64xf32>
    %c0_55 = arith.constant 0 : index
    %c0_56 = arith.constant 0 : index
    %95 = vector.load %arg5[%c0_55, %c0_56] : memref<1x64xf32, #tpu.memory_space<vmem>>, vector<1x64xf32>
    %96 = vector.broadcast %95 : vector<1x64xf32> to vector<8x64xf32>
    %97 = arith.addf %94, %96 : vector<8x64xf32>
    %cst_57 = arith.constant 5.000000e-01 : f32
    %98 = vector.broadcast %cst_57 : f32 to vector<8x64xf32>
    %99 = arith.mulf %98, %97 : vector<8x64xf32>
    %cst_58 = arith.constant 0.707106769 : f32
    %100 = vector.broadcast %cst_58 : f32 to vector<8x64xf32>
    %101 = arith.mulf %97, %100 : vector<8x64xf32>
    %102 = math.erf %101 : vector<8x64xf32>
    %cst_59 = arith.constant 1.000000e+00 : f32
    %103 = vector.broadcast %cst_59 : f32 to vector<8x64xf32>
    %104 = arith.addf %103, %102 : vector<8x64xf32>
    %105 = arith.mulf %99, %104 : vector<8x64xf32>
    %cst_60 = arith.constant 0.000000e+00 : f32
    %106 = vector.broadcast %cst_60 : f32 to vector<10x80xf32>
    %c0_61 = arith.constant 0 : index
    %c0_62 = arith.constant 0 : index
    %107 = vector.load %arg20[%c0_61, %c0_62] : memref<10x80xf32, #tpu.memory_space<vmem>>, vector<10x80xf32>
    tpu.vector_store %arg20[%c0_61, %c0_62], %106 {strides = array<i32>} : memref<10x80xf32, #tpu.memory_space<vmem>>, vector<10x80xf32>,
    %c1_63 = arith.constant 1 : index
    %c8_64 = arith.constant 8 : index
    %108 = vector.load %arg20[%c1_63, %c8_64] : memref<10x80xf32, #tpu.memory_space<vmem>>, vector<8x64xf32>
    tpu.vector_store %arg20[%c1_63, %c8_64], %105 {strides = array<i32>} : memref<10x80xf32, #tpu.memory_space<vmem>>, vector<8x64xf32>,
    %c0_65 = arith.constant 0 : index
    %c0_66 = arith.constant 0 : index
    %109 = vector.load %arg20[%c0_65, %c0_66] : memref<10x80xf32, #tpu.memory_space<vmem>>, vector<8x80xf32>
    %c0_67 = arith.constant 0 : index
    %c0_68 = arith.constant 0 : index
    %c0_69 = arith.constant 0 : index
    %110 = vector.load %arg6[%c0_67, %c0_68, %c0_69] : memref<3x80x64xf32, #tpu.memory_space<vmem>>, vector<1x80x64xf32>
    %111 = vector.shape_cast %110 : vector<1x80x64xf32> to vector<80x64xf32>
    %cst_70 = arith.constant dense<0.000000e+00> : vector<8x64xf32>
    %112 = tpu.matmul %109, %111, %cst_70 {dimension_numbers = #tpu.dot_dimension_numbers<[1], [0], [0], [1], [0, 0, 1, 1], [], []>} : vector<8x80xf32>, vector<80x64xf32>, vector<8x64xf32> -> vector<8x64xf32>
    %c1_71 = arith.constant 1 : index
    %c0_72 = arith.constant 0 : index
    %113 = vector.load %arg20[%c1_71, %c0_72] : memref<10x80xf32, #tpu.memory_space<vmem>>, vector<8x80xf32>
    %c1_73 = arith.constant 1 : index
    %c0_74 = arith.constant 0 : index
    %c0_75 = arith.constant 0 : index
    %114 = vector.load %arg6[%c1_73, %c0_74, %c0_75] : memref<3x80x64xf32, #tpu.memory_space<vmem>>, vector<1x80x64xf32>
    %115 = vector.shape_cast %114 : vector<1x80x64xf32> to vector<80x64xf32>
    %cst_76 = arith.constant dense<0.000000e+00> : vector<8x64xf32>
    %116 = tpu.matmul %113, %115, %cst_76 {dimension_numbers = #tpu.dot_dimension_numbers<[1], [0], [0], [1], [0, 0, 1, 1], [], []>} : vector<8x80xf32>, vector<80x64xf32>, vector<8x64xf32> -> vector<8x64xf32>
    %117 = arith.addf %112, %116 : vector<8x64xf32>
    %c2_77 = arith.constant 2 : index
    %c0_78 = arith.constant 0 : index
    %118 = vector.load %arg20[%c2_77, %c0_78] : memref<10x80xf32, #tpu.memory_space<vmem>>, vector<8x80xf32>
    %c2_79 = arith.constant 2 : index
    %c0_80 = arith.constant 0 : index
    %c0_81 = arith.constant 0 : index
    %119 = vector.load %arg6[%c2_79, %c0_80, %c0_81] : memref<3x80x64xf32, #tpu.memory_space<vmem>>, vector<1x80x64xf32>
    %120 = vector.shape_cast %119 : vector<1x80x64xf32> to vector<80x64xf32>
    %cst_82 = arith.constant dense<0.000000e+00> : vector<8x64xf32>
    %121 = tpu.matmul %118, %120, %cst_82 {dimension_numbers = #tpu.dot_dimension_numbers<[1], [0], [0], [1], [0, 0, 1, 1], [], []>} : vector<8x80xf32>, vector<80x64xf32>, vector<8x64xf32> -> vector<8x64xf32>
    %122 = arith.addf %117, %121 : vector<8x64xf32>
    %c0_83 = arith.constant 0 : index
    %c0_84 = arith.constant 0 : index
    %123 = vector.load %arg7[%c0_83, %c0_84] : memref<1x64xf32, #tpu.memory_space<vmem>>, vector<1x64xf32>
    %124 = vector.broadcast %123 : vector<1x64xf32> to vector<8x64xf32>
    %125 = arith.addf %122, %124 : vector<8x64xf32>
    %cst_85 = arith.constant 5.000000e-01 : f32
    %126 = vector.broadcast %cst_85 : f32 to vector<8x64xf32>
    %127 = arith.mulf %126, %125 : vector<8x64xf32>
    %cst_86 = arith.constant 0.707106769 : f32
    %128 = vector.broadcast %cst_86 : f32 to vector<8x64xf32>
    %129 = arith.mulf %125, %128 : vector<8x64xf32>
    %130 = math.erf %129 : vector<8x64xf32>
    %cst_87 = arith.constant 1.000000e+00 : f32
    %131 = vector.broadcast %cst_87 : f32 to vector<8x64xf32>
    %132 = arith.addf %131, %130 : vector<8x64xf32>
    %133 = arith.mulf %127, %132 : vector<8x64xf32>
    %cst_88 = arith.constant 0.000000e+00 : f32
    %134 = vector.broadcast %cst_88 : f32 to vector<10x80xf32>
    %c0_89 = arith.constant 0 : index
    %c0_90 = arith.constant 0 : index
    %135 = vector.load %arg21[%c0_89, %c0_90] : memref<10x80xf32, #tpu.memory_space<vmem>>, vector<10x80xf32>
    tpu.vector_store %arg21[%c0_89, %c0_90], %134 {strides = array<i32>} : memref<10x80xf32, #tpu.memory_space<vmem>>, vector<10x80xf32>,
    %c1_91 = arith.constant 1 : index
    %c8_92 = arith.constant 8 : index
    %136 = vector.load %arg21[%c1_91, %c8_92] : memref<10x80xf32, #tpu.memory_space<vmem>>, vector<8x64xf32>
    tpu.vector_store %arg21[%c1_91, %c8_92], %133 {strides = array<i32>} : memref<10x80xf32, #tpu.memory_space<vmem>>, vector<8x64xf32>,
    %c0_93 = arith.constant 0 : index
    %c0_94 = arith.constant 0 : index
    %137 = vector.load %arg21[%c0_93, %c0_94] : memref<10x80xf32, #tpu.memory_space<vmem>>, vector<10x80xf32>
    %138 = tpu.iota {dimensions = array<i32: 1>} : vector<4x10xi32>
    %139 = tpu.iota {dimensions = array<i32: 0>} : vector<4x10xi32>
    %c2_i32_95 = arith.constant 2 : i32
    %140 = vector.broadcast %c2_i32_95 : i32 to vector<4x10xi32>
    %141 = arith.muli %140, %139 : vector<4x10xi32>
    %c0_i32_96 = arith.constant 0 : i32
    %142 = vector.broadcast %c0_i32_96 : i32 to vector<4x10xi32>
    %143 = arith.addi %141, %142 : vector<4x10xi32>
    %144 = arith.cmpi eq, %138, %143 : vector<4x10xi32>
    %145 = arith.extui %144 : vector<4x10xi1> to vector<4x10xi32>
    %146 = arith.sitofp %145 : vector<4x10xi32> to vector<4x10xf32>
    %cst_97 = arith.constant dense<0.000000e+00> : vector<4x80xf32>
    %147 = tpu.matmul %146, %137, %cst_97 {dimension_numbers = #tpu.dot_dimension_numbers<[1], [0], [0], [1], [0, 0, 1, 1], [], []>} : vector<4x10xf32>, vector<10x80xf32>, vector<4x80xf32> -> vector<4x80xf32>
    %c0_98 = arith.constant 0 : index
    %c0_99 = arith.constant 0 : index
    %c0_100 = arith.constant 0 : index
    %148 = vector.load %arg8[%c0_98, %c0_99, %c0_100] : memref<3x80x64xf32, #tpu.memory_space<vmem>>, vector<1x80x64xf32>
    %149 = vector.shape_cast %148 : vector<1x80x64xf32> to vector<80x64xf32>
    %cst_101 = arith.constant dense<0.000000e+00> : vector<4x64xf32>
    %150 = tpu.matmul %147, %149, %cst_101 {dimension_numbers = #tpu.dot_dimension_numbers<[1], [0], [0], [1], [0, 0, 1, 1], [], []>} : vector<4x80xf32>, vector<80x64xf32>, vector<4x64xf32> -> vector<4x64xf32>
    %c2_i32_102 = arith.constant 2 : i32
    %151 = vector.broadcast %c2_i32_102 : i32 to vector<4x10xi32>
    %152 = arith.muli %151, %139 : vector<4x10xi32>
    %c1_i32_103 = arith.constant 1 : i32
    %153 = vector.broadcast %c1_i32_103 : i32 to vector<4x10xi32>
    %154 = arith.addi %152, %153 : vector<4x10xi32>
    %155 = arith.cmpi eq, %138, %154 : vector<4x10xi32>
    %156 = arith.extui %155 : vector<4x10xi1> to vector<4x10xi32>
    %157 = arith.sitofp %156 : vector<4x10xi32> to vector<4x10xf32>
    %cst_104 = arith.constant dense<0.000000e+00> : vector<4x80xf32>
    %158 = tpu.matmul %157, %137, %cst_104 {dimension_numbers = #tpu.dot_dimension_numbers<[1], [0], [0], [1], [0, 0, 1, 1], [], []>} : vector<4x10xf32>, vector<10x80xf32>, vector<4x80xf32> -> vector<4x80xf32>
    %c1_105 = arith.constant 1 : index
    %c0_106 = arith.constant 0 : index
    %c0_107 = arith.constant 0 : index
    %159 = vector.load %arg8[%c1_105, %c0_106, %c0_107] : memref<3x80x64xf32, #tpu.memory_space<vmem>>, vector<1x80x64xf32>
    %160 = vector.shape_cast %159 : vector<1x80x64xf32> to vector<80x64xf32>
    %cst_108 = arith.constant dense<0.000000e+00> : vector<4x64xf32>
    %161 = tpu.matmul %158, %160, %cst_108 {dimension_numbers = #tpu.dot_dimension_numbers<[1], [0], [0], [1], [0, 0, 1, 1], [], []>} : vector<4x80xf32>, vector<80x64xf32>, vector<4x64xf32> -> vector<4x64xf32>
    %162 = arith.addf %150, %161 : vector<4x64xf32>
    %c2_i32_109 = arith.constant 2 : i32
    %163 = vector.broadcast %c2_i32_109 : i32 to vector<4x10xi32>
    %164 = arith.muli %163, %139 : vector<4x10xi32>
    %c2_i32_110 = arith.constant 2 : i32
    %165 = vector.broadcast %c2_i32_110 : i32 to vector<4x10xi32>
    %166 = arith.addi %164, %165 : vector<4x10xi32>
    %167 = arith.cmpi eq, %138, %166 : vector<4x10xi32>
    %168 = arith.extui %167 : vector<4x10xi1> to vector<4x10xi32>
    %169 = arith.sitofp %168 : vector<4x10xi32> to vector<4x10xf32>
    %cst_111 = arith.constant dense<0.000000e+00> : vector<4x80xf32>
    %170 = tpu.matmul %169, %137, %cst_111 {dimension_numbers = #tpu.dot_dimension_numbers<[1], [0], [0], [1], [0, 0, 1, 1], [], []>} : vector<4x10xf32>, vector<10x80xf32>, vector<4x80xf32> -> vector<4x80xf32>
    %c2_112 = arith.constant 2 : index
    %c0_113 = arith.constant 0 : index
    %c0_114 = arith.constant 0 : index
    %171 = vector.load %arg8[%c2_112, %c0_113, %c0_114] : memref<3x80x64xf32, #tpu.memory_space<vmem>>, vector<1x80x64xf32>
    %172 = vector.shape_cast %171 : vector<1x80x64xf32> to vector<80x64xf32>
    %cst_115 = arith.constant dense<0.000000e+00> : vector<4x64xf32>
    %173 = tpu.matmul %170, %172, %cst_115 {dimension_numbers = #tpu.dot_dimension_numbers<[1], [0], [0], [1], [0, 0, 1, 1], [], []>} : vector<4x80xf32>, vector<80x64xf32>, vector<4x64xf32> -> vector<4x64xf32>
    %174 = arith.addf %162, %173 : vector<4x64xf32>
    %c0_116 = arith.constant 0 : index
    %c0_117 = arith.constant 0 : index
    %175 = vector.load %arg9[%c0_116, %c0_117] : memref<1x64xf32, #tpu.memory_space<vmem>>, vector<1x64xf32>
    %176 = vector.broadcast %175 : vector<1x64xf32> to vector<4x64xf32>
    %177 = arith.addf %174, %176 : vector<4x64xf32>
    %cst_118 = arith.constant 5.000000e-01 : f32
    %178 = vector.broadcast %cst_118 : f32 to vector<4x64xf32>
    %179 = arith.mulf %178, %177 : vector<4x64xf32>
    %cst_119 = arith.constant 0.707106769 : f32
    %180 = vector.broadcast %cst_119 : f32 to vector<4x64xf32>
    %181 = arith.mulf %177, %180 : vector<4x64xf32>
    %182 = math.erf %181 : vector<4x64xf32>
    %cst_120 = arith.constant 1.000000e+00 : f32
    %183 = vector.broadcast %cst_120 : f32 to vector<4x64xf32>
    %184 = arith.addf %183, %182 : vector<4x64xf32>
    %185 = arith.mulf %179, %184 : vector<4x64xf32>
    %cst_121 = arith.constant 0.000000e+00 : f32
    %186 = vector.broadcast %cst_121 : f32 to vector<6x96xf32>
    %c0_122 = arith.constant 0 : index
    %c0_123 = arith.constant 0 : index
    %187 = vector.load %arg22[%c0_122, %c0_123] : memref<6x96xf32, #tpu.memory_space<vmem>>, vector<6x96xf32>
    tpu.vector_store %arg22[%c0_122, %c0_123], %186 {strides = array<i32>} : memref<6x96xf32, #tpu.memory_space<vmem>>, vector<6x96xf32>,
    %c1_124 = arith.constant 1 : index
    %c16 = arith.constant 16 : index
    %188 = vector.load %arg22[%c1_124, %c16] : memref<6x96xf32, #tpu.memory_space<vmem>>, vector<4x64xf32>
    tpu.vector_store %arg22[%c1_124, %c16], %185 {strides = array<i32>} : memref<6x96xf32, #tpu.memory_space<vmem>>, vector<4x64xf32>,
    %c0_125 = arith.constant 0 : index
    %c0_126 = arith.constant 0 : index
    %189 = vector.load %arg22[%c0_125, %c0_126] : memref<6x96xf32, #tpu.memory_space<vmem>>, vector<6x96xf32>
    %190 = tpu.iota {dimensions = array<i32: 1>} : vector<2x6xi32>
    %191 = tpu.iota {dimensions = array<i32: 0>} : vector<2x6xi32>
    %c2_i32_127 = arith.constant 2 : i32
    %192 = vector.broadcast %c2_i32_127 : i32 to vector<2x6xi32>
    %193 = arith.muli %192, %191 : vector<2x6xi32>
    %c0_i32_128 = arith.constant 0 : i32
    %194 = vector.broadcast %c0_i32_128 : i32 to vector<2x6xi32>
    %195 = arith.addi %193, %194 : vector<2x6xi32>
    %196 = arith.cmpi eq, %190, %195 : vector<2x6xi32>
    %197 = arith.extui %196 : vector<2x6xi1> to vector<2x6xi32>
    %198 = arith.sitofp %197 : vector<2x6xi32> to vector<2x6xf32>
    %cst_129 = arith.constant dense<0.000000e+00> : vector<2x96xf32>
    %199 = tpu.matmul %198, %189, %cst_129 {dimension_numbers = #tpu.dot_dimension_numbers<[1], [0], [0], [1], [0, 0, 1, 1], [], []>} : vector<2x6xf32>, vector<6x96xf32>, vector<2x96xf32> -> vector<2x96xf32>
    %c0_130 = arith.constant 0 : index
    %c0_131 = arith.constant 0 : index
    %c0_132 = arith.constant 0 : index
    %200 = vector.load %arg10[%c0_130, %c0_131, %c0_132] : memref<3x96x32xf32, #tpu.memory_space<vmem>>, vector<1x96x32xf32>
    %201 = vector.shape_cast %200 : vector<1x96x32xf32> to vector<96x32xf32>
    %cst_133 = arith.constant dense<0.000000e+00> : vector<2x32xf32>
    %202 = tpu.matmul %199, %201, %cst_133 {dimension_numbers = #tpu.dot_dimension_numbers<[1], [0], [0], [1], [0, 0, 1, 1], [], []>} : vector<2x96xf32>, vector<96x32xf32>, vector<2x32xf32> -> vector<2x32xf32>
    %c2_i32_134 = arith.constant 2 : i32
    %203 = vector.broadcast %c2_i32_134 : i32 to vector<2x6xi32>
    %204 = arith.muli %203, %191 : vector<2x6xi32>
    %c1_i32_135 = arith.constant 1 : i32
    %205 = vector.broadcast %c1_i32_135 : i32 to vector<2x6xi32>
    %206 = arith.addi %204, %205 : vector<2x6xi32>
    %207 = arith.cmpi eq, %190, %206 : vector<2x6xi32>
    %208 = arith.extui %207 : vector<2x6xi1> to vector<2x6xi32>
    %209 = arith.sitofp %208 : vector<2x6xi32> to vector<2x6xf32>
    %cst_136 = arith.constant dense<0.000000e+00> : vector<2x96xf32>
    %210 = tpu.matmul %209, %189, %cst_136 {dimension_numbers = #tpu.dot_dimension_numbers<[1], [0], [0], [1], [0, 0, 1, 1], [], []>} : vector<2x6xf32>, vector<6x96xf32>, vector<2x96xf32> -> vector<2x96xf32>
    %c1_137 = arith.constant 1 : index
    %c0_138 = arith.constant 0 : index
    %c0_139 = arith.constant 0 : index
    %211 = vector.load %arg10[%c1_137, %c0_138, %c0_139] : memref<3x96x32xf32, #tpu.memory_space<vmem>>, vector<1x96x32xf32>
    %212 = vector.shape_cast %211 : vector<1x96x32xf32> to vector<96x32xf32>
    %cst_140 = arith.constant dense<0.000000e+00> : vector<2x32xf32>
    %213 = tpu.matmul %210, %212, %cst_140 {dimension_numbers = #tpu.dot_dimension_numbers<[1], [0], [0], [1], [0, 0, 1, 1], [], []>} : vector<2x96xf32>, vector<96x32xf32>, vector<2x32xf32> -> vector<2x32xf32>
    %214 = arith.addf %202, %213 : vector<2x32xf32>
    %c2_i32_141 = arith.constant 2 : i32
    %215 = vector.broadcast %c2_i32_141 : i32 to vector<2x6xi32>
    %216 = arith.muli %215, %191 : vector<2x6xi32>
    %c2_i32_142 = arith.constant 2 : i32
    %217 = vector.broadcast %c2_i32_142 : i32 to vector<2x6xi32>
    %218 = arith.addi %216, %217 : vector<2x6xi32>
    %219 = arith.cmpi eq, %190, %218 : vector<2x6xi32>
    %220 = arith.extui %219 : vector<2x6xi1> to vector<2x6xi32>
    %221 = arith.sitofp %220 : vector<2x6xi32> to vector<2x6xf32>
    %cst_143 = arith.constant dense<0.000000e+00> : vector<2x96xf32>
    %222 = tpu.matmul %221, %189, %cst_143 {dimension_numbers = #tpu.dot_dimension_numbers<[1], [0], [0], [1], [0, 0, 1, 1], [], []>} : vector<2x6xf32>, vector<6x96xf32>, vector<2x96xf32> -> vector<2x96xf32>
    %c2_144 = arith.constant 2 : index
    %c0_145 = arith.constant 0 : index
    %c0_146 = arith.constant 0 : index
    %223 = vector.load %arg10[%c2_144, %c0_145, %c0_146] : memref<3x96x32xf32, #tpu.memory_space<vmem>>, vector<1x96x32xf32>
    %224 = vector.shape_cast %223 : vector<1x96x32xf32> to vector<96x32xf32>
    %cst_147 = arith.constant dense<0.000000e+00> : vector<2x32xf32>
    %225 = tpu.matmul %222, %224, %cst_147 {dimension_numbers = #tpu.dot_dimension_numbers<[1], [0], [0], [1], [0, 0, 1, 1], [], []>} : vector<2x96xf32>, vector<96x32xf32>, vector<2x32xf32> -> vector<2x32xf32>
    %226 = arith.addf %214, %225 : vector<2x32xf32>
    %c0_148 = arith.constant 0 : index
    %c0_149 = arith.constant 0 : index
    %227 = vector.load %arg11[%c0_148, %c0_149] : memref<1x32xf32, #tpu.memory_space<vmem>>, vector<1x32xf32>
    %228 = vector.broadcast %227 : vector<1x32xf32> to vector<2x32xf32>
    %229 = arith.addf %226, %228 : vector<2x32xf32>
    %cst_150 = arith.constant 5.000000e-01 : f32
    %230 = vector.broadcast %cst_150 : f32 to vector<2x32xf32>
    %231 = arith.mulf %230, %229 : vector<2x32xf32>
    %cst_151 = arith.constant 0.707106769 : f32
    %232 = vector.broadcast %cst_151 : f32 to vector<2x32xf32>
    %233 = arith.mulf %229, %232 : vector<2x32xf32>
    %234 = math.erf %233 : vector<2x32xf32>
    %cst_152 = arith.constant 1.000000e+00 : f32
    %235 = vector.broadcast %cst_152 : f32 to vector<2x32xf32>
    %236 = arith.addf %235, %234 : vector<2x32xf32>
    %237 = arith.mulf %231, %236 : vector<2x32xf32>
    %cst_153 = arith.constant 0.000000e+00 : f32
    %238 = vector.broadcast %cst_153 : f32 to vector<4x64xf32>
    %c0_154 = arith.constant 0 : index
    %c0_155 = arith.constant 0 : index
    %239 = vector.load %arg23[%c0_154, %c0_155] : memref<4x64xf32, #tpu.memory_space<vmem>>, vector<4x64xf32>
    tpu.vector_store %arg23[%c0_154, %c0_155], %238 {strides = array<i32>} : memref<4x64xf32, #tpu.memory_space<vmem>>, vector<4x64xf32>,
    %c1_156 = arith.constant 1 : index
    %c16_157 = arith.constant 16 : index
    %240 = vector.load %arg23[%c1_156, %c16_157] : memref<4x64xf32, #tpu.memory_space<vmem>>, vector<2x32xf32>
    tpu.vector_store %arg23[%c1_156, %c16_157], %237 {strides = array<i32>} : memref<4x64xf32, #tpu.memory_space<vmem>>, vector<2x32xf32>,
    %c0_158 = arith.constant 0 : index
    %c0_159 = arith.constant 0 : index
    %241 = vector.load %arg23[%c0_158, %c0_159] : memref<4x64xf32, #tpu.memory_space<vmem>>, vector<2x64xf32>
    %c0_160 = arith.constant 0 : index
    %c0_161 = arith.constant 0 : index
    %c0_162 = arith.constant 0 : index
    %242 = vector.load %arg12[%c0_160, %c0_161, %c0_162] : memref<3x64x32xf32, #tpu.memory_space<vmem>>, vector<1x64x32xf32>
    %243 = vector.shape_cast %242 : vector<1x64x32xf32> to vector<64x32xf32>
    %cst_163 = arith.constant dense<0.000000e+00> : vector<2x32xf32>
    %244 = tpu.matmul %241, %243, %cst_163 {dimension_numbers = #tpu.dot_dimension_numbers<[1], [0], [0], [1], [0, 0, 1, 1], [], []>} : vector<2x64xf32>, vector<64x32xf32>, vector<2x32xf32> -> vector<2x32xf32>
    %c1_164 = arith.constant 1 : index
    %c0_165 = arith.constant 0 : index
    %245 = vector.load %arg23[%c1_164, %c0_165] : memref<4x64xf32, #tpu.memory_space<vmem>>, vector<2x64xf32>
    %c1_166 = arith.constant 1 : index
    %c0_167 = arith.constant 0 : index
    %c0_168 = arith.constant 0 : index
    %246 = vector.load %arg12[%c1_166, %c0_167, %c0_168] : memref<3x64x32xf32, #tpu.memory_space<vmem>>, vector<1x64x32xf32>
    %247 = vector.shape_cast %246 : vector<1x64x32xf32> to vector<64x32xf32>
    %cst_169 = arith.constant dense<0.000000e+00> : vector<2x32xf32>
    %248 = tpu.matmul %245, %247, %cst_169 {dimension_numbers = #tpu.dot_dimension_numbers<[1], [0], [0], [1], [0, 0, 1, 1], [], []>} : vector<2x64xf32>, vector<64x32xf32>, vector<2x32xf32> -> vector<2x32xf32>
    %249 = arith.addf %244, %248 : vector<2x32xf32>
    %c2_170 = arith.constant 2 : index
    %c0_171 = arith.constant 0 : index
    %250 = vector.load %arg23[%c2_170, %c0_171] : memref<4x64xf32, #tpu.memory_space<vmem>>, vector<2x64xf32>
    %c2_172 = arith.constant 2 : index
    %c0_173 = arith.constant 0 : index
    %c0_174 = arith.constant 0 : index
    %251 = vector.load %arg12[%c2_172, %c0_173, %c0_174] : memref<3x64x32xf32, #tpu.memory_space<vmem>>, vector<1x64x32xf32>
    %252 = vector.shape_cast %251 : vector<1x64x32xf32> to vector<64x32xf32>
    %cst_175 = arith.constant dense<0.000000e+00> : vector<2x32xf32>
    %253 = tpu.matmul %250, %252, %cst_175 {dimension_numbers = #tpu.dot_dimension_numbers<[1], [0], [0], [1], [0, 0, 1, 1], [], []>} : vector<2x64xf32>, vector<64x32xf32>, vector<2x32xf32> -> vector<2x32xf32>
    %254 = arith.addf %249, %253 : vector<2x32xf32>
    %c0_176 = arith.constant 0 : index
    %c0_177 = arith.constant 0 : index
    %255 = vector.load %arg13[%c0_176, %c0_177] : memref<1x32xf32, #tpu.memory_space<vmem>>, vector<1x32xf32>
    %256 = vector.broadcast %255 : vector<1x32xf32> to vector<2x32xf32>
    %257 = arith.addf %254, %256 : vector<2x32xf32>
    %cst_178 = arith.constant 5.000000e-01 : f32
    %258 = vector.broadcast %cst_178 : f32 to vector<2x32xf32>
    %259 = arith.mulf %258, %257 : vector<2x32xf32>
    %cst_179 = arith.constant 0.707106769 : f32
    %260 = vector.broadcast %cst_179 : f32 to vector<2x32xf32>
    %261 = arith.mulf %257, %260 : vector<2x32xf32>
    %262 = math.erf %261 : vector<2x32xf32>
    %cst_180 = arith.constant 1.000000e+00 : f32
    %263 = vector.broadcast %cst_180 : f32 to vector<2x32xf32>
    %264 = arith.addf %263, %262 : vector<2x32xf32>
    %265 = arith.mulf %259, %264 : vector<2x32xf32>
    %cst_181 = arith.constant 0.000000e+00 : f32
    %266 = vector.broadcast %cst_181 : f32 to vector<4x64xf32>
    %c0_182 = arith.constant 0 : index
    %c0_183 = arith.constant 0 : index
    %267 = vector.load %arg24[%c0_182, %c0_183] : memref<4x64xf32, #tpu.memory_space<vmem>>, vector<4x64xf32>
    tpu.vector_store %arg24[%c0_182, %c0_183], %266 {strides = array<i32>} : memref<4x64xf32, #tpu.memory_space<vmem>>, vector<4x64xf32>,
    %c1_184 = arith.constant 1 : index
    %c16_185 = arith.constant 16 : index
    %268 = vector.load %arg24[%c1_184, %c16_185] : memref<4x64xf32, #tpu.memory_space<vmem>>, vector<2x32xf32>
    tpu.vector_store %arg24[%c1_184, %c16_185], %265 {strides = array<i32>} : memref<4x64xf32, #tpu.memory_space<vmem>>, vector<2x32xf32>,
    %c0_186 = arith.constant 0 : index
    %c0_187 = arith.constant 0 : index
    %269 = vector.load %arg24[%c0_186, %c0_187] : memref<4x64xf32, #tpu.memory_space<vmem>>, vector<4x64xf32>
    %270 = tpu.iota {dimensions = array<i32: 1>} : vector<1x4xi32>
    %271 = tpu.iota {dimensions = array<i32: 0>} : vector<1x4xi32>
    %c2_i32_188 = arith.constant 2 : i32
    %272 = vector.broadcast %c2_i32_188 : i32 to vector<1x4xi32>
    %273 = arith.muli %272, %271 : vector<1x4xi32>
    %c0_i32_189 = arith.constant 0 : i32
    %274 = vector.broadcast %c0_i32_189 : i32 to vector<1x4xi32>
    %275 = arith.addi %273, %274 : vector<1x4xi32>
    %276 = arith.cmpi eq, %270, %275 : vector<1x4xi32>
    %277 = arith.extui %276 : vector<1x4xi1> to vector<1x4xi32>
    %278 = arith.sitofp %277 : vector<1x4xi32> to vector<1x4xf32>
    %cst_190 = arith.constant dense<0.000000e+00> : vector<1x64xf32>
    %279 = tpu.matmul %278, %269, %cst_190 {dimension_numbers = #tpu.dot_dimension_numbers<[1], [0], [0], [1], [0, 0, 1, 1], [], []>} : vector<1x4xf32>, vector<4x64xf32>, vector<1x64xf32> -> vector<1x64xf32>
    %c0_191 = arith.constant 0 : index
    %c0_192 = arith.constant 0 : index
    %c0_193 = arith.constant 0 : index
    %280 = vector.load %arg14[%c0_191, %c0_192, %c0_193] : memref<3x64x32xf32, #tpu.memory_space<vmem>>, vector<1x64x32xf32>
    %281 = vector.shape_cast %280 : vector<1x64x32xf32> to vector<64x32xf32>
    %cst_194 = arith.constant dense<0.000000e+00> : vector<1x32xf32>
    %282 = tpu.matmul %279, %281, %cst_194 {dimension_numbers = #tpu.dot_dimension_numbers<[1], [0], [0], [1], [0, 0, 1, 1], [], []>} : vector<1x64xf32>, vector<64x32xf32>, vector<1x32xf32> -> vector<1x32xf32>
    %c2_i32_195 = arith.constant 2 : i32
    %283 = vector.broadcast %c2_i32_195 : i32 to vector<1x4xi32>
    %284 = arith.muli %283, %271 : vector<1x4xi32>
    %c1_i32_196 = arith.constant 1 : i32
    %285 = vector.broadcast %c1_i32_196 : i32 to vector<1x4xi32>
    %286 = arith.addi %284, %285 : vector<1x4xi32>
    %287 = arith.cmpi eq, %270, %286 : vector<1x4xi32>
    %288 = arith.extui %287 : vector<1x4xi1> to vector<1x4xi32>
    %289 = arith.sitofp %288 : vector<1x4xi32> to vector<1x4xf32>
    %cst_197 = arith.constant dense<0.000000e+00> : vector<1x64xf32>
    %290 = tpu.matmul %289, %269, %cst_197 {dimension_numbers = #tpu.dot_dimension_numbers<[1], [0], [0], [1], [0, 0, 1, 1], [], []>} : vector<1x4xf32>, vector<4x64xf32>, vector<1x64xf32> -> vector<1x64xf32>
    %c1_198 = arith.constant 1 : index
    %c0_199 = arith.constant 0 : index
    %c0_200 = arith.constant 0 : index
    %291 = vector.load %arg14[%c1_198, %c0_199, %c0_200] : memref<3x64x32xf32, #tpu.memory_space<vmem>>, vector<1x64x32xf32>
    %292 = vector.shape_cast %291 : vector<1x64x32xf32> to vector<64x32xf32>
    %cst_201 = arith.constant dense<0.000000e+00> : vector<1x32xf32>
    %293 = tpu.matmul %290, %292, %cst_201 {dimension_numbers = #tpu.dot_dimension_numbers<[1], [0], [0], [1], [0, 0, 1, 1], [], []>} : vector<1x64xf32>, vector<64x32xf32>, vector<1x32xf32> -> vector<1x32xf32>
    %294 = arith.addf %282, %293 : vector<1x32xf32>
    %c2_i32_202 = arith.constant 2 : i32
    %295 = vector.broadcast %c2_i32_202 : i32 to vector<1x4xi32>
    %296 = arith.muli %295, %271 : vector<1x4xi32>
    %c2_i32_203 = arith.constant 2 : i32
    %297 = vector.broadcast %c2_i32_203 : i32 to vector<1x4xi32>
    %298 = arith.addi %296, %297 : vector<1x4xi32>
    %299 = arith.cmpi eq, %270, %298 : vector<1x4xi32>
    %300 = arith.extui %299 : vector<1x4xi1> to vector<1x4xi32>
    %301 = arith.sitofp %300 : vector<1x4xi32> to vector<1x4xf32>
    %cst_204 = arith.constant dense<0.000000e+00> : vector<1x64xf32>
    %302 = tpu.matmul %301, %269, %cst_204 {dimension_numbers = #tpu.dot_dimension_numbers<[1], [0], [0], [1], [0, 0, 1, 1], [], []>} : vector<1x4xf32>, vector<4x64xf32>, vector<1x64xf32> -> vector<1x64xf32>
    %c2_205 = arith.constant 2 : index
    %c0_206 = arith.constant 0 : index
    %c0_207 = arith.constant 0 : index
    %303 = vector.load %arg14[%c2_205, %c0_206, %c0_207] : memref<3x64x32xf32, #tpu.memory_space<vmem>>, vector<1x64x32xf32>
    %304 = vector.shape_cast %303 : vector<1x64x32xf32> to vector<64x32xf32>
    %cst_208 = arith.constant dense<0.000000e+00> : vector<1x32xf32>
    %305 = tpu.matmul %302, %304, %cst_208 {dimension_numbers = #tpu.dot_dimension_numbers<[1], [0], [0], [1], [0, 0, 1, 1], [], []>} : vector<1x64xf32>, vector<64x32xf32>, vector<1x32xf32> -> vector<1x32xf32>
    %306 = arith.addf %294, %305 : vector<1x32xf32>
    %c0_209 = arith.constant 0 : index
    %c0_210 = arith.constant 0 : index
    %307 = vector.load %arg15[%c0_209, %c0_210] : memref<1x32xf32, #tpu.memory_space<vmem>>, vector<1x32xf32>
    %308 = arith.addf %306, %307 : vector<1x32xf32>
    %cst_211 = arith.constant 5.000000e-01 : f32
    %309 = vector.broadcast %cst_211 : f32 to vector<1x32xf32>
    %310 = arith.mulf %309, %308 : vector<1x32xf32>
    %cst_212 = arith.constant 0.707106769 : f32
    %311 = vector.broadcast %cst_212 : f32 to vector<1x32xf32>
    %312 = arith.mulf %308, %311 : vector<1x32xf32>
    %313 = math.erf %312 : vector<1x32xf32>
    %cst_213 = arith.constant 1.000000e+00 : f32
    %314 = vector.broadcast %cst_213 : f32 to vector<1x32xf32>
    %315 = arith.addf %314, %313 : vector<1x32xf32>
    %316 = arith.mulf %310, %315 : vector<1x32xf32>
    %cst_214 = arith.constant dense<0.000000e+00> : vector<32xf32>
    %317 = vector.multi_reduction <add>, %316, %cst_214 [0] : vector<1x32xf32> to vector<32xf32>
    %318 = vector.shape_cast %317 : vector<32xf32> to vector<1x32xf32>
    %cst_215 = arith.constant 1.000000e+00 : f32
    %319 = vector.broadcast %cst_215 : f32 to vector<1x32xf32>
    %320 = arith.mulf %318, %319 : vector<1x32xf32>
    %c0_216 = arith.constant 0 : index
    %c0_217 = arith.constant 0 : index
    %321 = vector.load %arg16[%c0_216, %c0_217] : memref<32x26xf32, #tpu.memory_space<vmem>>, vector<32x26xf32>
    %cst_218 = arith.constant dense<0.000000e+00> : vector<1x26xf32>
    %322 = tpu.matmul %320, %321, %cst_218 {dimension_numbers = #tpu.dot_dimension_numbers<[1], [0], [0], [1], [0, 0, 1, 1], [], []>} : vector<1x32xf32>, vector<32x26xf32>, vector<1x26xf32> -> vector<1x26xf32>
    %c0_219 = arith.constant 0 : index
    %c0_220 = arith.constant 0 : index
    %c0_221 = arith.constant 0 : index
    %323 = vector.load %arg17[%c0_219, %c0_220, %c0_221] : memref<1x1x26xf32, #tpu.memory_space<vmem>>, vector<1x1x26xf32>
    %324 = vector.shape_cast %323 : vector<1x1x26xf32> to vector<1x26xf32>
    %325 = vector.shape_cast %322 : vector<1x26xf32> to vector<1x1x26xf32>
    tpu.vector_store %arg17[%c0_219, %c0_220, %c0_221], %325 {strides = array<i32>} : memref<1x1x26xf32, #tpu.memory_space<vmem>>, vector<1x1x26xf32>,
    return
  }
  func.func @transform_0(%arg0: i32) -> (i32, i32, i32) {
    %c0_i32 = arith.constant 0 : i32
    %c0_i32_0 = arith.constant 0 : i32
    %c0_i32_1 = arith.constant 0 : i32
    return %arg0, %c0_i32, %c0_i32_0 : i32, i32, i32
  }
  func.func @transform_1(%arg0: i32) -> (i32, i32, i32) {
    %c0_i32 = arith.constant 0 : i32
    %c0_i32_0 = arith.constant 0 : i32
    %c0_i32_1 = arith.constant 0 : i32
    %c0_i32_2 = arith.constant 0 : i32
    return %c0_i32, %c0_i32_0, %c0_i32_1 : i32, i32, i32
  }
  func.func @transform_2(%arg0: i32) -> (i32, i32) {
    %c0_i32 = arith.constant 0 : i32
    %c0_i32_0 = arith.constant 0 : i32
    %c0_i32_1 = arith.constant 0 : i32
    return %c0_i32, %c0_i32_0 : i32, i32
  }
  func.func @transform_3(%arg0: i32) -> (i32, i32, i32) {
    %c0_i32 = arith.constant 0 : i32
    %c0_i32_0 = arith.constant 0 : i32
    %c0_i32_1 = arith.constant 0 : i32
    %c0_i32_2 = arith.constant 0 : i32
    return %c0_i32, %c0_i32_0, %c0_i32_1 : i32, i32, i32
  }
  func.func @transform_4(%arg0: i32) -> (i32, i32) {
    %c0_i32 = arith.constant 0 : i32
    %c0_i32_0 = arith.constant 0 : i32
    %c0_i32_1 = arith.constant 0 : i32
    return %c0_i32, %c0_i32_0 : i32, i32
  }
  func.func @transform_5(%arg0: i32) -> (i32, i32, i32) {
    %c0_i32 = arith.constant 0 : i32
    %c0_i32_0 = arith.constant 0 : i32
    %c0_i32_1 = arith.constant 0 : i32
    %c0_i32_2 = arith.constant 0 : i32
    return %c0_i32, %c0_i32_0, %c0_i32_1 : i32, i32, i32
  }
  func.func @transform_6(%arg0: i32) -> (i32, i32) {
    %c0_i32 = arith.constant 0 : i32
    %c0_i32_0 = arith.constant 0 : i32
    %c0_i32_1 = arith.constant 0 : i32
    return %c0_i32, %c0_i32_0 : i32, i32
  }
  func.func @transform_7(%arg0: i32) -> (i32, i32, i32) {
    %c0_i32 = arith.constant 0 : i32
    %c0_i32_0 = arith.constant 0 : i32
    %c0_i32_1 = arith.constant 0 : i32
    %c0_i32_2 = arith.constant 0 : i32
    return %c0_i32, %c0_i32_0, %c0_i32_1 : i32, i32, i32
  }
  func.func @transform_8(%arg0: i32) -> (i32, i32) {
    %c0_i32 = arith.constant 0 : i32
    %c0_i32_0 = arith.constant 0 : i32
    %c0_i32_1 = arith.constant 0 : i32
    return %c0_i32, %c0_i32_0 : i32, i32
  }
  func.func @transform_9(%arg0: i32) -> (i32, i32, i32) {
    %c0_i32 = arith.constant 0 : i32
    %c0_i32_0 = arith.constant 0 : i32
    %c0_i32_1 = arith.constant 0 : i32
    %c0_i32_2 = arith.constant 0 : i32
    return %c0_i32, %c0_i32_0, %c0_i32_1 : i32, i32, i32
  }
  func.func @transform_10(%arg0: i32) -> (i32, i32) {
    %c0_i32 = arith.constant 0 : i32
    %c0_i32_0 = arith.constant 0 : i32
    %c0_i32_1 = arith.constant 0 : i32
    return %c0_i32, %c0_i32_0 : i32, i32
  }
  func.func @transform_11(%arg0: i32) -> (i32, i32, i32) {
    %c0_i32 = arith.constant 0 : i32
    %c0_i32_0 = arith.constant 0 : i32
    %c0_i32_1 = arith.constant 0 : i32
    %c0_i32_2 = arith.constant 0 : i32
    return %c0_i32, %c0_i32_0, %c0_i32_1 : i32, i32, i32
  }
  func.func @transform_12(%arg0: i32) -> (i32, i32) {
    %c0_i32 = arith.constant 0 : i32
    %c0_i32_0 = arith.constant 0 : i32
    %c0_i32_1 = arith.constant 0 : i32
    return %c0_i32, %c0_i32_0 : i32, i32
  }
  func.func @transform_13(%arg0: i32) -> (i32, i32, i32) {
    %c0_i32 = arith.constant 0 : i32
    %c0_i32_0 = arith.constant 0 : i32
    %c0_i32_1 = arith.constant 0 : i32
    %c0_i32_2 = arith.constant 0 : i32
    return %c0_i32, %c0_i32_0, %c0_i32_1 : i32, i32, i32
  }
  func.func @transform_14(%arg0: i32) -> (i32, i32) {
    %c0_i32 = arith.constant 0 : i32
    %c0_i32_0 = arith.constant 0 : i32
    %c0_i32_1 = arith.constant 0 : i32
    return %c0_i32, %c0_i32_0 : i32, i32
  }
  func.func @transform_15(%arg0: i32) -> (i32, i32) {
    %c0_i32 = arith.constant 0 : i32
    %c0_i32_0 = arith.constant 0 : i32
    %c0_i32_1 = arith.constant 0 : i32
    return %c0_i32, %c0_i32_0 : i32, i32
  }
  func.func @transform_16(%arg0: i32) -> (i32, i32, i32) {
    %c0_i32 = arith.constant 0 : i32
    %c0_i32_0 = arith.constant 0 : i32
    %c0_i32_1 = arith.constant 0 : i32
    return %arg0, %c0_i32, %c0_i32_0 : i32, i32, i32
  }
}

</mosaic_0001>

<llo_original>
// kernel: _lambda_.1
$region0: #{_lambda_.1}
  #allocation0 [shape = 'u32[]', space=smem, size = 0x4, offset = 0x4, fixed_abs, tag = 'smem constant byte address 0x4 - core index']
  #allocation1 [shape = 'u32[144,128]{1,0:T(1,128)}', space=vmem, size = 0x12000, scoped, tag = 'internal scratch']
  #allocation2 [shape = 'f32[34,102]{1,0:T(8,128)}', space=vmem, size = 0x5000, scoped, tag = 'scratch operand']
  #allocation3 [shape = 'f32[18,144]{1,0:T(8,128)}', space=vmem, size = 0x6000, scoped, tag = 'scratch operand']
  #allocation4 [shape = 'f32[10,80]{1,0:T(8,128)}', space=vmem, size = 0x2000, scoped, tag = 'scratch operand']
  #allocation5 [shape = 'f32[10,80]{1,0:T(8,128)}', space=vmem, size = 0x2000, scoped, tag = 'scratch operand']
  #allocation6 [shape = 'f32[6,96]{1,0:T(8,128)}', space=vmem, size = 0x1000, scoped, tag = 'scratch operand']
  #allocation7 [shape = 'f32[4,64]{1,0:T(4,128)}', space=vmem, size = 0x800, scoped, tag = 'scratch operand']
  #allocation8 [shape = 'f32[4,64]{1,0:T(4,128)}', space=vmem, size = 0x800, scoped, tag = 'scratch operand']
  %s0 = inlined_call_operand.vmem [shape: f32[2,32,96], index: 0, kind: input, shape index: {}]
  %s1 = inlined_call_operand.hbm [shape: f32[3,102,128], index: 1, kind: input, shape index: {}]
  %s2 = inlined_call_operand.hbm [shape: f32[1,128], index: 2, kind: input, shape index: {}]
  %s3 = inlined_call_operand.vmem [shape: f32[3,144,64], index: 3, kind: input, shape index: {}]
  %s4 = inlined_call_operand.hbm [shape: f32[1,64], index: 4, kind: input, shape index: {}]
  %s5 = inlined_call_operand.hbm [shape: f32[3,80,64], index: 5, kind: input, shape index: {}]
  %s6 = inlined_call_operand.hbm [shape: f32[1,64], index: 6, kind: input, shape index: {}]
  %s7 = inlined_call_operand.hbm [shape: f32[3,80,64], index: 7, kind: input, shape index: {}]
  %s8 = inlined_call_operand.hbm [shape: f32[1,64], index: 8, kind: input, shape index: {}]
  %s9 = inlined_call_operand.hbm [shape: f32[3,96,32], index: 9, kind: input, shape index: {}]
  %s10 = inlined_call_operand.hbm [shape: f32[1,32], index: 10, kind: input, shape index: {}]
  %s11 = inlined_call_operand.hbm [shape: f32[3,64,32], index: 11, kind: input, shape index: {}]
  %s12 = inlined_call_operand.vmem [shape: f32[1,32], index: 12, kind: input, shape index: {}]
  %s13 = inlined_call_operand.vmem [shape: f32[3,64,32], index: 13, kind: input, shape index: {}]
  %s14 = inlined_call_operand.vmem [shape: f32[1,32], index: 14, kind: input, shape index: {}]
  %s15 = inlined_call_operand.vmem [shape: f32[32,26], index: 15, kind: input, shape index: {}]
  %s16 = inlined_call_operand.hbm [shape: f32[2,1,26], index: 16, kind: output, shape index: {}]
  %s17 = sld [smem:[#allocation0]]
  $region137: #{_lambda_.1} parent=0
    _
  %s19 = ssub.s32 1, %s17
  %s20 = scalar_select 0, %s19, %s17
  $region1: #{_lambda_.1} parent=0
    #allocation9 [shape = 'u8[159744]{0}', space=vmem, size = 0x27000, scoped, tag = 'input window, operand 1, single buffered']
    #allocation10 [shape = 's32[2]{0}', space=sflag, size = 0x8, scoped, tag = 'scoped memory for _lambda_.1']
    #allocation11 [shape = 's32[2]{0}', space=sflag, size = 0x8, scoped, tag = 'scoped memory for _lambda_.1']
    #allocation12 [shape = 'u8[512]{0}', space=vmem, size = 0x400, scoped, tag = 'input window, operand 2, single buffered']
    #allocation13 [shape = 's32[1]{0}', space=sflag, size = 0x4, scoped, tag = 'scoped memory for _lambda_.1']
    #allocation14 [shape = 'u8[512]{0}', space=vmem, size = 0x400, scoped, tag = 'input window, operand 4, single buffered']
    #allocation15 [shape = 'u8[122880]{0}', space=vmem, size = 0x1e000, scoped, tag = 'input window, operand 5, single buffered']
    #allocation16 [shape = 's32[1]{0}', space=sflag, size = 0x4, scoped, tag = 'scoped memory for _lambda_.1']
    #allocation17 [shape = 'u8[512]{0}', space=vmem, size = 0x400, scoped, tag = 'input window, operand 6, single buffered']
    #allocation18 [shape = 'u8[122880]{0}', space=vmem, size = 0x1e000, scoped, tag = 'input window, operand 7, single buffered']
    #allocation19 [shape = 's32[1]{0}', space=sflag, size = 0x4, scoped, tag = 'scoped memory for _lambda_.1']
    #allocation20 [shape = 'u8[512]{0}', space=vmem, size = 0x400, scoped, tag = 'input window, operand 8, single buffered']
    #allocation21 [shape = 'u8[147456]{0}', space=vmem, size = 0x24000, scoped, tag = 'input window, operand 9, single buffered']
    #allocation22 [shape = 's32[1]{0}', space=sflag, size = 0x4, scoped, tag = 'scoped memory for _lambda_.1']
    #allocation23 [shape = 'u8[512]{0}', space=vmem, size = 0x400, scoped, tag = 'input window, operand 10, single buffered']
    #allocation24 [shape = 'u8[98304]{0}', space=vmem, size = 0x18000, scoped, tag = 'input window, operand 11, single buffered']
    #allocation25 [shape = 's32[1]{0}', space=sflag, size = 0x4, scoped, tag = 'scoped memory for _lambda_.1']
    #allocation26 [shape = 'u8[1024]{0}', space=vmem, size = 0x400, scoped, tag = 'output window, operand 0']
    %21 = vsyncpa [#allocation10], 0
    %22 = vsyncpa [#allocation13], 0
    %23 = vsyncpa [#allocation16], 0
    %24 = vsyncpa [#allocation19], 0
    %25 = vsyncpa [#allocation22], 0
    %26 = vsyncpa [#allocation25], 0
    %27 = vsyncpa [#allocation11], 0
    %s28 = scalar_lea.sflag [#allocation11], 1
    %29 = vsyncpa %s28, 0
    loop: start=0, step=1, limit=4
    $region2: #{_lambda_.1} parent=1 // loop_pre_header
      _
    $region3: #{_lambda_.1} parent=1 // loop_header
      %s31 = sphi 0, %s35
      %p32 = scmp.ge.s32.totalorder %s31, 4
      %s41 = sphi 0, %s43
      %s44 = sphi 0, %s41
      %s45 = sphi 0, %s44
      %s61 = sphi 0, %s45
      %s65 = sphi 0, %s65
      %s67 = sphi 0, %s65
      %s68 = sphi 0, %s67
      %s82 = sphi 0, %s68
      %s86 = sphi 0, %s86
      %s88 = sphi 0, %s86
      %s89 = sphi 0, %s88
      %s103 = sphi 0, %s89
      %s107 = sphi 0, %s107
      %s109 = sphi 0, %s107
      %s110 = sphi 0, %s109
      %s124 = sphi 0, %s110
      %s128 = sphi 0, %s128
      %s130 = sphi 0, %s128
      %s131 = sphi 0, %s130
      %s145 = sphi 0, %s131
      %s149 = sphi 0, %s149
      %s151 = sphi 0, %s149
      %s152 = sphi 0, %s151
      %s166 = sphi 0, %s152
      %s170 = sphi 0, %s170
      %s172 = sphi 0, %s170
      %s173 = sphi 0, %s172
      %s187 = sphi 0, %s173
      %s191 = sphi 0, %s191
      %s193 = sphi 0, %s191
      %s194 = sphi 0, %s193
      %s208 = sphi 0, %s194
      %s212 = sphi 0, %s212
      %s214 = sphi 0, %s212
      %s215 = sphi 0, %s214
      %s229 = sphi 0, %s215
      %s233 = sphi 0, %s233
      %s235 = sphi 0, %s233
      %s236 = sphi 0, %s235
      %s250 = sphi 0, %s236
      %s254 = sphi 0, %s254
      %s256 = sphi 0, %s254
      %s257 = sphi 0, %s256
      %s271 = sphi 0, %s257
      %s275 = sphi 0, %s275
      %s277 = sphi 0, %s275
      %s278 = sphi 0, %s277
      %s292 = sphi 0, %s278
      %s296 = sphi 0, %s296
      %s298 = sphi 0, %s296
      %s299 = sphi 0, %s298
      %s313 = sphi 0, %s299
      %s317 = sphi 0, %s317
      %s319 = sphi 0, %s317
      %s320 = sphi 0, %s319
      %s334 = sphi 0, %s320
      %s338 = sphi 0, %s338
      %s340 = sphi 0, %s338
      %s341 = sphi 0, %s340
      %s355 = sphi 0, %s341
      %s359 = sphi 0, %s359
      %s361 = sphi 0, %s359
      %s362 = sphi 0, %s361
      %s376 = sphi 0, %s362
      %s382 = sphi 0, %s384
      %s385 = sphi 0, %s382
      %s386 = sphi 0, %s385
      %s402 = sphi 0, %s386
    $region4: #{_lambda_.1} parent=1 // loop_header_branch
      %34 = sbr.rel (%p32) target = $region8
    $region5: #{_lambda_.1} parent=1 // loop_body
      %s36 = ssub.s32 %s31, 1
      %s37 = ssub.s32 %s31, 2
      %s38 = sadd.s32 %s31, 1
      %s39 = ssub.s32 %s31, %s38
      %p40 = scmp.eq.s32.totalorder %s39, 0
      %s42 = sadd.s32 %s41, 1
      %s43 = scalar_select %p40, %s41, %s42
      %p46 = pneg %p40
      %p47 = scmp.eq.s32.totalorder %s31, 1
      %p48 = por %p46, %p47
      %p49 = scmp.ne.s32.totalorder %s41, %s44
      %p50 = scmp.eq.s32.totalorder %s31, 0
      %p51 = por %p49, %p50
      %p52 = scmp.ne.s32.totalorder %s41, %s44
      %p53 = scmp.eq.s32.totalorder %s36, 1
      %p54 = por %p52, %p53
      %p55 = scmp.ne.s32.totalorder %s44, %s45
      %p56 = scmp.eq.s32.totalorder %s36, 0
      %p57 = por %p55, %p56
      %p58 = scmp.ne.s32.totalorder %s44, %s45
      %p59 = scmp.eq.s32.totalorder %s37, 1
      %p60 = por %p58, %p59
      %p62 = scmp.ne.s32.totalorder %s45, %s61
      %p63 = scmp.eq.s32.totalorder %s37, 0
      %p64 = por %p62, %p63
      %s66 = sadd.s32 %s65, 1
      %p69 = scmp.eq.s32.totalorder %s31, 1
      %p70 = scmp.ne.s32.totalorder %s65, %s67
      %p71 = scmp.eq.s32.totalorder %s31, 0
      %p72 = por %p70, %p71
      %p73 = scmp.ne.s32.totalorder %s65, %s67
      %p74 = scmp.eq.s32.totalorder %s36, 1
      %p75 = por %p73, %p74
      %p76 = scmp.ne.s32.totalorder %s67, %s68
      %p77 = scmp.eq.s32.totalorder %s36, 0
      %p78 = por %p76, %p77
      %p79 = scmp.ne.s32.totalorder %s67, %s68
      %p80 = scmp.eq.s32.totalorder %s37, 1
      %p81 = por %p79, %p80
      %p83 = scmp.ne.s32.totalorder %s68, %s82
      %p84 = scmp.eq.s32.totalorder %s37, 0
      %p85 = por %p83, %p84
      %s87 = sadd.s32 %s86, 1
      %p90 = scmp.eq.s32.totalorder %s31, 1
      %p91 = scmp.ne.s32.totalorder %s86, %s88
      %p92 = scmp.eq.s32.totalorder %s31, 0
      %p93 = por %p91, %p92
      %p94 = scmp.ne.s32.totalorder %s86, %s88
      %p95 = scmp.eq.s32.totalorder %s36, 1
      %p96 = por %p94, %p95
      %p97 = scmp.ne.s32.totalorder %s88, %s89
      %p98 = scmp.eq.s32.totalorder %s36, 0
      %p99 = por %p97, %p98
      %p100 = scmp.ne.s32.totalorder %s88, %s89
      %p101 = scmp.eq.s32.totalorder %s37, 1
      %p102 = por %p100, %p101
      %p104 = scmp.ne.s32.totalorder %s89, %s103
      %p105 = scmp.eq.s32.totalorder %s37, 0
      %p106 = por %p104, %p105
      %s108 = sadd.s32 %s107, 1
      %p111 = scmp.eq.s32.totalorder %s31, 1
      %p112 = scmp.ne.s32.totalorder %s107, %s109
      %p113 = scmp.eq.s32.totalorder %s31, 0
      %p114 = por %p112, %p113
      %p115 = scmp.ne.s32.totalorder %s107, %s109
      %p116 = scmp.eq.s32.totalorder %s36, 1
      %p117 = por %p115, %p116
      %p118 = scmp.ne.s32.totalorder %s109, %s110
      %p119 = scmp.eq.s32.totalorder %s36, 0
      %p120 = por %p118, %p119
      %p121 = scmp.ne.s32.totalorder %s109, %s110
      %p122 = scmp.eq.s32.totalorder %s37, 1
      %p123 = por %p121, %p122
      %p125 = scmp.ne.s32.totalorder %s110, %s124
      %p126 = scmp.eq.s32.totalorder %s37, 0
      %p127 = por %p125, %p126
      %s129 = sadd.s32 %s128, 1
      %p132 = scmp.eq.s32.totalorder %s31, 1
      %p133 = scmp.ne.s32.totalorder %s128, %s130
      %p134 = scmp.eq.s32.totalorder %s31, 0
      %p135 = por %p133, %p134
      %p136 = scmp.ne.s32.totalorder %s128, %s130
      %p137 = scmp.eq.s32.totalorder %s36, 1
      %p138 = por %p136, %p137
      %p139 = scmp.ne.s32.totalorder %s130, %s131
      %p140 = scmp.eq.s32.totalorder %s36, 0
      %p141 = por %p139, %p140
      %p142 = scmp.ne.s32.totalorder %s130, %s131
      %p143 = scmp.eq.s32.totalorder %s37, 1
      %p144 = por %p142, %p143
      %p146 = scmp.ne.s32.totalorder %s131, %s145
      %p147 = scmp.eq.s32.totalorder %s37, 0
      %p148 = por %p146, %p147
      %s150 = sadd.s32 %s149, 1
      %p153 = scmp.eq.s32.totalorder %s31, 1
      %p154 = scmp.ne.s32.totalorder %s149, %s151
      %p155 = scmp.eq.s32.totalorder %s31, 0
      %p156 = por %p154, %p155
      %p157 = scmp.ne.s32.totalorder %s149, %s151
      %p158 = scmp.eq.s32.totalorder %s36, 1
      %p159 = por %p157, %p158
      %p160 = scmp.ne.s32.totalorder %s151, %s152
      %p161 = scmp.eq.s32.totalorder %s36, 0
      %p162 = por %p160, %p161
      %p163 = scmp.ne.s32.totalorder %s151, %s152
      %p164 = scmp.eq.s32.totalorder %s37, 1
      %p165 = por %p163, %p164
      %p167 = scmp.ne.s32.totalorder %s152, %s166
      %p168 = scmp.eq.s32.totalorder %s37, 0
      %p169 = por %p167, %p168
      %s171 = sadd.s32 %s170, 1
      %p174 = scmp.eq.s32.totalorder %s31, 1
      %p175 = scmp.ne.s32.totalorder %s170, %s172
      %p176 = scmp.eq.s32.totalorder %s31, 0
      %p177 = por %p175, %p176
      %p178 = scmp.ne.s32.totalorder %s170, %s172
      %p179 = scmp.eq.s32.totalorder %s36, 1
      %p180 = por %p178, %p179
      %p181 = scmp.ne.s32.totalorder %s172, %s173
      %p182 = scmp.eq.s32.totalorder %s36, 0
      %p183 = por %p181, %p182
      %p184 = scmp.ne.s32.totalorder %s172, %s173
      %p185 = scmp.eq.s32.totalorder %s37, 1
      %p186 = por %p184, %p185
      %p188 = scmp.ne.s32.totalorder %s173, %s187
      %p189 = scmp.eq.s32.totalorder %s37, 0
      %p190 = por %p188, %p189
      %s192 = sadd.s32 %s191, 1
      %p195 = scmp.eq.s32.totalorder %s31, 1
      %p196 = scmp.ne.s32.totalorder %s191, %s193
      %p197 = scmp.eq.s32.totalorder %s31, 0
      %p198 = por %p196, %p197
      %p199 = scmp.ne.s32.totalorder %s191, %s193
      %p200 = scmp.eq.s32.totalorder %s36, 1
      %p201 = por %p199, %p200
      %p202 = scmp.ne.s32.totalorder %s193, %s194
      %p203 = scmp.eq.s32.totalorder %s36, 0
      %p204 = por %p202, %p203
      %p205 = scmp.ne.s32.totalorder %s193, %s194
      %p206 = scmp.eq.s32.totalorder %s37, 1
      %p207 = por %p205, %p206
      %p209 = scmp.ne.s32.totalorder %s194, %s208
      %p210 = scmp.eq.s32.totalorder %s37, 0
      %p211 = por %p209, %p210
      %s213 = sadd.s32 %s212, 1
      %p216 = scmp.eq.s32.totalorder %s31, 1
      %p217 = scmp.ne.s32.totalorder %s212, %s214
      %p218 = scmp.eq.s32.totalorder %s31, 0
      %p219 = por %p217, %p218
      %p220 = scmp.ne.s32.totalorder %s212, %s214
      %p221 = scmp.eq.s32.totalorder %s36, 1
      %p222 = por %p220, %p221
      %p223 = scmp.ne.s32.totalorder %s214, %s215
      %p224 = scmp.eq.s32.totalorder %s36, 0
      %p225 = por %p223, %p224
      %p226 = scmp.ne.s32.totalorder %s214, %s215
      %p227 = scmp.eq.s32.totalorder %s37, 1
      %p228 = por %p226, %p227
      %p230 = scmp.ne.s32.totalorder %s215, %s229
      %p231 = scmp.eq.s32.totalorder %s37, 0
      %p232 = por %p230, %p231
      %s234 = sadd.s32 %s233, 1
      %p237 = scmp.eq.s32.totalorder %s31, 1
      %p238 = scmp.ne.s32.totalorder %s233, %s235
      %p239 = scmp.eq.s32.totalorder %s31, 0
      %p240 = por %p238, %p239
      %p241 = scmp.ne.s32.totalorder %s233, %s235
      %p242 = scmp.eq.s32.totalorder %s36, 1
      %p243 = por %p241, %p242
      %p244 = scmp.ne.s32.totalorder %s235, %s236
      %p245 = scmp.eq.s32.totalorder %s36, 0
      %p246 = por %p244, %p245
      %p247 = scmp.ne.s32.totalorder %s235, %s236
      %p248 = scmp.eq.s32.totalorder %s37, 1
      %p249 = por %p247, %p248
      %p251 = scmp.ne.s32.totalorder %s236, %s250
      %p252 = scmp.eq.s32.totalorder %s37, 0
      %p253 = por %p251, %p252
      %s255 = sadd.s32 %s254, 1
      %p258 = scmp.eq.s32.totalorder %s31, 1
      %p259 = scmp.ne.s32.totalorder %s254, %s256
      %p260 = scmp.eq.s32.totalorder %s31, 0
      %p261 = por %p259, %p260
      %p262 = scmp.ne.s32.totalorder %s254, %s256
      %p263 = scmp.eq.s32.totalorder %s36, 1
      %p264 = por %p262, %p263
      %p265 = scmp.ne.s32.totalorder %s256, %s257
      %p266 = scmp.eq.s32.totalorder %s36, 0
      %p267 = por %p265, %p266
      %p268 = scmp.ne.s32.totalorder %s256, %s257
      %p269 = scmp.eq.s32.totalorder %s37, 1
      %p270 = por %p268, %p269
      %p272 = scmp.ne.s32.totalorder %s257, %s271
      %p273 = scmp.eq.s32.totalorder %s37, 0
      %p274 = por %p272, %p273
      %s276 = sadd.s32 %s275, 1
      %p279 = scmp.eq.s32.totalorder %s31, 1
      %p280 = scmp.ne.s32.totalorder %s275, %s277
      %p281 = scmp.eq.s32.totalorder %s31, 0
      %p282 = por %p280, %p281
      %p283 = scmp.ne.s32.totalorder %s275, %s277
      %p284 = scmp.eq.s32.totalorder %s36, 1
      %p285 = por %p283, %p284
      %p286 = scmp.ne.s32.totalorder %s277, %s278
      %p287 = scmp.eq.s32.totalorder %s36, 0
      %p288 = por %p286, %p287
      %p289 = scmp.ne.s32.totalorder %s277, %s278
      %p290 = scmp.eq.s32.totalorder %s37, 1
      %p291 = por %p289, %p290
      %p293 = scmp.ne.s32.totalorder %s278, %s292
      %p294 = scmp.eq.s32.totalorder %s37, 0
      %p295 = por %p293, %p294
      %s297 = sadd.s32 %s296, 1
      %p300 = scmp.eq.s32.totalorder %s31, 1
      %p301 = scmp.ne.s32.totalorder %s296, %s298
      %p302 = scmp.eq.s32.totalorder %s31, 0
      %p303 = por %p301, %p302
      %p304 = scmp.ne.s32.totalorder %s296, %s298
      %p305 = scmp.eq.s32.totalorder %s36, 1
      %p306 = por %p304, %p305
      %p307 = scmp.ne.s32.totalorder %s298, %s299
      %p308 = scmp.eq.s32.totalorder %s36, 0
      %p309 = por %p307, %p308
      %p310 = scmp.ne.s32.totalorder %s298, %s299
      %p311 = scmp.eq.s32.totalorder %s37, 1
      %p312 = por %p310, %p311
      %p314 = scmp.ne.s32.totalorder %s299, %s313
      %p315 = scmp.eq.s32.totalorder %s37, 0
      %p316 = por %p314, %p315
      %s318 = sadd.s32 %s317, 1
      %p321 = scmp.eq.s32.totalorder %s31, 1
      %p322 = scmp.ne.s32.totalorder %s317, %s319
      %p323 = scmp.eq.s32.totalorder %s31, 0
      %p324 = por %p322, %p323
      %p325 = scmp.ne.s32.totalorder %s317, %s319
      %p326 = scmp.eq.s32.totalorder %s36, 1
      %p327 = por %p325, %p326
      %p328 = scmp.ne.s32.totalorder %s319, %s320
      %p329 = scmp.eq.s32.totalorder %s36, 0
      %p330 = por %p328, %p329
      %p331 = scmp.ne.s32.totalorder %s319, %s320
      %p332 = scmp.eq.s32.totalorder %s37, 1
      %p333 = por %p331, %p332
      %p335 = scmp.ne.s32.totalorder %s320, %s334
      %p336 = scmp.eq.s32.totalorder %s37, 0
      %p337 = por %p335, %p336
      %s339 = sadd.s32 %s338, 1
      %p342 = scmp.eq.s32.totalorder %s31, 1
      %p343 = scmp.ne.s32.totalorder %s338, %s340
      %p344 = scmp.eq.s32.totalorder %s31, 0
      %p345 = por %p343, %p344
      %p346 = scmp.ne.s32.totalorder %s338, %s340
      %p347 = scmp.eq.s32.totalorder %s36, 1
      %p348 = por %p346, %p347
      %p349 = scmp.ne.s32.totalorder %s340, %s341
      %p350 = scmp.eq.s32.totalorder %s36, 0
      %p351 = por %p349, %p350
      %p352 = scmp.ne.s32.totalorder %s340, %s341
      %p353 = scmp.eq.s32.totalorder %s37, 1
      %p354 = por %p352, %p353
      %p356 = scmp.ne.s32.totalorder %s341, %s355
      %p357 = scmp.eq.s32.totalorder %s37, 0
      %p358 = por %p356, %p357
      %s360 = sadd.s32 %s359, 1
      %p363 = scmp.eq.s32.totalorder %s31, 1
      %p364 = scmp.ne.s32.totalorder %s359, %s361
      %p365 = scmp.eq.s32.totalorder %s31, 0
      %p366 = por %p364, %p365
      %p367 = scmp.ne.s32.totalorder %s359, %s361
      %p368 = scmp.eq.s32.totalorder %s36, 1
      %p369 = por %p367, %p368
      %p370 = scmp.ne.s32.totalorder %s361, %s362
      %p371 = scmp.eq.s32.totalorder %s36, 0
      %p372 = por %p370, %p371
      %p373 = scmp.ne.s32.totalorder %s361, %s362
      %p374 = scmp.eq.s32.totalorder %s37, 1
      %p375 = por %p373, %p374
      %p377 = scmp.ne.s32.totalorder %s362, %s376
      %p378 = scmp.eq.s32.totalorder %s37, 0
      %p379 = por %p377, %p378
      %s380 = ssub.s32 %s31, %s38
      %p381 = scmp.eq.s32.totalorder %s380, 0
      %s383 = sadd.s32 %s382, 1
      %s384 = scalar_select %p381, %s382, %s383
      %p387 = pneg %p381
      %p388 = scmp.eq.s32.totalorder %s31, 1
      %p389 = por %p387, %p388
      %p390 = scmp.ne.s32.totalorder %s382, %s385
      %p391 = scmp.eq.s32.totalorder %s31, 0
      %p392 = por %p390, %p391
      %p393 = scmp.ne.s32.totalorder %s382, %s385
      %p394 = scmp.eq.s32.totalorder %s36, 1
      %p395 = por %p393, %p394
      %p396 = scmp.ne.s32.totalorder %s385, %s386
      %p397 = scmp.eq.s32.totalorder %s36, 0
      %p398 = por %p396, %p397
      %p399 = scmp.ne.s32.totalorder %s385, %s386
      %p400 = scmp.eq.s32.totalorder %s37, 1
      %p401 = por %p399, %p400
      %p403 = scmp.ne.s32.totalorder %s386, %s402
      %p404 = scmp.eq.s32.totalorder %s37, 0
      %p405 = por %p403, %p404
      %p406 = scmp.le.s32.totalorder 1, %s31
      %p407 = scmp.lt.s32.totalorder %s31, 3
      %p408 = pnand %p406, %p407
      %p409 = pneg %p408
      // Predicated region
      $region9: #{_lambda_.1} parent=5 // pred_check
        _
      $region10: #{_lambda_.1} parent=5 // pred_check_branch
        %411 = sbr.rel (%p408) target = $region12
      $region11: #{_lambda_.1} parent=5 // pred_region
        %s412 = ssub.s32 %s31, 1
        // Predicated region
        $region13: #{_lambda_.1} parent=11 // pred_check
          %p413 = pneg %p78
        $region14: #{_lambda_.1} parent=11 // pred_check_branch
          %415 = sbr.rel (%p413) target = $region16
        $region15: #{_lambda_.1} parent=11 // pred_region
          %s417 = ssub.s32 4992, 4992
          %418 = vsyncadd [#allocation10], %s417
          %s419 = sshll.u32 [#allocation9], 4
          %s420 = int_to_ptr.vmem [resolvable:$true] %s419
          %425 = dma.hbm_to_vmem [thread:$0]  %s1, 4992, %s420, [#allocation10], 128, 128, 8
        $region16: #{_lambda_.1} parent=11 // pred_fallthru
          _
        // Predicated region
        $region17: #{_lambda_.1} parent=11 // pred_check
          %p426 = pneg %p99
        $region18: #{_lambda_.1} parent=11 // pred_check_branch
          %428 = sbr.rel (%p426) target = $region20
        $region19: #{_lambda_.1} parent=11 // pred_region
          %s430 = ssub.s32 16, 16
          %431 = vsyncadd [#allocation13], %s430
          %s433 = sshll.u32 [#allocation12], 4
          %s434 = int_to_ptr.vmem [resolvable:$true] %s433
          %436 = dma.hbm_to_vmem [thread:$0]  %s2, 16, %s434, [#allocation13]
        $region20: #{_lambda_.1} parent=11 // pred_fallthru
          _
        // Predicated region
        $region21: #{_lambda_.1} parent=11 // pred_check
          %p437 = pneg %p120
        $region22: #{_lambda_.1} parent=11 // pred_check_branch
          %439 = sbr.rel (%p437) target = $region24
        $region23: #{_lambda_.1} parent=11 // pred_region
          _
        $region24: #{_lambda_.1} parent=11 // pred_fallthru
          _
        // Predicated region
        $region25: #{_lambda_.1} parent=11 // pred_check
          %p440 = pneg %p141
        $region26: #{_lambda_.1} parent=11 // pred_check_branch
          %442 = sbr.rel (%p440) target = $region28
        $region27: #{_lambda_.1} parent=11 // pred_region
          %s444 = ssub.s32 16, 16
          %445 = vsyncadd [#allocation13], %s444
          %s447 = sshll.u32 [#allocation14], 4
          %s448 = int_to_ptr.vmem [resolvable:$true] %s447
          %450 = dma.hbm_to_vmem [thread:$0]  %s4, 16, %s448, [#allocation13]
        $region28: #{_lambda_.1} parent=11 // pred_fallthru
          _
        // Predicated region
        $region29: #{_lambda_.1} parent=11 // pred_check
          %p451 = pneg %p162
        $region30: #{_lambda_.1} parent=11 // pred_check_branch
          %453 = sbr.rel (%p451) target = $region32
        $region31: #{_lambda_.1} parent=11 // pred_region
          %s455 = ssub.s32 3840, 3840
          %456 = vsyncadd [#allocation16], %s455
          %s457 = sshll.u32 [#allocation15], 4
          %s458 = int_to_ptr.vmem [resolvable:$true] %s457
          %463 = dma.hbm_to_vmem [thread:$0]  %s5, 3840, %s458, [#allocation16], 128, 128, 8
        $region32: #{_lambda_.1} parent=11 // pred_fallthru
          _
        // Predicated region
        $region33: #{_lambda_.1} parent=11 // pred_check
          %p464 = pneg %p183
        $region34: #{_lambda_.1} parent=11 // pred_check_branch
          %466 = sbr.rel (%p464) target = $region36
        $region35: #{_lambda_.1} parent=11 // pred_region
          %s468 = ssub.s32 16, 16
          %469 = vsyncadd [#allocation16], %s468
          %s471 = sshll.u32 [#allocation17], 4
          %s472 = int_to_ptr.vmem [resolvable:$true] %s471
          %474 = dma.hbm_to_vmem [thread:$0]  %s6, 16, %s472, [#allocation16]
        $region36: #{_lambda_.1} parent=11 // pred_fallthru
          _
        // Predicated region
        $region37: #{_lambda_.1} parent=11 // pred_check
          %p475 = pneg %p204
        $region38: #{_lambda_.1} parent=11 // pred_check_branch
          %477 = sbr.rel (%p475) target = $region40
        $region39: #{_lambda_.1} parent=11 // pred_region
          %s479 = ssub.s32 3840, 3840
          %480 = vsyncadd [#allocation19], %s479
          %s481 = sshll.u32 [#allocation18], 4
          %s482 = int_to_ptr.vmem [resolvable:$true] %s481
          %487 = dma.hbm_to_vmem [thread:$0]  %s7, 3840, %s482, [#allocation19], 128, 128, 8
        $region40: #{_lambda_.1} parent=11 // pred_fallthru
          _
        // Predicated region
        $region41: #{_lambda_.1} parent=11 // pred_check
          %p488 = pneg %p225
        $region42: #{_lambda_.1} parent=11 // pred_check_branch
          %490 = sbr.rel (%p488) target = $region44
        $region43: #{_lambda_.1} parent=11 // pred_region
          %s492 = ssub.s32 16, 16
          %493 = vsyncadd [#allocation19], %s492
          %s495 = sshll.u32 [#allocation20], 4
          %s496 = int_to_ptr.vmem [resolvable:$true] %s495
          %498 = dma.hbm_to_vmem [thread:$0]  %s8, 16, %s496, [#allocation19]
        $region44: #{_lambda_.1} parent=11 // pred_fallthru
          _
        // Predicated region
        $region45: #{_lambda_.1} parent=11 // pred_check
          %p499 = pneg %p246
        $region46: #{_lambda_.1} parent=11 // pred_check_branch
          %501 = sbr.rel (%p499) target = $region48
        $region47: #{_lambda_.1} parent=11 // pred_region
          %s503 = ssub.s32 4608, 4608
          %504 = vsyncadd [#allocation22], %s503
          %s505 = sshll.u32 [#allocation21], 4
          %s506 = int_to_ptr.vmem [resolvable:$true] %s505
          %511 = dma.hbm_to_vmem [thread:$0]  %s9, 4608, %s506, [#allocation22], 128, 128, 8
        $region48: #{_lambda_.1} parent=11 // pred_fallthru
          _
        // Predicated region
        $region49: #{_lambda_.1} parent=11 // pred_check
          %p512 = pneg %p267
        $region50: #{_lambda_.1} parent=11 // pred_check_branch
          %514 = sbr.rel (%p512) target = $region52
        $region51: #{_lambda_.1} parent=11 // pred_region
          %s516 = ssub.s32 16, 16
          %517 = vsyncadd [#allocation22], %s516
          %s519 = sshll.u32 [#allocation23], 4
          %s520 = int_to_ptr.vmem [resolvable:$true] %s519
          %522 = dma.hbm_to_vmem [thread:$0]  %s10, 16, %s520, [#allocation22]
        $region52: #{_lambda_.1} parent=11 // pred_fallthru
          _
        // Predicated region
        $region53: #{_lambda_.1} parent=11 // pred_check
          %p523 = pneg %p288
        $region54: #{_lambda_.1} parent=11 // pred_check_branch
          %525 = sbr.rel (%p523) target = $region56
        $region55: #{_lambda_.1} parent=11 // pred_region
          %s527 = ssub.s32 3072, 3072
          %528 = vsyncadd [#allocation25], %s527
          %s529 = sshll.u32 [#allocation24], 4
          %s530 = int_to_ptr.vmem [resolvable:$true] %s529
          %535 = dma.hbm_to_vmem [thread:$0]  %s11, 3072, %s530, [#allocation25], 128, 128, 8
        $region56: #{_lambda_.1} parent=11 // pred_fallthru
          _
        // Predicated region
        $region57: #{_lambda_.1} parent=11 // pred_check
          %p536 = pneg %p309
        $region58: #{_lambda_.1} parent=11 // pred_check_branch
          %538 = sbr.rel (%p536) target = $region60
        $region59: #{_lambda_.1} parent=11 // pred_region
          _
        $region60: #{_lambda_.1} parent=11 // pred_fallthru
          _
        // Predicated region
        $region61: #{_lambda_.1} parent=11 // pred_check
          %p539 = pneg %p330
        $region62: #{_lambda_.1} parent=11 // pred_check_branch
          %541 = sbr.rel (%p539) target = $region64
        $region63: #{_lambda_.1} parent=11 // pred_region
          _
        $region64: #{_lambda_.1} parent=11 // pred_fallthru
          _
        // Predicated region
        $region65: #{_lambda_.1} parent=11 // pred_check
          %p542 = pneg %p351
        $region66: #{_lambda_.1} parent=11 // pred_check_branch
          %544 = sbr.rel (%p542) target = $region68
        $region67: #{_lambda_.1} parent=11 // pred_region
          _
        $region68: #{_lambda_.1} parent=11 // pred_fallthru
          _
        // Predicated region
        $region69: #{_lambda_.1} parent=11 // pred_check
          %p545 = pneg %p372
        $region70: #{_lambda_.1} parent=11 // pred_check_branch
          %547 = sbr.rel (%p545) target = $region72
        $region71: #{_lambda_.1} parent=11 // pred_region
          _
        $region72: #{_lambda_.1} parent=11 // pred_fallthru
          _
      $region12: #{_lambda_.1} parent=5 // pred_fallthru
        _
      %p548 = scmp.lt.s32.totalorder %s31, 2
      // Predicated region
      $region73: #{_lambda_.1} parent=5 // pred_check
        %p549 = pneg %p548
      $region74: #{_lambda_.1} parent=5 // pred_check_branch
        %551 = sbr.rel (%p549) target = $region76
      $region75: #{_lambda_.1} parent=5 // pred_region
        // Predicated region
        $region77: #{_lambda_.1} parent=75 // pred_check
          %p552 = pneg %p51
        $region78: #{_lambda_.1} parent=75 // pred_check_branch
          %554 = sbr.rel (%p552) target = $region80
        $region79: #{_lambda_.1} parent=75 // pred_region
          %p555 = scmp.lt.s32.totalorder %s31, 1
          %s556 = scalar_select %p555, %s31, 1
          %s557 = smul.addr %s556, 4
          %s558 = smul.addr %s557, 8
          %s559 = scalar_lea.vmem %s0, %s558
        $region80: #{_lambda_.1} parent=75 // pred_fallthru
          _
      $region76: #{_lambda_.1} parent=5 // pred_fallthru
        _
      %p560 = scmp.le.s32.totalorder 1, %s31
      %p561 = scmp.lt.s32.totalorder %s31, 3
      %p562 = pnand %p560, %p561
      %p563 = pneg %p562
      // Predicated region
      $region81: #{_lambda_.1} parent=5 // pred_check
        _
      $region82: #{_lambda_.1} parent=5 // pred_check_branch
        %565 = sbr.rel (%p562) target = $region84
      $region83: #{_lambda_.1} parent=5 // pred_region
        %s566 = ssub.s32 %s31, 1
        // Predicated region
        $region85: #{_lambda_.1} parent=83 // pred_check
          %p567 = pneg %p78
        $region86: #{_lambda_.1} parent=83 // pred_check_branch
          %569 = sbr.rel (%p567) target = $region88
        $region87: #{_lambda_.1} parent=83 // pred_region
          %570 = dma.done [#allocation10], 4992
        $region88: #{_lambda_.1} parent=83 // pred_fallthru
          _
        // Predicated region
        $region89: #{_lambda_.1} parent=83 // pred_check
          %p571 = pneg %p99
        $region90: #{_lambda_.1} parent=83 // pred_check_branch
          %573 = sbr.rel (%p571) target = $region92
        $region91: #{_lambda_.1} parent=83 // pred_region
          %574 = dma.done [#allocation13], 16
        $region92: #{_lambda_.1} parent=83 // pred_fallthru
          _
        // Predicated region
        $region93: #{_lambda_.1} parent=83 // pred_check
          %p575 = pneg %p141
        $region94: #{_lambda_.1} parent=83 // pred_check_branch
          %577 = sbr.rel (%p575) target = $region96
        $region95: #{_lambda_.1} parent=83 // pred_region
          %578 = dma.done [#allocation13], 16
        $region96: #{_lambda_.1} parent=83 // pred_fallthru
          _
        // Predicated region
        $region97: #{_lambda_.1} parent=83 // pred_check
          %p579 = pneg %p162
        $region98: #{_lambda_.1} parent=83 // pred_check_branch
          %581 = sbr.rel (%p579) target = $region100
        $region99: #{_lambda_.1} parent=83 // pred_region
          %582 = dma.done [#allocation16], 3840
        $region100: #{_lambda_.1} parent=83 // pred_fallthru
          _
        // Predicated region
        $region101: #{_lambda_.1} parent=83 // pred_check
          %p583 = pneg %p183
        $region102: #{_lambda_.1} parent=83 // pred_check_branch
          %585 = sbr.rel (%p583) target = $region104
        $region103: #{_lambda_.1} parent=83 // pred_region
          %586 = dma.done [#allocation16], 16
        $region104: #{_lambda_.1} parent=83 // pred_fallthru
          _
        // Predicated region
        $region105: #{_lambda_.1} parent=83 // pred_check
          %p587 = pneg %p204
        $region106: #{_lambda_.1} parent=83 // pred_check_branch
          %589 = sbr.rel (%p587) target = $region108
        $region107: #{_lambda_.1} parent=83 // pred_region
          %590 = dma.done [#allocation19], 3840
        $region108: #{_lambda_.1} parent=83 // pred_fallthru
          _
        // Predicated region
        $region109: #{_lambda_.1} parent=83 // pred_check
          %p591 = pneg %p225
        $region110: #{_lambda_.1} parent=83 // pred_check_branch
          %593 = sbr.rel (%p591) target = $region112
        $region111: #{_lambda_.1} parent=83 // pred_region
          %594 = dma.done [#allocation19], 16
        $region112: #{_lambda_.1} parent=83 // pred_fallthru
          _
        // Predicated region
        $region113: #{_lambda_.1} parent=83 // pred_check
          %p595 = pneg %p246
        $region114: #{_lambda_.1} parent=83 // pred_check_branch
          %597 = sbr.rel (%p595) target = $region116
        $region115: #{_lambda_.1} parent=83 // pred_region
          %598 = dma.done [#allocation22], 4608
        $region116: #{_lambda_.1} parent=83 // pred_fallthru
          _
        // Predicated region
        $region117: #{_lambda_.1} parent=83 // pred_check
          %p599 = pneg %p267
        $region118: #{_lambda_.1} parent=83 // pred_check_branch
          %601 = sbr.rel (%p599) target = $region120
        $region119: #{_lambda_.1} parent=83 // pred_region
          %602 = dma.done [#allocation22], 16
        $region120: #{_lambda_.1} parent=83 // pred_fallthru
          _
        // Predicated region
        $region121: #{_lambda_.1} parent=83 // pred_check
          %p603 = pneg %p288
        $region122: #{_lambda_.1} parent=83 // pred_check_branch
          %605 = sbr.rel (%p603) target = $region124
        $region123: #{_lambda_.1} parent=83 // pred_region
          %606 = dma.done [#allocation25], 3072
        $region124: #{_lambda_.1} parent=83 // pred_fallthru
          _
        %p607 = scmp.lt.s32.totalorder %s36, 1
        %s608 = scalar_select %p607, %s36, 1
        %s609 = smul.addr %s608, 4
        %s610 = smul.addr %s609, 8
        %s611 = scalar_lea.vmem %s0, %s610
        %p612 = pneg %p57
        %p613 = pneg %p54
        %p614 = pneg %p78
        %p615 = pneg %p75
        %p616 = pneg %p99
        %p617 = pneg %p96
        %p618 = pneg %p120
        %p619 = pneg %p117
        %p620 = pneg %p141
        %p621 = pneg %p138
        %p622 = pneg %p162
        %p623 = pneg %p159
        %p624 = pneg %p183
        %p625 = pneg %p180
        %p626 = pneg %p204
        %p627 = pneg %p201
        %p628 = pneg %p225
        %p629 = pneg %p222
        %p630 = pneg %p246
        %p631 = pneg %p243
        %p632 = pneg %p267
        %p633 = pneg %p264
        %p634 = pneg %p288
        %p635 = pneg %p285
        %p636 = pneg %p309
        %p637 = pneg %p306
        %p638 = pneg %p330
        %p639 = pneg %p327
        %p640 = pneg %p351
        %p641 = pneg %p348
        %p642 = pneg %p372
        %p643 = pneg %p369
        %p644 = pneg %p398
        %p645 = pneg %p395
        %s646 = sand.u32 %s385, 1
        %s647 = scalar_lea.sflag [#allocation11], %s646
        %s648 = sand.u32 %s385, 1
        %s649 = scalar_lea.vmem [#allocation26], %s648
        %p650 = scmp.lt.s32.totalorder %s36, 1
        %s651 = scalar_select %p650, %s36, 1
        %s652 = smul.addr %s651, 4
        %s653 = smul.addr %s652, 8
        %s654 = scalar_lea.vmem %s0, %s653
        %vm655 = vcmask 834560
        %656 = vst.msk [vmem:[#allocation2] sm:$0xff] %vm655, 0.0
        %657 = vst.msk [vmem:[#allocation2 + $0x8] sm:$0xff] %vm655, 0.0
        %658 = vst.msk [vmem:[#allocation2 + $0x10] sm:$0xff] %vm655, 0.0
        %659 = vst.msk [vmem:[#allocation2 + $0x18] sm:$0xff] %vm655, 0.0
        %vm660 = vcmask 828416
        %661 = vst.msk [vmem:[#allocation2 + $0x20] sm:$0x3] %vm660, 0.0
        %v662 = vld [vmem:[%s654] sm:$0xff]
        %v663 = vld [vmem:[%s654 + $0x8] sm:$0xff]
        %v664 = vld [vmem:[%s654 + $0x10] sm:$0xff]
        %v665 = vld [vmem:[%s654 + $0x18] sm:$0xff]
        %670 = vrot.lane.b32.xlu0 %v662, 3
        %v671 = vpop.permute.xlu0 %670
        %672 = vrot.lane.b32.xlu0 %v663, 3
        %v673 = vpop.permute.xlu0 %672
        %674 = vrot.lane.b32.xlu0 %v664, 3
        %v675 = vpop.permute.xlu0 %674
        %676 = vrot.lane.b32.xlu0 %v665, 3
        %v677 = vpop.permute.xlu0 %676
        %vm682 = vcmask 810008
        %683 = vst.msk [vmem:[#allocation2 + $0x1] sm:$0xff] %vm682, %v671
        %684 = vst.msk [vmem:[#allocation2 + $0x9] sm:$0xff] %vm682, %v673
        %685 = vst.msk [vmem:[#allocation2 + $0x11] sm:$0xff] %vm682, %v675
        %686 = vst.msk [vmem:[#allocation2 + $0x19] sm:$0xff] %vm682, %v677
        %v687 = vld [vmem:[#allocation2] sm:$0xff]
        %v688 = vld [vmem:[#allocation2 + $0x8] sm:$0xff]
        %v689 = vld [vmem:[#allocation2 + $0x10] sm:$0xff]
        %v690 = vld [vmem:[#allocation2 + $0x18] sm:$0xff]
        %v691 = vld [vmem:[#allocation2 + $0x20] sm:$0x3]
        %v692 = vlaneseq
        %v693 = vand.u32 %v692, 127
        %v694 = vlaneseq
        %v695 = vshrl.u32 %v694, 7
        %v696 = vadd.s32 %v695, 8
        %v697 = vmul.u32 %v695, 2
        %v698 = vmul.u32 %v696, 2
        %vm699 = vcmp.eq.s32.totalorder %v693, %v697
        %vm700 = vcmp.eq.s32.totalorder %v693, %v698
        %v701 = vsel %vm699, 1, 0
        %v702 = vsel %vm700, 1, 0
        %v703 = vcvt.s32.f32 %v701
        %v704 = vcvt.s32.f32 %v702
        %vm705 = vcmask 277504
        %v707 = vsel %vm705, %v703, 0
        %v710 = vsel %vm705, %v704, 0
        %vm712 = vcmask 1041408
        %v714 = vsel %vm712, %v691, 0
        %716 = vmatprep.subr.mxu0 0.0
        %717 = vmatpush1.msra.mxu0 0.0
        %718 = vmatprep.subr.mxu0 0.0
        %719 = vmatpush1.msra.mxu0 0.0
        %720 = vmatprep.subr.mxu0 0.0
        %721 = vmatpush1.msra.mxu0 0.0
        %722 = vmatprep.subr.mxu0 0.0
        %723 = vmatpush1.msra.mxu0 0.0
        %724 = vmatprep.subr.mxu0 0.0
        %725 = vmatpush1.msra.mxu0 0.0
        %726 = vmatprep.subr.mxu0 0.0
        %727 = vmatpush1.msra.mxu0 0.0
        %728 = vmatprep.subr.mxu0 0.0
        %729 = vmatpush1.msra.mxu0 0.0
        %730 = vmatprep.subr.mxu0 0.0
        %731 = vmatpush1.msra.mxu0 0.0
        %732 = vmatprep.subr.mxu0 0.0
        %733 = vmatpush1.msra.mxu0 0.0
        %734 = vmatprep.subr.mxu0 0.0
        %735 = vmatpush1.msra.mxu0 0.0
        %736 = vmatprep.subr.mxu0 0.0
        %737 = vmatpush1.msra.mxu0 0.0
        %738 = vmatprep.subr.mxu0 0.0
        %739 = vmatpush1.msra.mxu0 %v714
        %740 = vmatprep.subr.mxu0 0.0
        %741 = vmatpush1.msra.mxu0 %v690
        %742 = vmatprep.subr.mxu0 0.0
        %743 = vmatpush1.msra.mxu0 %v689
        %744 = vmatprep.subr.mxu0 0.0
        %745 = vmatpush1.msra.mxu0 %v688
        %746 = vmatprep.subr.mxu0 0.0
        %747 = vmatpush1.msra.mxu0 %v687
        %748 = vmatprep.subr.mxu0 0.0
        %749 = vmatpush2.msra.mxu0 0.0
        %750 = vmatprep.subr.mxu0 0.0
        %751 = vmatpush2.msra.mxu0 0.0
        %752 = vmatprep.subr.mxu0 0.0
        %753 = vmatpush2.msra.mxu0 0.0
        %754 = vmatprep.subr.mxu0 0.0
        %755 = vmatpush2.msra.mxu0 0.0
        %756 = vmatprep.subr.mxu0 0.0
        %757 = vmatpush2.msra.mxu0 0.0
        %758 = vmatprep.subr.mxu0 0.0
        %759 = vmatpush2.msra.mxu0 0.0
        %760 = vmatprep.subr.mxu0 0.0
        %761 = vmatpush2.msra.mxu0 0.0
        %762 = vmatprep.subr.mxu0 0.0
        %763 = vmatpush2.msra.mxu0 0.0
        %764 = vmatprep.subr.mxu0 0.0
        %765 = vmatpush2.msra.mxu0 0.0
        %766 = vmatprep.subr.mxu0 0.0
        %767 = vmatpush2.msra.mxu0 0.0
        %768 = vmatprep.subr.mxu0 0.0
        %769 = vmatpush2.msra.mxu0 0.0
        %770 = vmatprep.subr.mxu0 0.0
        %771 = vmatpush2.msra.mxu0 0.0
        %772 = vmatprep.subr.mxu0 0.0
        %773 = vmatpush2.msra.mxu0 0.0
        %774 = vmatprep.subr.mxu0 0.0
        %775 = vmatpush2.msra.mxu0 0.0
        %776 = vmatprep.subr.mxu0 0.0
        %777 = vmatpush2.msra.mxu0 0.0
        %778 = vmatprep.subr.mxu0 0.0
        %779 = vmatpush2.msra.mxu0 0.0
        %780 = vmatprep.mubr.f32.mxu0 0.0
        %781 = vmatmul.mubr.f32.gmra.mxu0 %v707
        %v782 = vpop.f32.mrf.mxu0
        %v783 = vadd.f32 0.0, %v782
        %v784 = vpop.f32.mrf.mxu0
        %785 = vmatprep.mubr.f32.mxu0 0.0
        %786 = vmatmul.mubr.f32.gmra.mxu0 %v710
        %v787 = vpop.f32.mrf.mxu0
        %v788 = vadd.f32 0.0, %v787
        %v789 = vpop.f32.mrf.mxu0
        %790 = vdwg.mxu0
        %v791 = vld [vmem:[#allocation9] sm:$0xff]
        %v792 = vld [vmem:[#allocation9 + $0x8] sm:$0xff]
        %v793 = vld [vmem:[#allocation9 + $0x10] sm:$0xff]
        %v794 = vld [vmem:[#allocation9 + $0x18] sm:$0xff]
        %v795 = vld [vmem:[#allocation9 + $0x20] sm:$0xff]
        %v796 = vld [vmem:[#allocation9 + $0x28] sm:$0xff]
        %v797 = vld [vmem:[#allocation9 + $0x30] sm:$0xff]
        %v798 = vld [vmem:[#allocation9 + $0x38] sm:$0xff]
        %v799 = vld [vmem:[#allocation9 + $0x40] sm:$0xff]
        %v800 = vld [vmem:[#allocation9 + $0x48] sm:$0xff]
        %v801 = vld [vmem:[#allocation9 + $0x50] sm:$0xff]
        %v802 = vld [vmem:[#allocation9 + $0x58] sm:$0xff]
        %v803 = vld [vmem:[#allocation9 + $0x60] sm:$0x3f]
        %v804 = vadd.s32 %v697, 1
        %v805 = vadd.s32 %v698, 1
        %vm806 = vcmp.eq.s32.totalorder %v693, %v804
        %vm807 = vcmp.eq.s32.totalorder %v693, %v805
        %v808 = vsel %vm806, 1, 0
        %v809 = vsel %vm807, 1, 0
        %v810 = vcvt.s32.f32 %v808
        %v811 = vcvt.s32.f32 %v809
        %v813 = vsel %vm705, %v810, 0
        %v816 = vsel %vm705, %v811, 0
        %818 = vmatprep.subr.mxu0 0.0
        %819 = vmatpush1.msra.mxu0 0.0
        %820 = vmatprep.subr.mxu0 0.0
        %821 = vmatpush1.msra.mxu0 0.0
        %822 = vmatprep.subr.mxu0 0.0
        %823 = vmatpush1.msra.mxu0 0.0
        %824 = vmatprep.subr.mxu0 0.0
        %825 = vmatpush1.msra.mxu0 0.0
        %826 = vmatprep.subr.mxu0 0.0
        %827 = vmatpush1.msra.mxu0 0.0
        %828 = vmatprep.subr.mxu0 0.0
        %829 = vmatpush1.msra.mxu0 0.0
        %830 = vmatprep.subr.mxu0 0.0
        %831 = vmatpush1.msra.mxu0 0.0
        %832 = vmatprep.subr.mxu0 0.0
        %833 = vmatpush1.msra.mxu0 0.0
        %834 = vmatprep.subr.mxu0 0.0
        %835 = vmatpush1.msra.mxu0 0.0
        %836 = vmatprep.subr.mxu0 0.0
        %837 = vmatpush1.msra.mxu0 0.0
        %838 = vmatprep.subr.mxu0 0.0
        %839 = vmatpush1.msra.mxu0 0.0
        %840 = vmatprep.subr.mxu0 0.0
        %841 = vmatpush1.msra.mxu0 %v714
        %842 = vmatprep.subr.mxu0 0.0
        %843 = vmatpush1.msra.mxu0 %v690
        %844 = vmatprep.subr.mxu0 0.0
        %845 = vmatpush1.msra.mxu0 %v689
        %846 = vmatprep.subr.mxu0 0.0
        %847 = vmatpush1.msra.mxu0 %v688
        %848 = vmatprep.subr.mxu0 0.0
        %849 = vmatpush1.msra.mxu0 %v687
        %850 = vmatprep.subr.mxu0 0.0
        %851 = vmatpush2.msra.mxu0 0.0
        %852 = vmatprep.subr.mxu0 0.0
        %853 = vmatpush2.msra.mxu0 0.0
        %854 = vmatprep.subr.mxu0 0.0
        %855 = vmatpush2.msra.mxu0 0.0
        %856 = vmatprep.subr.mxu0 0.0
        %857 = vmatpush2.msra.mxu0 0.0
        %858 = vmatprep.subr.mxu0 0.0
        %859 = vmatpush2.msra.mxu0 0.0
        %860 = vmatprep.subr.mxu0 0.0
        %861 = vmatpush2.msra.mxu0 0.0
        %862 = vmatprep.subr.mxu0 0.0
        %863 = vmatpush2.msra.mxu0 0.0
        %864 = vmatprep.subr.mxu0 0.0
        %865 = vmatpush2.msra.mxu0 0.0
        %866 = vmatprep.subr.mxu0 0.0
        %867 = vmatpush2.msra.mxu0 0.0
        %868 = vmatprep.subr.mxu0 0.0
        %869 = vmatpush2.msra.mxu0 0.0
        %870 = vmatprep.subr.mxu0 0.0
        %871 = vmatpush2.msra.mxu0 0.0
        %872 = vmatprep.subr.mxu0 0.0
        %873 = vmatpush2.msra.mxu0 0.0
        %874 = vmatprep.subr.mxu0 0.0
        %875 = vmatpush2.msra.mxu0 0.0
        %876 = vmatprep.subr.mxu0 0.0
        %877 = vmatpush2.msra.mxu0 0.0
        %878 = vmatprep.subr.mxu0 0.0
        %879 = vmatpush2.msra.mxu0 0.0
        %880 = vmatprep.subr.mxu0 0.0
        %881 = vmatpush2.msra.mxu0 0.0
        %882 = vmatprep.mubr.f32.mxu0 0.0
        %883 = vmatmul.mubr.f32.gmra.mxu0 %v813
        %v884 = vpop.f32.mrf.mxu0
        %v885 = vadd.f32 0.0, %v884
        %v886 = vpop.f32.mrf.mxu0
        %887 = vmatprep.mubr.f32.mxu0 0.0
        %888 = vmatmul.mubr.f32.gmra.mxu0 %v816
        %v889 = vpop.f32.mrf.mxu0
        %v890 = vadd.f32 0.0, %v889
        %v891 = vpop.f32.mrf.mxu0
        %892 = vdwg.mxu0
        %s893 = scalar_lea.vmem [#allocation9], 104
        %v894 = vld [vmem:[%s893] sm:$0xff]
        %v895 = vld [vmem:[%s893 + $0x8] sm:$0xff]
        %v896 = vld [vmem:[%s893 + $0x10] sm:$0xff]
        %v897 = vld [vmem:[%s893 + $0x18] sm:$0xff]
        %v898 = vld [vmem:[%s893 + $0x20] sm:$0xff]
        %v899 = vld [vmem:[%s893 + $0x28] sm:$0xff]
        %v900 = vld [vmem:[%s893 + $0x30] sm:$0xff]
        %v901 = vld [vmem:[%s893 + $0x38] sm:$0xff]
        %v902 = vld [vmem:[%s893 + $0x40] sm:$0xff]
        %v903 = vld [vmem:[%s893 + $0x48] sm:$0xff]
        %v904 = vld [vmem:[%s893 + $0x50] sm:$0xff]
        %v905 = vld [vmem:[%s893 + $0x58] sm:$0xff]
        %v906 = vld [vmem:[%s893 + $0x60] sm:$0x3f]
        %v908 = vsel %vm655, %v885, 0
        %v911 = vsel %vm655, %v890, 0
        %vm913 = vcmask 1045504
        %v915 = vsel %vm913, %v906, 0
        %917 = vmatprep.subr.mxu0 0.0
        %918 = vmatpush1.msra.mxu0 0.0
        %919 = vmatprep.subr.mxu0 0.0
        %920 = vmatpush1.msra.mxu0 0.0
        %921 = vmatprep.subr.mxu0 0.0
        %922 = vmatpush1.msra.mxu0 0.0
        %923 = vmatprep.subr.mxu0 0.0
        %924 = vmatpush1.msra.mxu0 %v915
        %925 = vmatprep.subr.mxu0 0.0
        %926 = vmatpush1.msra.mxu0 %v905
        %927 = vmatprep.subr.mxu0 0.0
        %928 = vmatpush1.msra.mxu0 %v904
        %929 = vmatprep.subr.mxu0 0.0
        %930 = vmatpush1.msra.mxu0 %v903
        %931 = vmatprep.subr.mxu0 0.0
        %932 = vmatpush1.msra.mxu0 %v902
        %933 = vmatprep.subr.mxu0 0.0
        %934 = vmatpush1.msra.mxu0 %v901
        %935 = vmatprep.subr.mxu0 0.0
        %936 = vmatpush1.msra.mxu0 %v900
        %937 = vmatprep.subr.mxu0 0.0
        %938 = vmatpush1.msra.mxu0 %v899
        %939 = vmatprep.subr.mxu0 0.0
        %940 = vmatpush1.msra.mxu0 %v898
        %941 = vmatprep.subr.mxu0 0.0
        %942 = vmatpush1.msra.mxu0 %v897
        %943 = vmatprep.subr.mxu0 0.0
        %944 = vmatpush1.msra.mxu0 %v896
        %945 = vmatprep.subr.mxu0 0.0
        %946 = vmatpush1.msra.mxu0 %v895
        %947 = vmatprep.subr.mxu0 0.0
        %948 = vmatpush1.msra.mxu0 %v894
        %949 = vmatprep.subr.mxu0 0.0
        %950 = vmatpush2.msra.mxu0 0.0
        %951 = vmatprep.subr.mxu0 0.0
        %952 = vmatpush2.msra.mxu0 0.0
        %953 = vmatprep.subr.mxu0 0.0
        %954 = vmatpush2.msra.mxu0 0.0
        %955 = vmatprep.subr.mxu0 0.0
        %956 = vmatpush2.msra.mxu0 0.0
        %957 = vmatprep.subr.mxu0 0.0
        %958 = vmatpush2.msra.mxu0 0.0
        %959 = vmatprep.subr.mxu0 0.0
        %960 = vmatpush2.msra.mxu0 0.0
        %961 = vmatprep.subr.mxu0 0.0
        %962 = vmatpush2.msra.mxu0 0.0
        %963 = vmatprep.subr.mxu0 0.0
        %964 = vmatpush2.msra.mxu0 0.0
        %965 = vmatprep.subr.mxu0 0.0
        %966 = vmatpush2.msra.mxu0 0.0
        %967 = vmatprep.subr.mxu0 0.0
        %968 = vmatpush2.msra.mxu0 0.0
        %969 = vmatprep.subr.mxu0 0.0
        %970 = vmatpush2.msra.mxu0 0.0
        %971 = vmatprep.subr.mxu0 0.0
        %972 = vmatpush2.msra.mxu0 0.0
        %973 = vmatprep.subr.mxu0 0.0
        %974 = vmatpush2.msra.mxu0 0.0
        %975 = vmatprep.subr.mxu0 0.0
        %976 = vmatpush2.msra.mxu0 0.0
        %977 = vmatprep.subr.mxu0 0.0
        %978 = vmatpush2.msra.mxu0 0.0
        %979 = vmatprep.subr.mxu0 0.0
        %980 = vmatpush2.msra.mxu0 0.0
        %981 = vmatprep.mubr.f32.mxu0 0.0
        %982 = vmatmul.mubr.f32.gmra.mxu0 %v908
        %v983 = vpop.f32.mrf.mxu0
        %v984 = vadd.f32 0.0, %v983
        %v985 = vpop.f32.mrf.mxu0
        %986 = vmatprep.mubr.f32.mxu0 0.0
        %987 = vmatmul.mubr.f32.gmra.mxu0 %v911
        %v988 = vpop.f32.mrf.mxu0
        %v989 = vadd.f32 0.0, %v988
        %v990 = vpop.f32.mrf.mxu0
        %991 = vdwg.mxu0
        %v993 = vsel %vm655, %v783, 0
        %v996 = vsel %vm655, %v788, 0
        %v999 = vsel %vm913, %v803, 0
        %1001 = vmatprep.subr.mxu0 0.0
        %1002 = vmatpush1.msra.mxu0 0.0
        %1003 = vmatprep.subr.mxu0 0.0
        %1004 = vmatpush1.msra.mxu0 0.0
        %1005 = vmatprep.subr.mxu0 0.0
        %1006 = vmatpush1.msra.mxu0 0.0
        %1007 = vmatprep.subr.mxu0 0.0
        %1008 = vmatpush1.msra.mxu0 %v999
        %1009 = vmatprep.subr.mxu0 0.0
        %1010 = vmatpush1.msra.mxu0 %v802
        %1011 = vmatprep.subr.mxu0 0.0
        %1012 = vmatpush1.msra.mxu0 %v801
        %1013 = vmatprep.subr.mxu0 0.0
        %1014 = vmatpush1.msra.mxu0 %v800
        %1015 = vmatprep.subr.mxu0 0.0
        %1016 = vmatpush1.msra.mxu0 %v799
        %1017 = vmatprep.subr.mxu0 0.0
        %1018 = vmatpush1.msra.mxu0 %v798
        %1019 = vmatprep.subr.mxu0 0.0
        %1020 = vmatpush1.msra.mxu0 %v797
        %1021 = vmatprep.subr.mxu0 0.0
        %1022 = vmatpush1.msra.mxu0 %v796
        %1023 = vmatprep.subr.mxu0 0.0
        %1024 = vmatpush1.msra.mxu0 %v795
        %1025 = vmatprep.subr.mxu0 0.0
        %1026 = vmatpush1.msra.mxu0 %v794
        %1027 = vmatprep.subr.mxu0 0.0
        %1028 = vmatpush1.msra.mxu0 %v793
        %1029 = vmatprep.subr.mxu0 0.0
        %1030 = vmatpush1.msra.mxu0 %v792
        %1031 = vmatprep.subr.mxu0 0.0
        %1032 = vmatpush1.msra.mxu0 %v791
        %1033 = vmatprep.subr.mxu0 0.0
        %1034 = vmatpush2.msra.mxu0 0.0
        %1035 = vmatprep.subr.mxu0 0.0
        %1036 = vmatpush2.msra.mxu0 0.0
        %1037 = vmatprep.subr.mxu0 0.0
        %1038 = vmatpush2.msra.mxu0 0.0
        %1039 = vmatprep.subr.mxu0 0.0
        %1040 = vmatpush2.msra.mxu0 0.0
        %1041 = vmatprep.subr.mxu0 0.0
        %1042 = vmatpush2.msra.mxu0 0.0
        %1043 = vmatprep.subr.mxu0 0.0
        %1044 = vmatpush2.msra.mxu0 0.0
        %1045 = vmatprep.subr.mxu0 0.0
        %1046 = vmatpush2.msra.mxu0 0.0
        %1047 = vmatprep.subr.mxu0 0.0
        %1048 = vmatpush2.msra.mxu0 0.0
        %1049 = vmatprep.subr.mxu0 0.0
        %1050 = vmatpush2.msra.mxu0 0.0
        %1051 = vmatprep.subr.mxu0 0.0
        %1052 = vmatpush2.msra.mxu0 0.0
        %1053 = vmatprep.subr.mxu0 0.0
        %1054 = vmatpush2.msra.mxu0 0.0
        %1055 = vmatprep.subr.mxu0 0.0
        %1056 = vmatpush2.msra.mxu0 0.0
        %1057 = vmatprep.subr.mxu0 0.0
        %1058 = vmatpush2.msra.mxu0 0.0
        %1059 = vmatprep.subr.mxu0 0.0
        %1060 = vmatpush2.msra.mxu0 0.0
        %1061 = vmatprep.subr.mxu0 0.0
        %1062 = vmatpush2.msra.mxu0 0.0
        %1063 = vmatprep.subr.mxu0 0.0
        %1064 = vmatpush2.msra.mxu0 0.0
        %1065 = vmatprep.mubr.f32.mxu0 0.0
        %1066 = vmatmul.mubr.f32.gmra.mxu0 %v993
        %v1067 = vpop.f32.mrf.mxu0
        %v1068 = vadd.f32 %v984, %v1067
        %v1069 = vpop.f32.mrf.mxu0
        %1070 = vmatprep.mubr.f32.mxu0 0.0
        %1071 = vmatmul.mubr.f32.gmra.mxu0 %v996
        %v1072 = vpop.f32.mrf.mxu0
        %v1073 = vadd.f32 %v989, %v1072
        %v1074 = vpop.f32.mrf.mxu0
        %1075 = vdwg.mxu0
        %v1076 = vadd.s32 %v697, 2
        %v1077 = vadd.s32 %v698, 2
        %vm1078 = vcmp.eq.s32.totalorder %v693, %v1076
        %vm1079 = vcmp.eq.s32.totalorder %v693, %v1077
        %v1080 = vsel %vm1078, 1, 0
        %v1081 = vsel %vm1079, 1, 0
        %v1082 = vcvt.s32.f32 %v1080
        %v1083 = vcvt.s32.f32 %v1081
        %v1085 = vsel %vm705, %v1082, 0
        %v1088 = vsel %vm705, %v1083, 0
        %1090 = vmatprep.subr.mxu0 0.0
        %1091 = vmatpush1.msra.mxu0 0.0
        %1092 = vmatprep.subr.mxu0 0.0
        %1093 = vmatpush1.msra.mxu0 0.0
        %1094 = vmatprep.subr.mxu0 0.0
        %1095 = vmatpush1.msra.mxu0 0.0
        %1096 = vmatprep.subr.mxu0 0.0
        %1097 = vmatpush1.msra.mxu0 0.0
        %1098 = vmatprep.subr.mxu0 0.0
        %1099 = vmatpush1.msra.mxu0 0.0
        %1100 = vmatprep.subr.mxu0 0.0
        %1101 = vmatpush1.msra.mxu0 0.0
        %1102 = vmatprep.subr.mxu0 0.0
        %1103 = vmatpush1.msra.mxu0 0.0
        %1104 = vmatprep.subr.mxu0 0.0
        %1105 = vmatpush1.msra.mxu0 0.0
        %1106 = vmatprep.subr.mxu0 0.0
        %1107 = vmatpush1.msra.mxu0 0.0
        %1108 = vmatprep.subr.mxu0 0.0
        %1109 = vmatpush1.msra.mxu0 0.0
        %1110 = vmatprep.subr.mxu0 0.0
        %1111 = vmatpush1.msra.mxu0 0.0
        %1112 = vmatprep.subr.mxu0 0.0
        %1113 = vmatpush1.msra.mxu0 %v714
        %1114 = vmatprep.subr.mxu0 0.0
        %1115 = vmatpush1.msra.mxu0 %v690
        %1116 = vmatprep.subr.mxu0 0.0
        %1117 = vmatpush1.msra.mxu0 %v689
        %1118 = vmatprep.subr.mxu0 0.0
        %1119 = vmatpush1.msra.mxu0 %v688
        %1120 = vmatprep.subr.mxu0 0.0
        %1121 = vmatpush1.msra.mxu0 %v687
        %1122 = vmatprep.subr.mxu0 0.0
        %1123 = vmatpush2.msra.mxu0 0.0
        %1124 = vmatprep.subr.mxu0 0.0
        %1125 = vmatpush2.msra.mxu0 0.0
        %1126 = vmatprep.subr.mxu0 0.0
        %1127 = vmatpush2.msra.mxu0 0.0
        %1128 = vmatprep.subr.mxu0 0.0
        %1129 = vmatpush2.msra.mxu0 0.0
        %1130 = vmatprep.subr.mxu0 0.0
        %1131 = vmatpush2.msra.mxu0 0.0
        %1132 = vmatprep.subr.mxu0 0.0
        %1133 = vmatpush2.msra.mxu0 0.0
        %1134 = vmatprep.subr.mxu0 0.0
        %1135 = vmatpush2.msra.mxu0 0.0
        %1136 = vmatprep.subr.mxu0 0.0
        %1137 = vmatpush2.msra.mxu0 0.0
        %1138 = vmatprep.subr.mxu0 0.0
        %1139 = vmatpush2.msra.mxu0 0.0
        %1140 = vmatprep.subr.mxu0 0.0
        %1141 = vmatpush2.msra.mxu0 0.0
        %1142 = vmatprep.subr.mxu0 0.0
        %1143 = vmatpush2.msra.mxu0 0.0
        %1144 = vmatprep.subr.mxu0 0.0
        %1145 = vmatpush2.msra.mxu0 0.0
        %1146 = vmatprep.subr.mxu0 0.0
        %1147 = vmatpush2.msra.mxu0 0.0
        %1148 = vmatprep.subr.mxu0 0.0
        %1149 = vmatpush2.msra.mxu0 0.0
        %1150 = vmatprep.subr.mxu0 0.0
        %1151 = vmatpush2.msra.mxu0 0.0
        %1152 = vmatprep.subr.mxu0 0.0
        %1153 = vmatpush2.msra.mxu0 0.0
        %1154 = vmatprep.mubr.f32.mxu0 0.0
        %1155 = vmatmul.mubr.f32.gmra.mxu0 %v1085
        %v1156 = vpop.f32.mrf.mxu0
        %v1157 = vadd.f32 0.0, %v1156
        %v1158 = vpop.f32.mrf.mxu0
        %1159 = vmatprep.mubr.f32.mxu0 0.0
        %1160 = vmatmul.mubr.f32.gmra.mxu0 %v1088
        %v1161 = vpop.f32.mrf.mxu0
        %v1162 = vadd.f32 0.0, %v1161
        %v1163 = vpop.f32.mrf.mxu0
        %1164 = vdwg.mxu0
        %s1165 = scalar_lea.vmem [#allocation9], 208
        %v1166 = vld [vmem:[%s1165] sm:$0xff]
        %v1167 = vld [vmem:[%s1165 + $0x8] sm:$0xff]
        %v1168 = vld [vmem:[%s1165 + $0x10] sm:$0xff]
        %v1169 = vld [vmem:[%s1165 + $0x18] sm:$0xff]
        %v1170 = vld [vmem:[%s1165 + $0x20] sm:$0xff]
        %v1171 = vld [vmem:[%s1165 + $0x28] sm:$0xff]
        %v1172 = vld [vmem:[%s1165 + $0x30] sm:$0xff]
        %v1173 = vld [vmem:[%s1165 + $0x38] sm:$0xff]
        %v1174 = vld [vmem:[%s1165 + $0x40] sm:$0xff]
        %v1175 = vld [vmem:[%s1165 + $0x48] sm:$0xff]
        %v1176 = vld [vmem:[%s1165 + $0x50] sm:$0xff]
        %v1177 = vld [vmem:[%s1165 + $0x58] sm:$0xff]
        %v1178 = vld [vmem:[%s1165 + $0x60] sm:$0x3f]
        %v1180 = vsel %vm655, %v1157, 0
        %v1183 = vsel %vm655, %v1162, 0
        %v1186 = vsel %vm913, %v1178, 0
        %1188 = vmatprep.subr.mxu0 0.0
        %1189 = vmatpush1.msra.mxu0 0.0
        %1190 = vmatprep.subr.mxu0 0.0
        %1191 = vmatpush1.msra.mxu0 0.0
        %1192 = vmatprep.subr.mxu0 0.0
        %1193 = vmatpush1.msra.mxu0 0.0
        %1194 = vmatprep.subr.mxu0 0.0
        %1195 = vmatpush1.msra.mxu0 %v1186
        %1196 = vmatprep.subr.mxu0 0.0
        %1197 = vmatpush1.msra.mxu0 %v1177
        %1198 = vmatprep.subr.mxu0 0.0
        %1199 = vmatpush1.msra.mxu0 %v1176
        %1200 = vmatprep.subr.mxu0 0.0
        %1201 = vmatpush1.msra.mxu0 %v1175
        %1202 = vmatprep.subr.mxu0 0.0
        %1203 = vmatpush1.msra.mxu0 %v1174
        %1204 = vmatprep.subr.mxu0 0.0
        %1205 = vmatpush1.msra.mxu0 %v1173
        %1206 = vmatprep.subr.mxu0 0.0
        %1207 = vmatpush1.msra.mxu0 %v1172
        %1208 = vmatprep.subr.mxu0 0.0
        %1209 = vmatpush1.msra.mxu0 %v1171
        %1210 = vmatprep.subr.mxu0 0.0
        %1211 = vmatpush1.msra.mxu0 %v1170
        %1212 = vmatprep.subr.mxu0 0.0
        %1213 = vmatpush1.msra.mxu0 %v1169
        %1214 = vmatprep.subr.mxu0 0.0
        %1215 = vmatpush1.msra.mxu0 %v1168
        %1216 = vmatprep.subr.mxu0 0.0
        %1217 = vmatpush1.msra.mxu0 %v1167
        %1218 = vmatprep.subr.mxu0 0.0
        %1219 = vmatpush1.msra.mxu0 %v1166
        %1220 = vmatprep.subr.mxu0 0.0
        %1221 = vmatpush2.msra.mxu0 0.0
        %1222 = vmatprep.subr.mxu0 0.0
        %1223 = vmatpush2.msra.mxu0 0.0
        %1224 = vmatprep.subr.mxu0 0.0
        %1225 = vmatpush2.msra.mxu0 0.0
        %1226 = vmatprep.subr.mxu0 0.0
        %1227 = vmatpush2.msra.mxu0 0.0
        %1228 = vmatprep.subr.mxu0 0.0
        %1229 = vmatpush2.msra.mxu0 0.0
        %1230 = vmatprep.subr.mxu0 0.0
        %1231 = vmatpush2.msra.mxu0 0.0
        %1232 = vmatprep.subr.mxu0 0.0
        %1233 = vmatpush2.msra.mxu0 0.0
        %1234 = vmatprep.subr.mxu0 0.0
        %1235 = vmatpush2.msra.mxu0 0.0
        %1236 = vmatprep.subr.mxu0 0.0
        %1237 = vmatpush2.msra.mxu0 0.0
        %1238 = vmatprep.subr.mxu0 0.0
        %1239 = vmatpush2.msra.mxu0 0.0
        %1240 = vmatprep.subr.mxu0 0.0
        %1241 = vmatpush2.msra.mxu0 0.0
        %1242 = vmatprep.subr.mxu0 0.0
        %1243 = vmatpush2.msra.mxu0 0.0
        %1244 = vmatprep.subr.mxu0 0.0
        %1245 = vmatpush2.msra.mxu0 0.0
        %1246 = vmatprep.subr.mxu0 0.0
        %1247 = vmatpush2.msra.mxu0 0.0
        %1248 = vmatprep.subr.mxu0 0.0
        %1249 = vmatpush2.msra.mxu0 0.0
        %1250 = vmatprep.subr.mxu0 0.0
        %1251 = vmatpush2.msra.mxu0 0.0
        %1252 = vmatprep.mubr.f32.mxu0 0.0
        %1253 = vmatmul.mubr.f32.gmra.mxu0 %v1180
        %v1254 = vpop.f32.mrf.mxu0
        %v1255 = vadd.f32 0.0, %v1254
        %v1256 = vpop.f32.mrf.mxu0
        %1257 = vmatprep.mubr.f32.mxu0 0.0
        %1258 = vmatmul.mubr.f32.gmra.mxu0 %v1183
        %v1259 = vpop.f32.mrf.mxu0
        %v1260 = vadd.f32 0.0, %v1259
        %v1261 = vpop.f32.mrf.mxu0
        %1262 = vdwg.mxu0
        %v1263 = vadd.f32 %v1068, %v1255
        %v1264 = vadd.f32 %v1073, %v1260
        %v1265 = vld [vmem:[#allocation12] sm:$0x1]
        %v1267 = vlaneseq
        %v1268 = vshrl.u32 %v1267, 7
        %v1269 = vsub.s32 0, %v1268
        %v1270 = vrot.slane %v1265, %v1269
        %v1272 = vadd.f32 %v1263, %v1270
        %v1273 = vadd.f32 %v1264, %v1270
        %v1274 = vmul.f32 %v1272, 0.5
        %v1275 = vmul.f32 %v1273, 0.5
        %v1276 = vmul.f32 %v1272, 0.70710677
        %v1277 = vmul.f32 %v1273, 0.70710677
        %v1278 = verf.f32.pop %v1276
        %v1279 = verf.f32.pop %v1277
        %v1280 = vadd.f32 %v1278, 1.0
        %v1281 = vadd.f32 %v1279, 1.0
        %v1282 = vmul.f32 %v1274, %v1280
        %v1283 = vmul.f32 %v1275, %v1281
        %1284 = vst [vmem:[#allocation3] sm:$0xff] 0.0
        %vm1285 = vcmask 130048
        %1286 = vst.msk [vmem:[#allocation3 + $0x8] sm:$0xff] %vm1285, 0.0
        %1287 = vst [vmem:[#allocation3 + $0x10] sm:$0xff] 0.0
        %1288 = vst.msk [vmem:[#allocation3 + $0x18] sm:$0xff] %vm1285, 0.0
        %1289 = vst [vmem:[#allocation3 + $0x20] sm:$0x3] 0.0
        %vm1290 = vcmask 123904
        %1291 = vst.msk [vmem:[#allocation3 + $0x28] sm:$0x3] %vm1290, 0.0
        %vm1294 = vcmask 1040384
        %v1295 = vrot.slane %v1282, 7
        %v1296 = vrot.slane %v1283, 7
        %v1297 = vsel %vm1294, %v1295, %v1296
        %1298 = vrot.lane.b32.xlu0 %v1295, 8
        %v1299 = vpop.permute.xlu0 %1298
        %1300 = vrot.lane.b32.xlu0 %v1297, 8
        %v1301 = vpop.permute.xlu0 %1300
        %1302 = vrot.lane.b32.xlu0 %v1296, 8
        %v1303 = vpop.permute.xlu0 %1302
        %vm1307 = vcmask 1047617
        %1308 = vst.msk [vmem:[#allocation3] sm:$0xfe] %vm1307, %v1299
        %vm1309 = vcmask 64513
        %1310 = vst.msk [vmem:[#allocation3 + $0x8] sm:$0xfe] %vm1309, %v1299
        %vm1311 = vcmask 1047616
        %1312 = vst.msk [vmem:[#allocation3 + $0x10] sm:$0xff] %vm1311, %v1301
        %vm1313 = vcmask 64512
        %1314 = vst.msk [vmem:[#allocation3 + $0x18] sm:$0xff] %vm1313, %v1301
        %vm1315 = vcmask 1040448
        %1316 = vst.msk [vmem:[#allocation3 + $0x20] sm:$0x1] %vm1315, %v1303
        %vm1317 = vcmask 57344
        %1318 = vst.msk [vmem:[#allocation3 + $0x28] sm:$0x1] %vm1317, %v1303
        %v1319 = vld [vmem:[#allocation3] sm:$0xff]
        %v1320 = vld [vmem:[#allocation3 + $0x8] sm:$0xff]
        %v1321 = vld [vmem:[#allocation3 + $0x10] sm:$0xff]
        %v1322 = vld [vmem:[#allocation3 + $0x18] sm:$0xff]
        %v1323 = vld [vmem:[#allocation3 + $0x20] sm:$0x3]
        %v1324 = vld [vmem:[#allocation3 + $0x28] sm:$0x3]
        %vm1325 = vcmask 146432
        %v1326 = vsel %vm1325, %v703, 0
        %v1329 = vsel %vm712, %v1323, 0
        %v1332 = vsel %vm712, %v1324, 0
        %1334 = vmatprep.subr.mxu0 0.0
        %1335 = vmatpush1.msra.mxu0 0.0
        %1336 = vmatprep.subr.mxu0 0.0
        %1337 = vmatpush1.msra.mxu0 0.0
        %1338 = vmatprep.subr.mxu0 0.0
        %1339 = vmatpush1.msra.mxu0 0.0
        %1340 = vmatprep.subr.mxu0 0.0
        %1341 = vmatpush1.msra.mxu0 0.0
        %1342 = vmatprep.subr.mxu0 0.0
        %1343 = vmatpush1.msra.mxu0 0.0
        %1344 = vmatprep.subr.mxu0 0.0
        %1345 = vmatpush1.msra.mxu0 0.0
        %1346 = vmatprep.subr.mxu0 0.0
        %1347 = vmatpush1.msra.mxu0 0.0
        %1348 = vmatprep.subr.mxu0 0.0
        %1349 = vmatpush1.msra.mxu0 0.0
        %1350 = vmatprep.subr.mxu0 0.0
        %1351 = vmatpush1.msra.mxu0 0.0
        %1352 = vmatprep.subr.mxu0 0.0
        %1353 = vmatpush1.msra.mxu0 0.0
        %1354 = vmatprep.subr.mxu0 0.0
        %1355 = vmatpush1.msra.mxu0 0.0
        %1356 = vmatprep.subr.mxu0 0.0
        %1357 = vmatpush1.msra.mxu0 0.0
        %1358 = vmatprep.subr.mxu0 0.0
        %1359 = vmatpush1.msra.mxu0 0.0
        %1360 = vmatprep.subr.mxu0 %v1332
        %1361 = vmatpush1.msra.mxu0 %v1329
        %1362 = vmatprep.subr.mxu0 %v1322
        %1363 = vmatpush1.msra.mxu0 %v1321
        %1364 = vmatprep.subr.mxu0 %v1320
        %1365 = vmatpush1.msra.mxu0 %v1319
        %1366 = vmatprep.subr.mxu0 0.0
        %1367 = vmatpush2.msra.mxu0 0.0
        %1368 = vmatprep.subr.mxu0 0.0
        %1369 = vmatpush2.msra.mxu0 0.0
        %1370 = vmatprep.subr.mxu0 0.0
        %1371 = vmatpush2.msra.mxu0 0.0
        %1372 = vmatprep.subr.mxu0 0.0
        %1373 = vmatpush2.msra.mxu0 0.0
        %1374 = vmatprep.subr.mxu0 0.0
        %1375 = vmatpush2.msra.mxu0 0.0
        %1376 = vmatprep.subr.mxu0 0.0
        %1377 = vmatpush2.msra.mxu0 0.0
        %1378 = vmatprep.subr.mxu0 0.0
        %1379 = vmatpush2.msra.mxu0 0.0
        %1380 = vmatprep.subr.mxu0 0.0
        %1381 = vmatpush2.msra.mxu0 0.0
        %1382 = vmatprep.subr.mxu0 0.0
        %1383 = vmatpush2.msra.mxu0 0.0
        %1384 = vmatprep.subr.mxu0 0.0
        %1385 = vmatpush2.msra.mxu0 0.0
        %1386 = vmatprep.subr.mxu0 0.0
        %1387 = vmatpush2.msra.mxu0 0.0
        %1388 = vmatprep.subr.mxu0 0.0
        %1389 = vmatpush2.msra.mxu0 0.0
        %1390 = vmatprep.subr.mxu0 0.0
        %1391 = vmatpush2.msra.mxu0 0.0
        %1392 = vmatprep.subr.mxu0 0.0
        %1393 = vmatpush2.msra.mxu0 0.0
        %1394 = vmatprep.subr.mxu0 0.0
        %1395 = vmatpush2.msra.mxu0 0.0
        %1396 = vmatprep.subr.mxu0 0.0
        %1397 = vmatpush2.msra.mxu0 0.0
        %1398 = vmatprep.mubr.f32.mxu0 0.0
        %1399 = vmatmul.mubr.f32.gmra.mxu0 %v1326
        %v1400 = vpop.f32.mrf.mxu0
        %v1401 = vadd.f32 0.0, %v1400
        %v1402 = vpop.f32.mrf.mxu0
        %v1403 = vadd.f32 0.0, %v1402
        %1404 = vdwg.mxu0
        %v1405 = vld [vmem:[%s3] sm:$0xff]
        %v1406 = vld [vmem:[%s3 + $0x8] sm:$0xff]
        %v1407 = vld [vmem:[%s3 + $0x10] sm:$0xff]
        %v1408 = vld [vmem:[%s3 + $0x18] sm:$0xff]
        %v1409 = vld [vmem:[%s3 + $0x20] sm:$0xff]
        %v1410 = vld [vmem:[%s3 + $0x28] sm:$0xff]
        %v1411 = vld [vmem:[%s3 + $0x30] sm:$0xff]
        %v1412 = vld [vmem:[%s3 + $0x38] sm:$0xff]
        %v1413 = vld [vmem:[%s3 + $0x40] sm:$0xff]
        %v1414 = vld [vmem:[%s3 + $0x48] sm:$0xff]
        %v1415 = vld [vmem:[%s3 + $0x50] sm:$0xff]
        %v1416 = vld [vmem:[%s3 + $0x58] sm:$0xff]
        %v1417 = vld [vmem:[%s3 + $0x60] sm:$0xff]
        %v1418 = vld [vmem:[%s3 + $0x68] sm:$0xff]
        %v1419 = vld [vmem:[%s3 + $0x70] sm:$0xff]
        %v1420 = vld [vmem:[%s3 + $0x78] sm:$0xff]
        %v1421 = vld [vmem:[%s3 + $0x80] sm:$0xff]
        %v1422 = vld [vmem:[%s3 + $0x88] sm:$0xff]
        %v1423 = vsel %vm1325, %v810, 0
        %1425 = vmatprep.subr.mxu0 0.0
        %1426 = vmatpush1.msra.mxu0 0.0
        %1427 = vmatprep.subr.mxu0 0.0
        %1428 = vmatpush1.msra.mxu0 0.0
        %1429 = vmatprep.subr.mxu0 0.0
        %1430 = vmatpush1.msra.mxu0 0.0
        %1431 = vmatprep.subr.mxu0 0.0
        %1432 = vmatpush1.msra.mxu0 0.0
        %1433 = vmatprep.subr.mxu0 0.0
        %1434 = vmatpush1.msra.mxu0 0.0
        %1435 = vmatprep.subr.mxu0 0.0
        %1436 = vmatpush1.msra.mxu0 0.0
        %1437 = vmatprep.subr.mxu0 0.0
        %1438 = vmatpush1.msra.mxu0 0.0
        %1439 = vmatprep.subr.mxu0 0.0
        %1440 = vmatpush1.msra.mxu0 0.0
        %1441 = vmatprep.subr.mxu0 0.0
        %1442 = vmatpush1.msra.mxu0 0.0
        %1443 = vmatprep.subr.mxu0 0.0
        %1444 = vmatpush1.msra.mxu0 0.0
        %1445 = vmatprep.subr.mxu0 0.0
        %1446 = vmatpush1.msra.mxu0 0.0
        %1447 = vmatprep.subr.mxu0 0.0
        %1448 = vmatpush1.msra.mxu0 0.0
        %1449 = vmatprep.subr.mxu0 0.0
        %1450 = vmatpush1.msra.mxu0 0.0
        %1451 = vmatprep.subr.mxu0 %v1332
        %1452 = vmatpush1.msra.mxu0 %v1329
        %1453 = vmatprep.subr.mxu0 %v1322
        %1454 = vmatpush1.msra.mxu0 %v1321
        %1455 = vmatprep.subr.mxu0 %v1320
        %1456 = vmatpush1.msra.mxu0 %v1319
        %1457 = vmatprep.subr.mxu0 0.0
        %1458 = vmatpush2.msra.mxu0 0.0
        %1459 = vmatprep.subr.mxu0 0.0
        %1460 = vmatpush2.msra.mxu0 0.0
        %1461 = vmatprep.subr.mxu0 0.0
        %1462 = vmatpush2.msra.mxu0 0.0
        %1463 = vmatprep.subr.mxu0 0.0
        %1464 = vmatpush2.msra.mxu0 0.0
        %1465 = vmatprep.subr.mxu0 0.0
        %1466 = vmatpush2.msra.mxu0 0.0
        %1467 = vmatprep.subr.mxu0 0.0
        %1468 = vmatpush2.msra.mxu0 0.0
        %1469 = vmatprep.subr.mxu0 0.0
        %1470 = vmatpush2.msra.mxu0 0.0
        %1471 = vmatprep.subr.mxu0 0.0
        %1472 = vmatpush2.msra.mxu0 0.0
        %1473 = vmatprep.subr.mxu0 0.0
        %1474 = vmatpush2.msra.mxu0 0.0
        %1475 = vmatprep.subr.mxu0 0.0
        %1476 = vmatpush2.msra.mxu0 0.0
        %1477 = vmatprep.subr.mxu0 0.0
        %1478 = vmatpush2.msra.mxu0 0.0
        %1479 = vmatprep.subr.mxu0 0.0
        %1480 = vmatpush2.msra.mxu0 0.0
        %1481 = vmatprep.subr.mxu0 0.0
        %1482 = vmatpush2.msra.mxu0 0.0
        %1483 = vmatprep.subr.mxu0 0.0
        %1484 = vmatpush2.msra.mxu0 0.0
        %1485 = vmatprep.subr.mxu0 0.0
        %1486 = vmatpush2.msra.mxu0 0.0
        %1487 = vmatprep.subr.mxu0 0.0
        %1488 = vmatpush2.msra.mxu0 0.0
        %1489 = vmatprep.mubr.f32.mxu0 0.0
        %1490 = vmatmul.mubr.f32.gmra.mxu0 %v1423
        %v1491 = vpop.f32.mrf.mxu0
        %v1492 = vadd.f32 0.0, %v1491
        %v1493 = vpop.f32.mrf.mxu0
        %v1494 = vadd.f32 0.0, %v1493
        %1495 = vdwg.mxu0
        %s1496 = scalar_lea.vmem %s3, 144
        %v1497 = vld [vmem:[%s1496] sm:$0xff]
        %v1498 = vld [vmem:[%s1496 + $0x8] sm:$0xff]
        %v1499 = vld [vmem:[%s1496 + $0x10] sm:$0xff]
        %v1500 = vld [vmem:[%s1496 + $0x18] sm:$0xff]
        %v1501 = vld [vmem:[%s1496 + $0x20] sm:$0xff]
        %v1502 = vld [vmem:[%s1496 + $0x28] sm:$0xff]
        %v1503 = vld [vmem:[%s1496 + $0x30] sm:$0xff]
        %v1504 = vld [vmem:[%s1496 + $0x38] sm:$0xff]
        %v1505 = vld [vmem:[%s1496 + $0x40] sm:$0xff]
        %v1506 = vld [vmem:[%s1496 + $0x48] sm:$0xff]
        %v1507 = vld [vmem:[%s1496 + $0x50] sm:$0xff]
        %v1508 = vld [vmem:[%s1496 + $0x58] sm:$0xff]
        %v1509 = vld [vmem:[%s1496 + $0x60] sm:$0xff]
        %v1510 = vld [vmem:[%s1496 + $0x68] sm:$0xff]
        %v1511 = vld [vmem:[%s1496 + $0x70] sm:$0xff]
        %v1512 = vld [vmem:[%s1496 + $0x78] sm:$0xff]
        %v1513 = vld [vmem:[%s1496 + $0x80] sm:$0xff]
        %v1514 = vld [vmem:[%s1496 + $0x88] sm:$0xff]
        %v1516 = vsel %vm1285, %v1494, 0
        %1518 = vmatprep.subr.mxu0 0.0
        %1519 = vmatpush1.msra.mxu0 %v1512
        %1520 = vmatprep.subr.mxu0 0.0
        %1521 = vmatpush1.msra.mxu0 %v1511
        %1522 = vmatprep.subr.mxu0 0.0
        %1523 = vmatpush1.msra.mxu0 %v1510
        %1524 = vmatprep.subr.mxu0 0.0
        %1525 = vmatpush1.msra.mxu0 %v1509
        %1526 = vmatprep.subr.mxu0 0.0
        %1527 = vmatpush1.msra.mxu0 %v1508
        %1528 = vmatprep.subr.mxu0 0.0
        %1529 = vmatpush1.msra.mxu0 %v1507
        %1530 = vmatprep.subr.mxu0 0.0
        %1531 = vmatpush1.msra.mxu0 %v1506
        %1532 = vmatprep.subr.mxu0 0.0
        %1533 = vmatpush1.msra.mxu0 %v1505
        %1534 = vmatprep.subr.mxu0 0.0
        %1535 = vmatpush1.msra.mxu0 %v1504
        %1536 = vmatprep.subr.mxu0 0.0
        %1537 = vmatpush1.msra.mxu0 %v1503
        %1538 = vmatprep.subr.mxu0 0.0
        %1539 = vmatpush1.msra.mxu0 %v1502
        %1540 = vmatprep.subr.mxu0 0.0
        %1541 = vmatpush1.msra.mxu0 %v1501
        %1542 = vmatprep.subr.mxu0 0.0
        %1543 = vmatpush1.msra.mxu0 %v1500
        %1544 = vmatprep.subr.mxu0 0.0
        %1545 = vmatpush1.msra.mxu0 %v1499
        %1546 = vmatprep.subr.mxu0 0.0
        %1547 = vmatpush1.msra.mxu0 %v1498
        %1548 = vmatprep.subr.mxu0 0.0
        %1549 = vmatpush1.msra.mxu0 %v1497
        %1550 = vmatprep.subr.mxu0 0.0
        %1551 = vmatpush2.msra.mxu0 0.0
        %1552 = vmatprep.subr.mxu0 0.0
        %1553 = vmatpush2.msra.mxu0 0.0
        %1554 = vmatprep.subr.mxu0 0.0
        %1555 = vmatpush2.msra.mxu0 0.0
        %1556 = vmatprep.subr.mxu0 0.0
        %1557 = vmatpush2.msra.mxu0 0.0
        %1558 = vmatprep.subr.mxu0 0.0
        %1559 = vmatpush2.msra.mxu0 0.0
        %1560 = vmatprep.subr.mxu0 0.0
        %1561 = vmatpush2.msra.mxu0 0.0
        %1562 = vmatprep.subr.mxu0 0.0
        %1563 = vmatpush2.msra.mxu0 0.0
        %1564 = vmatprep.subr.mxu0 0.0
        %1565 = vmatpush2.msra.mxu0 0.0
        %1566 = vmatprep.subr.mxu0 0.0
        %1567 = vmatpush2.msra.mxu0 0.0
        %1568 = vmatprep.subr.mxu0 0.0
        %1569 = vmatpush2.msra.mxu0 0.0
        %1570 = vmatprep.subr.mxu0 0.0
        %1571 = vmatpush2.msra.mxu0 0.0
        %1572 = vmatprep.subr.mxu0 0.0
        %1573 = vmatpush2.msra.mxu0 0.0
        %1574 = vmatprep.subr.mxu0 0.0
        %1575 = vmatpush2.msra.mxu0 0.0
        %1576 = vmatprep.subr.mxu0 0.0
        %1577 = vmatpush2.msra.mxu0 0.0
        %1578 = vmatprep.subr.mxu0 0.0
        %1579 = vmatpush2.msra.mxu0 %v1514
        %1580 = vmatprep.subr.mxu0 0.0
        %1581 = vmatpush2.msra.mxu0 %v1513
        %1582 = vmatprep.mubr.f32.mxu0 %v1516
        %1583 = vmatmul.mubr.f32.gmra.mxu0 %v1492
        %v1584 = vpop.f32.mrf.mxu0
        %v1585 = vadd.f32 0.0, %v1584
        %v1586 = vpop.f32.mrf.mxu0
        %1587 = vdwg.mxu0
        %v1589 = vsel %vm1285, %v1403, 0
        %1591 = vmatprep.subr.mxu0 0.0
        %1592 = vmatpush1.msra.mxu0 %v1420
        %1593 = vmatprep.subr.mxu0 0.0
        %1594 = vmatpush1.msra.mxu0 %v1419
        %1595 = vmatprep.subr.mxu0 0.0
        %1596 = vmatpush1.msra.mxu0 %v1418
        %1597 = vmatprep.subr.mxu0 0.0
        %1598 = vmatpush1.msra.mxu0 %v1417
        %1599 = vmatprep.subr.mxu0 0.0
        %1600 = vmatpush1.msra.mxu0 %v1416
        %1601 = vmatprep.subr.mxu0 0.0
        %1602 = vmatpush1.msra.mxu0 %v1415
        %1603 = vmatprep.subr.mxu0 0.0
        %1604 = vmatpush1.msra.mxu0 %v1414
        %1605 = vmatprep.subr.mxu0 0.0
        %1606 = vmatpush1.msra.mxu0 %v1413
        %1607 = vmatprep.subr.mxu0 0.0
        %1608 = vmatpush1.msra.mxu0 %v1412
        %1609 = vmatprep.subr.mxu0 0.0
        %1610 = vmatpush1.msra.mxu0 %v1411
        %1611 = vmatprep.subr.mxu0 0.0
        %1612 = vmatpush1.msra.mxu0 %v1410
        %1613 = vmatprep.subr.mxu0 0.0
        %1614 = vmatpush1.msra.mxu0 %v1409
        %1615 = vmatprep.subr.mxu0 0.0
        %1616 = vmatpush1.msra.mxu0 %v1408
        %1617 = vmatprep.subr.mxu0 0.0
        %1618 = vmatpush1.msra.mxu0 %v1407
        %1619 = vmatprep.subr.mxu0 0.0
        %1620 = vmatpush1.msra.mxu0 %v1406
        %1621 = vmatprep.subr.mxu0 0.0
        %1622 = vmatpush1.msra.mxu0 %v1405
        %1623 = vmatprep.subr.mxu0 0.0
        %1624 = vmatpush2.msra.mxu0 0.0
        %1625 = vmatprep.subr.mxu0 0.0
        %1626 = vmatpush2.msra.mxu0 0.0
        %1627 = vmatprep.subr.mxu0 0.0
        %1628 = vmatpush2.msra.mxu0 0.0
        %1629 = vmatprep.subr.mxu0 0.0
        %1630 = vmatpush2.msra.mxu0 0.0
        %1631 = vmatprep.subr.mxu0 0.0
        %1632 = vmatpush2.msra.mxu0 0.0
        %1633 = vmatprep.subr.mxu0 0.0
        %1634 = vmatpush2.msra.mxu0 0.0
        %1635 = vmatprep.subr.mxu0 0.0
        %1636 = vmatpush2.msra.mxu0 0.0
        %1637 = vmatprep.subr.mxu0 0.0
        %1638 = vmatpush2.msra.mxu0 0.0
        %1639 = vmatprep.subr.mxu0 0.0
        %1640 = vmatpush2.msra.mxu0 0.0
        %1641 = vmatprep.subr.mxu0 0.0
        %1642 = vmatpush2.msra.mxu0 0.0
        %1643 = vmatprep.subr.mxu0 0.0
        %1644 = vmatpush2.msra.mxu0 0.0
        %1645 = vmatprep.subr.mxu0 0.0
        %1646 = vmatpush2.msra.mxu0 0.0
        %1647 = vmatprep.subr.mxu0 0.0
        %1648 = vmatpush2.msra.mxu0 0.0
        %1649 = vmatprep.subr.mxu0 0.0
        %1650 = vmatpush2.msra.mxu0 0.0
        %1651 = vmatprep.subr.mxu0 0.0
        %1652 = vmatpush2.msra.mxu0 %v1422
        %1653 = vmatprep.subr.mxu0 0.0
        %1654 = vmatpush2.msra.mxu0 %v1421
        %1655 = vmatprep.mubr.f32.mxu0 %v1589
        %1656 = vmatmul.mubr.f32.gmra.mxu0 %v1401
        %v1657 = vpop.f32.mrf.mxu0
        %v1658 = vadd.f32 %v1585, %v1657
        %v1659 = vpop.f32.mrf.mxu0
        %1660 = vdwg.mxu0
        %v1661 = vsel %vm1325, %v1082, 0
        %1663 = vmatprep.subr.mxu0 0.0
        %1664 = vmatpush1.msra.mxu0 0.0
        %1665 = vmatprep.subr.mxu0 0.0
        %1666 = vmatpush1.msra.mxu0 0.0
        %1667 = vmatprep.subr.mxu0 0.0
        %1668 = vmatpush1.msra.mxu0 0.0
        %1669 = vmatprep.subr.mxu0 0.0
        %1670 = vmatpush1.msra.mxu0 0.0
        %1671 = vmatprep.subr.mxu0 0.0
        %1672 = vmatpush1.msra.mxu0 0.0
        %1673 = vmatprep.subr.mxu0 0.0
        %1674 = vmatpush1.msra.mxu0 0.0
        %1675 = vmatprep.subr.mxu0 0.0
        %1676 = vmatpush1.msra.mxu0 0.0
        %1677 = vmatprep.subr.mxu0 0.0
        %1678 = vmatpush1.msra.mxu0 0.0
        %1679 = vmatprep.subr.mxu0 0.0
        %1680 = vmatpush1.msra.mxu0 0.0
        %1681 = vmatprep.subr.mxu0 0.0
        %1682 = vmatpush1.msra.mxu0 0.0
        %1683 = vmatprep.subr.mxu0 0.0
        %1684 = vmatpush1.msra.mxu0 0.0
        %1685 = vmatprep.subr.mxu0 0.0
        %1686 = vmatpush1.msra.mxu0 0.0
        %1687 = vmatprep.subr.mxu0 0.0
        %1688 = vmatpush1.msra.mxu0 0.0
        %1689 = vmatprep.subr.mxu0 %v1332
        %1690 = vmatpush1.msra.mxu0 %v1329
        %1691 = vmatprep.subr.mxu0 %v1322
        %1692 = vmatpush1.msra.mxu0 %v1321
        %1693 = vmatprep.subr.mxu0 %v1320
        %1694 = vmatpush1.msra.mxu0 %v1319
        %1695 = vmatprep.subr.mxu0 0.0
        %1696 = vmatpush2.msra.mxu0 0.0
        %1697 = vmatprep.subr.mxu0 0.0
        %1698 = vmatpush2.msra.mxu0 0.0
        %1699 = vmatprep.subr.mxu0 0.0
        %1700 = vmatpush2.msra.mxu0 0.0
        %1701 = vmatprep.subr.mxu0 0.0
        %1702 = vmatpush2.msra.mxu0 0.0
        %1703 = vmatprep.subr.mxu0 0.0
        %1704 = vmatpush2.msra.mxu0 0.0
        %1705 = vmatprep.subr.mxu0 0.0
        %1706 = vmatpush2.msra.mxu0 0.0
        %1707 = vmatprep.subr.mxu0 0.0
        %1708 = vmatpush2.msra.mxu0 0.0
        %1709 = vmatprep.subr.mxu0 0.0
        %1710 = vmatpush2.msra.mxu0 0.0
        %1711 = vmatprep.subr.mxu0 0.0
        %1712 = vmatpush2.msra.mxu0 0.0
        %1713 = vmatprep.subr.mxu0 0.0
        %1714 = vmatpush2.msra.mxu0 0.0
        %1715 = vmatprep.subr.mxu0 0.0
        %1716 = vmatpush2.msra.mxu0 0.0
        %1717 = vmatprep.subr.mxu0 0.0
        %1718 = vmatpush2.msra.mxu0 0.0
        %1719 = vmatprep.subr.mxu0 0.0
        %1720 = vmatpush2.msra.mxu0 0.0
        %1721 = vmatprep.subr.mxu0 0.0
        %1722 = vmatpush2.msra.mxu0 0.0
        %1723 = vmatprep.subr.mxu0 0.0
        %1724 = vmatpush2.msra.mxu0 0.0
        %1725 = vmatprep.subr.mxu0 0.0
        %1726 = vmatpush2.msra.mxu0 0.0
        %1727 = vmatprep.mubr.f32.mxu0 0.0
        %1728 = vmatmul.mubr.f32.gmra.mxu0 %v1661
        %v1729 = vpop.f32.mrf.mxu0
        %v1730 = vadd.f32 0.0, %v1729
        %v1731 = vpop.f32.mrf.mxu0
        %v1732 = vadd.f32 0.0, %v1731
        %1733 = vdwg.mxu0
        %s1734 = scalar_lea.vmem %s3, 288
        %v1735 = vld [vmem:[%s1734] sm:$0xff]
        %v1736 = vld [vmem:[%s1734 + $0x8] sm:$0xff]
        %v1737 = vld [vmem:[%s1734 + $0x10] sm:$0xff]
        %v1738 = vld [vmem:[%s1734 + $0x18] sm:$0xff]
        %v1739 = vld [vmem:[%s1734 + $0x20] sm:$0xff]
        %v1740 = vld [vmem:[%s1734 + $0x28] sm:$0xff]
        %v1741 = vld [vmem:[%s1734 + $0x30] sm:$0xff]
        %v1742 = vld [vmem:[%s1734 + $0x38] sm:$0xff]
        %v1743 = vld [vmem:[%s1734 + $0x40] sm:$0xff]
        %v1744 = vld [vmem:[%s1734 + $0x48] sm:$0xff]
        %v1745 = vld [vmem:[%s1734 + $0x50] sm:$0xff]
        %v1746 = vld [vmem:[%s1734 + $0x58] sm:$0xff]
        %v1747 = vld [vmem:[%s1734 + $0x60] sm:$0xff]
        %v1748 = vld [vmem:[%s1734 + $0x68] sm:$0xff]
        %v1749 = vld [vmem:[%s1734 + $0x70] sm:$0xff]
        %v1750 = vld [vmem:[%s1734 + $0x78] sm:$0xff]
        %v1751 = vld [vmem:[%s1734 + $0x80] sm:$0xff]
        %v1752 = vld [vmem:[%s1734 + $0x88] sm:$0xff]
        %v1754 = vsel %vm1285, %v1732, 0
        %1756 = vmatprep.subr.mxu0 0.0
        %1757 = vmatpush1.msra.mxu0 %v1750
        %1758 = vmatprep.subr.mxu0 0.0
        %1759 = vmatpush1.msra.mxu0 %v1749
        %1760 = vmatprep.subr.mxu0 0.0
        %1761 = vmatpush1.msra.mxu0 %v1748
        %1762 = vmatprep.subr.mxu0 0.0
        %1763 = vmatpush1.msra.mxu0 %v1747
        %1764 = vmatprep.subr.mxu0 0.0
        %1765 = vmatpush1.msra.mxu0 %v1746
        %1766 = vmatprep.subr.mxu0 0.0
        %1767 = vmatpush1.msra.mxu0 %v1745
        %1768 = vmatprep.subr.mxu0 0.0
        %1769 = vmatpush1.msra.mxu0 %v1744
        %1770 = vmatprep.subr.mxu0 0.0
        %1771 = vmatpush1.msra.mxu0 %v1743
        %1772 = vmatprep.subr.mxu0 0.0
        %1773 = vmatpush1.msra.mxu0 %v1742
        %1774 = vmatprep.subr.mxu0 0.0
        %1775 = vmatpush1.msra.mxu0 %v1741
        %1776 = vmatprep.subr.mxu0 0.0
        %1777 = vmatpush1.msra.mxu0 %v1740
        %1778 = vmatprep.subr.mxu0 0.0
        %1779 = vmatpush1.msra.mxu0 %v1739
        %1780 = vmatprep.subr.mxu0 0.0
        %1781 = vmatpush1.msra.mxu0 %v1738
        %1782 = vmatprep.subr.mxu0 0.0
        %1783 = vmatpush1.msra.mxu0 %v1737
        %1784 = vmatprep.subr.mxu0 0.0
        %1785 = vmatpush1.msra.mxu0 %v1736
        %1786 = vmatprep.subr.mxu0 0.0
        %1787 = vmatpush1.msra.mxu0 %v1735
        %1788 = vmatprep.subr.mxu0 0.0
        %1789 = vmatpush2.msra.mxu0 0.0
        %1790 = vmatprep.subr.mxu0 0.0
        %1791 = vmatpush2.msra.mxu0 0.0
        %1792 = vmatprep.subr.mxu0 0.0
        %1793 = vmatpush2.msra.mxu0 0.0
        %1794 = vmatprep.subr.mxu0 0.0
        %1795 = vmatpush2.msra.mxu0 0.0
        %1796 = vmatprep.subr.mxu0 0.0
        %1797 = vmatpush2.msra.mxu0 0.0
        %1798 = vmatprep.subr.mxu0 0.0
        %1799 = vmatpush2.msra.mxu0 0.0
        %1800 = vmatprep.subr.mxu0 0.0
        %1801 = vmatpush2.msra.mxu0 0.0
        %1802 = vmatprep.subr.mxu0 0.0
        %1803 = vmatpush2.msra.mxu0 0.0
        %1804 = vmatprep.subr.mxu0 0.0
        %1805 = vmatpush2.msra.mxu0 0.0
        %1806 = vmatprep.subr.mxu0 0.0
        %1807 = vmatpush2.msra.mxu0 0.0
        %1808 = vmatprep.subr.mxu0 0.0
        %1809 = vmatpush2.msra.mxu0 0.0
        %1810 = vmatprep.subr.mxu0 0.0
        %1811 = vmatpush2.msra.mxu0 0.0
        %1812 = vmatprep.subr.mxu0 0.0
        %1813 = vmatpush2.msra.mxu0 0.0
        %1814 = vmatprep.subr.mxu0 0.0
        %1815 = vmatpush2.msra.mxu0 0.0
        %1816 = vmatprep.subr.mxu0 0.0
        %1817 = vmatpush2.msra.mxu0 %v1752
        %1818 = vmatprep.subr.mxu0 0.0
        %1819 = vmatpush2.msra.mxu0 %v1751
        %1820 = vmatprep.mubr.f32.mxu0 %v1754
        %1821 = vmatmul.mubr.f32.gmra.mxu0 %v1730
        %v1822 = vpop.f32.mrf.mxu0
        %v1823 = vadd.f32 0.0, %v1822
        %v1824 = vpop.f32.mrf.mxu0
        %1825 = vdwg.mxu0
        %v1826 = vadd.f32 %v1658, %v1823
        %v1827 = vld [vmem:[#allocation14] sm:$0x1]
        %v1829 = vlaneseq
        %v1830 = vshrl.u32 %v1829, 7
        %v1831 = vsub.s32 0, %v1830
        %v1832 = vrot.slane %v1827, %v1831
        %v1834 = vadd.f32 %v1826, %v1832
        %v1835 = vmul.f32 %v1834, 0.5
        %v1836 = vmul.f32 %v1834, 0.70710677
        %v1837 = verf.f32.pop %v1836
        %v1838 = vadd.f32 %v1837, 1.0
        %v1839 = vmul.f32 %v1835, %v1838
        %vm1840 = vcmask 654336
        %1841 = vst.msk [vmem:[#allocation4] sm:$0xff] %vm1840, 0.0
        %vm1842 = vcmask 648192
        %1843 = vst.msk [vmem:[#allocation4 + $0x8] sm:$0x3] %vm1842, 0.0
        %1845 = vrot.lane.b32.xlu0 %v1839, 8
        %v1846 = vpop.permute.xlu0 %1845
        %vm1848 = vcmask 588864
        %1849 = vst.msk [vmem:[#allocation4 + $0x1] sm:$0xff] %vm1848, %v1846
        %v1850 = vld [vmem:[#allocation4] sm:$0xff]
        %v1851 = vld [vmem:[#allocation15] sm:$0xff]
        %v1852 = vld [vmem:[#allocation15 + $0x8] sm:$0xff]
        %v1853 = vld [vmem:[#allocation15 + $0x10] sm:$0xff]
        %v1854 = vld [vmem:[#allocation15 + $0x18] sm:$0xff]
        %v1855 = vld [vmem:[#allocation15 + $0x20] sm:$0xff]
        %v1856 = vld [vmem:[#allocation15 + $0x28] sm:$0xff]
        %v1857 = vld [vmem:[#allocation15 + $0x30] sm:$0xff]
        %v1858 = vld [vmem:[#allocation15 + $0x38] sm:$0xff]
        %v1859 = vld [vmem:[#allocation15 + $0x40] sm:$0xff]
        %v1860 = vld [vmem:[#allocation15 + $0x48] sm:$0xff]
        %v1861 = vld [vmem:[#allocation4 + $0x1] sm:$0xff]
        %s1862 = scalar_lea.vmem [#allocation15], 80
        %v1863 = vld [vmem:[%s1862] sm:$0xff]
        %v1864 = vld [vmem:[%s1862 + $0x8] sm:$0xff]
        %v1865 = vld [vmem:[%s1862 + $0x10] sm:$0xff]
        %v1866 = vld [vmem:[%s1862 + $0x18] sm:$0xff]
        %v1867 = vld [vmem:[%s1862 + $0x20] sm:$0xff]
        %v1868 = vld [vmem:[%s1862 + $0x28] sm:$0xff]
        %v1869 = vld [vmem:[%s1862 + $0x30] sm:$0xff]
        %v1870 = vld [vmem:[%s1862 + $0x38] sm:$0xff]
        %v1871 = vld [vmem:[%s1862 + $0x40] sm:$0xff]
        %v1872 = vld [vmem:[%s1862 + $0x48] sm:$0xff]
        %v1874 = vsel %vm1840, %v1861, 0
        %1876 = vmatprep.subr.mxu0 0.0
        %1877 = vmatpush1.msra.mxu0 0.0
        %1878 = vmatprep.subr.mxu0 0.0
        %1879 = vmatpush1.msra.mxu0 0.0
        %1880 = vmatprep.subr.mxu0 0.0
        %1881 = vmatpush1.msra.mxu0 0.0
        %1882 = vmatprep.subr.mxu0 0.0
        %1883 = vmatpush1.msra.mxu0 0.0
        %1884 = vmatprep.subr.mxu0 0.0
        %1885 = vmatpush1.msra.mxu0 0.0
        %1886 = vmatprep.subr.mxu0 0.0
        %1887 = vmatpush1.msra.mxu0 0.0
        %1888 = vmatprep.subr.mxu0 0.0
        %1889 = vmatpush1.msra.mxu0 %v1872
        %1890 = vmatprep.subr.mxu0 0.0
        %1891 = vmatpush1.msra.mxu0 %v1871
        %1892 = vmatprep.subr.mxu0 0.0
        %1893 = vmatpush1.msra.mxu0 %v1870
        %1894 = vmatprep.subr.mxu0 0.0
        %1895 = vmatpush1.msra.mxu0 %v1869
        %1896 = vmatprep.subr.mxu0 0.0
        %1897 = vmatpush1.msra.mxu0 %v1868
        %1898 = vmatprep.subr.mxu0 0.0
        %1899 = vmatpush1.msra.mxu0 %v1867
        %1900 = vmatprep.subr.mxu0 0.0
        %1901 = vmatpush1.msra.mxu0 %v1866
        %1902 = vmatprep.subr.mxu0 0.0
        %1903 = vmatpush1.msra.mxu0 %v1865
        %1904 = vmatprep.subr.mxu0 0.0
        %1905 = vmatpush1.msra.mxu0 %v1864
        %1906 = vmatprep.subr.mxu0 0.0
        %1907 = vmatpush1.msra.mxu0 %v1863
        %1908 = vmatprep.subr.mxu0 0.0
        %1909 = vmatpush2.msra.mxu0 0.0
        %1910 = vmatprep.subr.mxu0 0.0
        %1911 = vmatpush2.msra.mxu0 0.0
        %1912 = vmatprep.subr.mxu0 0.0
        %1913 = vmatpush2.msra.mxu0 0.0
        %1914 = vmatprep.subr.mxu0 0.0
        %1915 = vmatpush2.msra.mxu0 0.0
        %1916 = vmatprep.subr.mxu0 0.0
        %1917 = vmatpush2.msra.mxu0 0.0
        %1918 = vmatprep.subr.mxu0 0.0
        %1919 = vmatpush2.msra.mxu0 0.0
        %1920 = vmatprep.subr.mxu0 0.0
        %1921 = vmatpush2.msra.mxu0 0.0
        %1922 = vmatprep.subr.mxu0 0.0
        %1923 = vmatpush2.msra.mxu0 0.0
        %1924 = vmatprep.subr.mxu0 0.0
        %1925 = vmatpush2.msra.mxu0 0.0
        %1926 = vmatprep.subr.mxu0 0.0
        %1927 = vmatpush2.msra.mxu0 0.0
        %1928 = vmatprep.subr.mxu0 0.0
        %1929 = vmatpush2.msra.mxu0 0.0
        %1930 = vmatprep.subr.mxu0 0.0
        %1931 = vmatpush2.msra.mxu0 0.0
        %1932 = vmatprep.subr.mxu0 0.0
        %1933 = vmatpush2.msra.mxu0 0.0
        %1934 = vmatprep.subr.mxu0 0.0
        %1935 = vmatpush2.msra.mxu0 0.0
        %1936 = vmatprep.subr.mxu0 0.0
        %1937 = vmatpush2.msra.mxu0 0.0
        %1938 = vmatprep.subr.mxu0 0.0
        %1939 = vmatpush2.msra.mxu0 0.0
        %1940 = vmatprep.mubr.f32.mxu0 0.0
        %1941 = vmatmul.mubr.f32.gmra.mxu0 %v1874
        %v1942 = vpop.f32.mrf.mxu0
        %v1943 = vadd.f32 0.0, %v1942
        %v1944 = vpop.f32.mrf.mxu0
        %1945 = vdwg.mxu0
        %v1947 = vsel %vm1840, %v1850, 0
        %1949 = vmatprep.subr.mxu0 0.0
        %1950 = vmatpush1.msra.mxu0 0.0
        %1951 = vmatprep.subr.mxu0 0.0
        %1952 = vmatpush1.msra.mxu0 0.0
        %1953 = vmatprep.subr.mxu0 0.0
        %1954 = vmatpush1.msra.mxu0 0.0
        %1955 = vmatprep.subr.mxu0 0.0
        %1956 = vmatpush1.msra.mxu0 0.0
        %1957 = vmatprep.subr.mxu0 0.0
        %1958 = vmatpush1.msra.mxu0 0.0
        %1959 = vmatprep.subr.mxu0 0.0
        %1960 = vmatpush1.msra.mxu0 0.0
        %1961 = vmatprep.subr.mxu0 0.0
        %1962 = vmatpush1.msra.mxu0 %v1860
        %1963 = vmatprep.subr.mxu0 0.0
        %1964 = vmatpush1.msra.mxu0 %v1859
        %1965 = vmatprep.subr.mxu0 0.0
        %1966 = vmatpush1.msra.mxu0 %v1858
        %1967 = vmatprep.subr.mxu0 0.0
        %1968 = vmatpush1.msra.mxu0 %v1857
        %1969 = vmatprep.subr.mxu0 0.0
        %1970 = vmatpush1.msra.mxu0 %v1856
        %1971 = vmatprep.subr.mxu0 0.0
        %1972 = vmatpush1.msra.mxu0 %v1855
        %1973 = vmatprep.subr.mxu0 0.0
        %1974 = vmatpush1.msra.mxu0 %v1854
        %1975 = vmatprep.subr.mxu0 0.0
        %1976 = vmatpush1.msra.mxu0 %v1853
        %1977 = vmatprep.subr.mxu0 0.0
        %1978 = vmatpush1.msra.mxu0 %v1852
        %1979 = vmatprep.subr.mxu0 0.0
        %1980 = vmatpush1.msra.mxu0 %v1851
        %1981 = vmatprep.subr.mxu0 0.0
        %1982 = vmatpush2.msra.mxu0 0.0
        %1983 = vmatprep.subr.mxu0 0.0
        %1984 = vmatpush2.msra.mxu0 0.0
        %1985 = vmatprep.subr.mxu0 0.0
        %1986 = vmatpush2.msra.mxu0 0.0
        %1987 = vmatprep.subr.mxu0 0.0
        %1988 = vmatpush2.msra.mxu0 0.0
        %1989 = vmatprep.subr.mxu0 0.0
        %1990 = vmatpush2.msra.mxu0 0.0
        %1991 = vmatprep.subr.mxu0 0.0
        %1992 = vmatpush2.msra.mxu0 0.0
        %1993 = vmatprep.subr.mxu0 0.0
        %1994 = vmatpush2.msra.mxu0 0.0
        %1995 = vmatprep.subr.mxu0 0.0
        %1996 = vmatpush2.msra.mxu0 0.0
        %1997 = vmatprep.subr.mxu0 0.0
        %1998 = vmatpush2.msra.mxu0 0.0
        %1999 = vmatprep.subr.mxu0 0.0
        %2000 = vmatpush2.msra.mxu0 0.0
        %2001 = vmatprep.subr.mxu0 0.0
        %2002 = vmatpush2.msra.mxu0 0.0
        %2003 = vmatprep.subr.mxu0 0.0
        %2004 = vmatpush2.msra.mxu0 0.0
        %2005 = vmatprep.subr.mxu0 0.0
        %2006 = vmatpush2.msra.mxu0 0.0
        %2007 = vmatprep.subr.mxu0 0.0
        %2008 = vmatpush2.msra.mxu0 0.0
        %2009 = vmatprep.subr.mxu0 0.0
        %2010 = vmatpush2.msra.mxu0 0.0
        %2011 = vmatprep.subr.mxu0 0.0
        %2012 = vmatpush2.msra.mxu0 0.0
        %2013 = vmatprep.mubr.f32.mxu0 0.0
        %2014 = vmatmul.mubr.f32.gmra.mxu0 %v1947
        %v2015 = vpop.f32.mrf.mxu0
        %v2016 = vadd.f32 %v1943, %v2015
        %v2017 = vpop.f32.mrf.mxu0
        %2018 = vdwg.mxu0
        %v2019 = vld [vmem:[#allocation4 + $0x2] sm:$0xff]
        %s2020 = scalar_lea.vmem [#allocation15], 160
        %v2021 = vld [vmem:[%s2020] sm:$0xff]
        %v2022 = vld [vmem:[%s2020 + $0x8] sm:$0xff]
        %v2023 = vld [vmem:[%s2020 + $0x10] sm:$0xff]
        %v2024 = vld [vmem:[%s2020 + $0x18] sm:$0xff]
        %v2025 = vld [vmem:[%s2020 + $0x20] sm:$0xff]
        %v2026 = vld [vmem:[%s2020 + $0x28] sm:$0xff]
        %v2027 = vld [vmem:[%s2020 + $0x30] sm:$0xff]
        %v2028 = vld [vmem:[%s2020 + $0x38] sm:$0xff]
        %v2029 = vld [vmem:[%s2020 + $0x40] sm:$0xff]
        %v2030 = vld [vmem:[%s2020 + $0x48] sm:$0xff]
        %v2032 = vsel %vm1840, %v2019, 0
        %2034 = vmatprep.subr.mxu0 0.0
        %2035 = vmatpush1.msra.mxu0 0.0
        %2036 = vmatprep.subr.mxu0 0.0
        %2037 = vmatpush1.msra.mxu0 0.0
        %2038 = vmatprep.subr.mxu0 0.0
        %2039 = vmatpush1.msra.mxu0 0.0
        %2040 = vmatprep.subr.mxu0 0.0
        %2041 = vmatpush1.msra.mxu0 0.0
        %2042 = vmatprep.subr.mxu0 0.0
        %2043 = vmatpush1.msra.mxu0 0.0
        %2044 = vmatprep.subr.mxu0 0.0
        %2045 = vmatpush1.msra.mxu0 0.0
        %2046 = vmatprep.subr.mxu0 0.0
        %2047 = vmatpush1.msra.mxu0 %v2030
        %2048 = vmatprep.subr.mxu0 0.0
        %2049 = vmatpush1.msra.mxu0 %v2029
        %2050 = vmatprep.subr.mxu0 0.0
        %2051 = vmatpush1.msra.mxu0 %v2028
        %2052 = vmatprep.subr.mxu0 0.0
        %2053 = vmatpush1.msra.mxu0 %v2027
        %2054 = vmatprep.subr.mxu0 0.0
        %2055 = vmatpush1.msra.mxu0 %v2026
        %2056 = vmatprep.subr.mxu0 0.0
        %2057 = vmatpush1.msra.mxu0 %v2025
        %2058 = vmatprep.subr.mxu0 0.0
        %2059 = vmatpush1.msra.mxu0 %v2024
        %2060 = vmatprep.subr.mxu0 0.0
        %2061 = vmatpush1.msra.mxu0 %v2023
        %2062 = vmatprep.subr.mxu0 0.0
        %2063 = vmatpush1.msra.mxu0 %v2022
        %2064 = vmatprep.subr.mxu0 0.0
        %2065 = vmatpush1.msra.mxu0 %v2021
        %2066 = vmatprep.subr.mxu0 0.0
        %2067 = vmatpush2.msra.mxu0 0.0
        %2068 = vmatprep.subr.mxu0 0.0
        %2069 = vmatpush2.msra.mxu0 0.0
        %2070 = vmatprep.subr.mxu0 0.0
        %2071 = vmatpush2.msra.mxu0 0.0
        %2072 = vmatprep.subr.mxu0 0.0
        %2073 = vmatpush2.msra.mxu0 0.0
        %2074 = vmatprep.subr.mxu0 0.0
        %2075 = vmatpush2.msra.mxu0 0.0
        %2076 = vmatprep.subr.mxu0 0.0
        %2077 = vmatpush2.msra.mxu0 0.0
        %2078 = vmatprep.subr.mxu0 0.0
        %2079 = vmatpush2.msra.mxu0 0.0
        %2080 = vmatprep.subr.mxu0 0.0
        %2081 = vmatpush2.msra.mxu0 0.0
        %2082 = vmatprep.subr.mxu0 0.0
        %2083 = vmatpush2.msra.mxu0 0.0
        %2084 = vmatprep.subr.mxu0 0.0
        %2085 = vmatpush2.msra.mxu0 0.0
        %2086 = vmatprep.subr.mxu0 0.0
        %2087 = vmatpush2.msra.mxu0 0.0
        %2088 = vmatprep.subr.mxu0 0.0
        %2089 = vmatpush2.msra.mxu0 0.0
        %2090 = vmatprep.subr.mxu0 0.0
        %2091 = vmatpush2.msra.mxu0 0.0
        %2092 = vmatprep.subr.mxu0 0.0
        %2093 = vmatpush2.msra.mxu0 0.0
        %2094 = vmatprep.subr.mxu0 0.0
        %2095 = vmatpush2.msra.mxu0 0.0
        %2096 = vmatprep.subr.mxu0 0.0
        %2097 = vmatpush2.msra.mxu0 0.0
        %2098 = vmatprep.mubr.f32.mxu0 0.0
        %2099 = vmatmul.mubr.f32.gmra.mxu0 %v2032
        %v2100 = vpop.f32.mrf.mxu0
        %v2101 = vadd.f32 0.0, %v2100
        %v2102 = vpop.f32.mrf.mxu0
        %2103 = vdwg.mxu0
        %v2104 = vadd.f32 %v2016, %v2101
        %v2105 = vld [vmem:[#allocation17] sm:$0x1]
        %v2107 = vlaneseq
        %v2108 = vshrl.u32 %v2107, 7
        %v2109 = vsub.s32 0, %v2108
        %v2110 = vrot.slane %v2105, %v2109
        %v2112 = vadd.f32 %v2104, %v2110
        %v2113 = vmul.f32 %v2112, 0.5
        %v2114 = vmul.f32 %v2112, 0.70710677
        %v2115 = verf.f32.pop %v2114
        %v2116 = vadd.f32 %v2115, 1.0
        %v2117 = vmul.f32 %v2113, %v2116
        %2118 = vst.msk [vmem:[#allocation5] sm:$0xff] %vm1840, 0.0
        %2119 = vst.msk [vmem:[#allocation5 + $0x8] sm:$0x3] %vm1842, 0.0
        %2121 = vrot.lane.b32.xlu0 %v2117, 8
        %v2122 = vpop.permute.xlu0 %2121
        %2124 = vst.msk [vmem:[#allocation5 + $0x1] sm:$0xff] %vm1848, %v2122
        %v2125 = vld [vmem:[#allocation5] sm:$0xff]
        %v2126 = vld [vmem:[#allocation5 + $0x8] sm:$0x3]
        %vm2127 = vcmask 80896
        %v2128 = vsel %vm2127, %v703, 0
        %v2131 = vsel %vm712, %v2126, 0
        %2133 = vmatprep.subr.mxu0 0.0
        %2134 = vmatpush1.msra.mxu0 0.0
        %2135 = vmatprep.subr.mxu0 0.0
        %2136 = vmatpush1.msra.mxu0 0.0
        %2137 = vmatprep.subr.mxu0 0.0
        %2138 = vmatpush1.msra.mxu0 0.0
        %2139 = vmatprep.subr.mxu0 0.0
        %2140 = vmatpush1.msra.mxu0 0.0
        %2141 = vmatprep.subr.mxu0 0.0
        %2142 = vmatpush1.msra.mxu0 0.0
        %2143 = vmatprep.subr.mxu0 0.0
        %2144 = vmatpush1.msra.mxu0 0.0
        %2145 = vmatprep.subr.mxu0 0.0
        %2146 = vmatpush1.msra.mxu0 0.0
        %2147 = vmatprep.subr.mxu0 0.0
        %2148 = vmatpush1.msra.mxu0 0.0
        %2149 = vmatprep.subr.mxu0 0.0
        %2150 = vmatpush1.msra.mxu0 0.0
        %2151 = vmatprep.subr.mxu0 0.0
        %2152 = vmatpush1.msra.mxu0 0.0
        %2153 = vmatprep.subr.mxu0 0.0
        %2154 = vmatpush1.msra.mxu0 0.0
        %2155 = vmatprep.subr.mxu0 0.0
        %2156 = vmatpush1.msra.mxu0 0.0
        %2157 = vmatprep.subr.mxu0 0.0
        %2158 = vmatpush1.msra.mxu0 0.0
        %2159 = vmatprep.subr.mxu0 0.0
        %2160 = vmatpush1.msra.mxu0 0.0
        %2161 = vmatprep.subr.mxu0 0.0
        %2162 = vmatpush1.msra.mxu0 %v2131
        %2163 = vmatprep.subr.mxu0 0.0
        %2164 = vmatpush1.msra.mxu0 %v2125
        %2165 = vmatprep.subr.mxu0 0.0
        %2166 = vmatpush2.msra.mxu0 0.0
        %2167 = vmatprep.subr.mxu0 0.0
        %2168 = vmatpush2.msra.mxu0 0.0
        %2169 = vmatprep.subr.mxu0 0.0
        %2170 = vmatpush2.msra.mxu0 0.0
        %2171 = vmatprep.subr.mxu0 0.0
        %2172 = vmatpush2.msra.mxu0 0.0
        %2173 = vmatprep.subr.mxu0 0.0
        %2174 = vmatpush2.msra.mxu0 0.0
        %2175 = vmatprep.subr.mxu0 0.0
        %2176 = vmatpush2.msra.mxu0 0.0
        %2177 = vmatprep.subr.mxu0 0.0
        %2178 = vmatpush2.msra.mxu0 0.0
        %2179 = vmatprep.subr.mxu0 0.0
        %2180 = vmatpush2.msra.mxu0 0.0
        %2181 = vmatprep.subr.mxu0 0.0
        %2182 = vmatpush2.msra.mxu0 0.0
        %2183 = vmatprep.subr.mxu0 0.0
        %2184 = vmatpush2.msra.mxu0 0.0
        %2185 = vmatprep.subr.mxu0 0.0
        %2186 = vmatpush2.msra.mxu0 0.0
        %2187 = vmatprep.subr.mxu0 0.0
        %2188 = vmatpush2.msra.mxu0 0.0
        %2189 = vmatprep.subr.mxu0 0.0
        %2190 = vmatpush2.msra.mxu0 0.0
        %2191 = vmatprep.subr.mxu0 0.0
        %2192 = vmatpush2.msra.mxu0 0.0
        %2193 = vmatprep.subr.mxu0 0.0
        %2194 = vmatpush2.msra.mxu0 0.0
        %2195 = vmatprep.subr.mxu0 0.0
        %2196 = vmatpush2.msra.mxu0 0.0
        %2197 = vmatprep.mubr.f32.mxu0 0.0
        %2198 = vmatmul.mubr.f32.gmra.mxu0 %v2128
        %v2199 = vpop.f32.mrf.mxu0
        %v2200 = vadd.f32 0.0, %v2199
        %v2201 = vpop.f32.mrf.mxu0
        %2202 = vdwg.mxu0
        %v2203 = vld [vmem:[#allocation18] sm:$0xff]
        %v2204 = vld [vmem:[#allocation18 + $0x8] sm:$0xff]
        %v2205 = vld [vmem:[#allocation18 + $0x10] sm:$0xff]
        %v2206 = vld [vmem:[#allocation18 + $0x18] sm:$0xff]
        %v2207 = vld [vmem:[#allocation18 + $0x20] sm:$0xff]
        %v2208 = vld [vmem:[#allocation18 + $0x28] sm:$0xff]
        %v2209 = vld [vmem:[#allocation18 + $0x30] sm:$0xff]
        %v2210 = vld [vmem:[#allocation18 + $0x38] sm:$0xff]
        %v2211 = vld [vmem:[#allocation18 + $0x40] sm:$0xff]
        %v2212 = vld [vmem:[#allocation18 + $0x48] sm:$0xff]
        %v2213 = vsel %vm2127, %v810, 0
        %2215 = vmatprep.subr.mxu0 0.0
        %2216 = vmatpush1.msra.mxu0 0.0
        %2217 = vmatprep.subr.mxu0 0.0
        %2218 = vmatpush1.msra.mxu0 0.0
        %2219 = vmatprep.subr.mxu0 0.0
        %2220 = vmatpush1.msra.mxu0 0.0
        %2221 = vmatprep.subr.mxu0 0.0
        %2222 = vmatpush1.msra.mxu0 0.0
        %2223 = vmatprep.subr.mxu0 0.0
        %2224 = vmatpush1.msra.mxu0 0.0
        %2225 = vmatprep.subr.mxu0 0.0
        %2226 = vmatpush1.msra.mxu0 0.0
        %2227 = vmatprep.subr.mxu0 0.0
        %2228 = vmatpush1.msra.mxu0 0.0
        %2229 = vmatprep.subr.mxu0 0.0
        %2230 = vmatpush1.msra.mxu0 0.0
        %2231 = vmatprep.subr.mxu0 0.0
        %2232 = vmatpush1.msra.mxu0 0.0
        %2233 = vmatprep.subr.mxu0 0.0
        %2234 = vmatpush1.msra.mxu0 0.0
        %2235 = vmatprep.subr.mxu0 0.0
        %2236 = vmatpush1.msra.mxu0 0.0
        %2237 = vmatprep.subr.mxu0 0.0
        %2238 = vmatpush1.msra.mxu0 0.0
        %2239 = vmatprep.subr.mxu0 0.0
        %2240 = vmatpush1.msra.mxu0 0.0
        %2241 = vmatprep.subr.mxu0 0.0
        %2242 = vmatpush1.msra.mxu0 0.0
        %2243 = vmatprep.subr.mxu0 0.0
        %2244 = vmatpush1.msra.mxu0 %v2131
        %2245 = vmatprep.subr.mxu0 0.0
        %2246 = vmatpush1.msra.mxu0 %v2125
        %2247 = vmatprep.subr.mxu0 0.0
        %2248 = vmatpush2.msra.mxu0 0.0
        %2249 = vmatprep.subr.mxu0 0.0
        %2250 = vmatpush2.msra.mxu0 0.0
        %2251 = vmatprep.subr.mxu0 0.0
        %2252 = vmatpush2.msra.mxu0 0.0
        %2253 = vmatprep.subr.mxu0 0.0
        %2254 = vmatpush2.msra.mxu0 0.0
        %2255 = vmatprep.subr.mxu0 0.0
        %2256 = vmatpush2.msra.mxu0 0.0
        %2257 = vmatprep.subr.mxu0 0.0
        %2258 = vmatpush2.msra.mxu0 0.0
        %2259 = vmatprep.subr.mxu0 0.0
        %2260 = vmatpush2.msra.mxu0 0.0
        %2261 = vmatprep.subr.mxu0 0.0
        %2262 = vmatpush2.msra.mxu0 0.0
        %2263 = vmatprep.subr.mxu0 0.0
        %2264 = vmatpush2.msra.mxu0 0.0
        %2265 = vmatprep.subr.mxu0 0.0
        %2266 = vmatpush2.msra.mxu0 0.0
        %2267 = vmatprep.subr.mxu0 0.0
        %2268 = vmatpush2.msra.mxu0 0.0
        %2269 = vmatprep.subr.mxu0 0.0
        %2270 = vmatpush2.msra.mxu0 0.0
        %2271 = vmatprep.subr.mxu0 0.0
        %2272 = vmatpush2.msra.mxu0 0.0
        %2273 = vmatprep.subr.mxu0 0.0
        %2274 = vmatpush2.msra.mxu0 0.0
        %2275 = vmatprep.subr.mxu0 0.0
        %2276 = vmatpush2.msra.mxu0 0.0
        %2277 = vmatprep.subr.mxu0 0.0
        %2278 = vmatpush2.msra.mxu0 0.0
        %2279 = vmatprep.mubr.f32.mxu0 0.0
        %2280 = vmatmul.mubr.f32.gmra.mxu0 %v2213
        %v2281 = vpop.f32.mrf.mxu0
        %v2282 = vadd.f32 0.0, %v2281
        %v2283 = vpop.f32.mrf.mxu0
        %2284 = vdwg.mxu0
        %s2285 = scalar_lea.vmem [#allocation18], 80
        %v2286 = vld [vmem:[%s2285] sm:$0xff]
        %v2287 = vld [vmem:[%s2285 + $0x8] sm:$0xff]
        %v2288 = vld [vmem:[%s2285 + $0x10] sm:$0xff]
        %v2289 = vld [vmem:[%s2285 + $0x18] sm:$0xff]
        %v2290 = vld [vmem:[%s2285 + $0x20] sm:$0xff]
        %v2291 = vld [vmem:[%s2285 + $0x28] sm:$0xff]
        %v2292 = vld [vmem:[%s2285 + $0x30] sm:$0xff]
        %v2293 = vld [vmem:[%s2285 + $0x38] sm:$0xff]
        %v2294 = vld [vmem:[%s2285 + $0x40] sm:$0xff]
        %v2295 = vld [vmem:[%s2285 + $0x48] sm:$0xff]
        %v2297 = vsel %vm1840, %v2282, 0
        %2299 = vmatprep.subr.mxu0 0.0
        %2300 = vmatpush1.msra.mxu0 0.0
        %2301 = vmatprep.subr.mxu0 0.0
        %2302 = vmatpush1.msra.mxu0 0.0
        %2303 = vmatprep.subr.mxu0 0.0
        %2304 = vmatpush1.msra.mxu0 0.0
        %2305 = vmatprep.subr.mxu0 0.0
        %2306 = vmatpush1.msra.mxu0 0.0
        %2307 = vmatprep.subr.mxu0 0.0
        %2308 = vmatpush1.msra.mxu0 0.0
        %2309 = vmatprep.subr.mxu0 0.0
        %2310 = vmatpush1.msra.mxu0 0.0
        %2311 = vmatprep.subr.mxu0 0.0
        %2312 = vmatpush1.msra.mxu0 %v2295
        %2313 = vmatprep.subr.mxu0 0.0
        %2314 = vmatpush1.msra.mxu0 %v2294
        %2315 = vmatprep.subr.mxu0 0.0
        %2316 = vmatpush1.msra.mxu0 %v2293
        %2317 = vmatprep.subr.mxu0 0.0
        %2318 = vmatpush1.msra.mxu0 %v2292
        %2319 = vmatprep.subr.mxu0 0.0
        %2320 = vmatpush1.msra.mxu0 %v2291
        %2321 = vmatprep.subr.mxu0 0.0
        %2322 = vmatpush1.msra.mxu0 %v2290
        %2323 = vmatprep.subr.mxu0 0.0
        %2324 = vmatpush1.msra.mxu0 %v2289
        %2325 = vmatprep.subr.mxu0 0.0
        %2326 = vmatpush1.msra.mxu0 %v2288
        %2327 = vmatprep.subr.mxu0 0.0
        %2328 = vmatpush1.msra.mxu0 %v2287
        %2329 = vmatprep.subr.mxu0 0.0
        %2330 = vmatpush1.msra.mxu0 %v2286
        %2331 = vmatprep.subr.mxu0 0.0
        %2332 = vmatpush2.msra.mxu0 0.0
        %2333 = vmatprep.subr.mxu0 0.0
        %2334 = vmatpush2.msra.mxu0 0.0
        %2335 = vmatprep.subr.mxu0 0.0
        %2336 = vmatpush2.msra.mxu0 0.0
        %2337 = vmatprep.subr.mxu0 0.0
        %2338 = vmatpush2.msra.mxu0 0.0
        %2339 = vmatprep.subr.mxu0 0.0
        %2340 = vmatpush2.msra.mxu0 0.0
        %2341 = vmatprep.subr.mxu0 0.0
        %2342 = vmatpush2.msra.mxu0 0.0
        %2343 = vmatprep.subr.mxu0 0.0
        %2344 = vmatpush2.msra.mxu0 0.0
        %2345 = vmatprep.subr.mxu0 0.0
        %2346 = vmatpush2.msra.mxu0 0.0
        %2347 = vmatprep.subr.mxu0 0.0
        %2348 = vmatpush2.msra.mxu0 0.0
        %2349 = vmatprep.subr.mxu0 0.0
        %2350 = vmatpush2.msra.mxu0 0.0
        %2351 = vmatprep.subr.mxu0 0.0
        %2352 = vmatpush2.msra.mxu0 0.0
        %2353 = vmatprep.subr.mxu0 0.0
        %2354 = vmatpush2.msra.mxu0 0.0
        %2355 = vmatprep.subr.mxu0 0.0
        %2356 = vmatpush2.msra.mxu0 0.0
        %2357 = vmatprep.subr.mxu0 0.0
        %2358 = vmatpush2.msra.mxu0 0.0
        %2359 = vmatprep.subr.mxu0 0.0
        %2360 = vmatpush2.msra.mxu0 0.0
        %2361 = vmatprep.subr.mxu0 0.0
        %2362 = vmatpush2.msra.mxu0 0.0
        %2363 = vmatprep.mubr.f32.mxu0 0.0
        %2364 = vmatmul.mubr.f32.gmra.mxu0 %v2297
        %v2365 = vpop.f32.mrf.mxu0
        %v2366 = vadd.f32 0.0, %v2365
        %v2367 = vpop.f32.mrf.mxu0
        %2368 = vdwg.mxu0
        %v2370 = vsel %vm1840, %v2200, 0
        %2372 = vmatprep.subr.mxu0 0.0
        %2373 = vmatpush1.msra.mxu0 0.0
        %2374 = vmatprep.subr.mxu0 0.0
        %2375 = vmatpush1.msra.mxu0 0.0
        %2376 = vmatprep.subr.mxu0 0.0
        %2377 = vmatpush1.msra.mxu0 0.0
        %2378 = vmatprep.subr.mxu0 0.0
        %2379 = vmatpush1.msra.mxu0 0.0
        %2380 = vmatprep.subr.mxu0 0.0
        %2381 = vmatpush1.msra.mxu0 0.0
        %2382 = vmatprep.subr.mxu0 0.0
        %2383 = vmatpush1.msra.mxu0 0.0
        %2384 = vmatprep.subr.mxu0 0.0
        %2385 = vmatpush1.msra.mxu0 %v2212
        %2386 = vmatprep.subr.mxu0 0.0
        %2387 = vmatpush1.msra.mxu0 %v2211
        %2388 = vmatprep.subr.mxu0 0.0
        %2389 = vmatpush1.msra.mxu0 %v2210
        %2390 = vmatprep.subr.mxu0 0.0
        %2391 = vmatpush1.msra.mxu0 %v2209
        %2392 = vmatprep.subr.mxu0 0.0
        %2393 = vmatpush1.msra.mxu0 %v2208
        %2394 = vmatprep.subr.mxu0 0.0
        %2395 = vmatpush1.msra.mxu0 %v2207
        %2396 = vmatprep.subr.mxu0 0.0
        %2397 = vmatpush1.msra.mxu0 %v2206
        %2398 = vmatprep.subr.mxu0 0.0
        %2399 = vmatpush1.msra.mxu0 %v2205
        %2400 = vmatprep.subr.mxu0 0.0
        %2401 = vmatpush1.msra.mxu0 %v2204
        %2402 = vmatprep.subr.mxu0 0.0
        %2403 = vmatpush1.msra.mxu0 %v2203
        %2404 = vmatprep.subr.mxu0 0.0
        %2405 = vmatpush2.msra.mxu0 0.0
        %2406 = vmatprep.subr.mxu0 0.0
        %2407 = vmatpush2.msra.mxu0 0.0
        %2408 = vmatprep.subr.mxu0 0.0
        %2409 = vmatpush2.msra.mxu0 0.0
        %2410 = vmatprep.subr.mxu0 0.0
        %2411 = vmatpush2.msra.mxu0 0.0
        %2412 = vmatprep.subr.mxu0 0.0
        %2413 = vmatpush2.msra.mxu0 0.0
        %2414 = vmatprep.subr.mxu0 0.0
        %2415 = vmatpush2.msra.mxu0 0.0
        %2416 = vmatprep.subr.mxu0 0.0
        %2417 = vmatpush2.msra.mxu0 0.0
        %2418 = vmatprep.subr.mxu0 0.0
        %2419 = vmatpush2.msra.mxu0 0.0
        %2420 = vmatprep.subr.mxu0 0.0
        %2421 = vmatpush2.msra.mxu0 0.0
        %2422 = vmatprep.subr.mxu0 0.0
        %2423 = vmatpush2.msra.mxu0 0.0
        %2424 = vmatprep.subr.mxu0 0.0
        %2425 = vmatpush2.msra.mxu0 0.0
        %2426 = vmatprep.subr.mxu0 0.0
        %2427 = vmatpush2.msra.mxu0 0.0
        %2428 = vmatprep.subr.mxu0 0.0
        %2429 = vmatpush2.msra.mxu0 0.0
        %2430 = vmatprep.subr.mxu0 0.0
        %2431 = vmatpush2.msra.mxu0 0.0
        %2432 = vmatprep.subr.mxu0 0.0
        %2433 = vmatpush2.msra.mxu0 0.0
        %2434 = vmatprep.subr.mxu0 0.0
        %2435 = vmatpush2.msra.mxu0 0.0
        %2436 = vmatprep.mubr.f32.mxu0 0.0
        %2437 = vmatmul.mubr.f32.gmra.mxu0 %v2370
        %v2438 = vpop.f32.mrf.mxu0
        %v2439 = vadd.f32 %v2366, %v2438
        %v2440 = vpop.f32.mrf.mxu0
        %2441 = vdwg.mxu0
        %v2442 = vsel %vm2127, %v1082, 0
        %2444 = vmatprep.subr.mxu0 0.0
        %2445 = vmatpush1.msra.mxu0 0.0
        %2446 = vmatprep.subr.mxu0 0.0
        %2447 = vmatpush1.msra.mxu0 0.0
        %2448 = vmatprep.subr.mxu0 0.0
        %2449 = vmatpush1.msra.mxu0 0.0
        %2450 = vmatprep.subr.mxu0 0.0
        %2451 = vmatpush1.msra.mxu0 0.0
        %2452 = vmatprep.subr.mxu0 0.0
        %2453 = vmatpush1.msra.mxu0 0.0
        %2454 = vmatprep.subr.mxu0 0.0
        %2455 = vmatpush1.msra.mxu0 0.0
        %2456 = vmatprep.subr.mxu0 0.0
        %2457 = vmatpush1.msra.mxu0 0.0
        %2458 = vmatprep.subr.mxu0 0.0
        %2459 = vmatpush1.msra.mxu0 0.0
        %2460 = vmatprep.subr.mxu0 0.0
        %2461 = vmatpush1.msra.mxu0 0.0
        %2462 = vmatprep.subr.mxu0 0.0
        %2463 = vmatpush1.msra.mxu0 0.0
        %2464 = vmatprep.subr.mxu0 0.0
        %2465 = vmatpush1.msra.mxu0 0.0
        %2466 = vmatprep.subr.mxu0 0.0
        %2467 = vmatpush1.msra.mxu0 0.0
        %2468 = vmatprep.subr.mxu0 0.0
        %2469 = vmatpush1.msra.mxu0 0.0
        %2470 = vmatprep.subr.mxu0 0.0
        %2471 = vmatpush1.msra.mxu0 0.0
        %2472 = vmatprep.subr.mxu0 0.0
        %2473 = vmatpush1.msra.mxu0 %v2131
        %2474 = vmatprep.subr.mxu0 0.0
        %2475 = vmatpush1.msra.mxu0 %v2125
        %2476 = vmatprep.subr.mxu0 0.0
        %2477 = vmatpush2.msra.mxu0 0.0
        %2478 = vmatprep.subr.mxu0 0.0
        %2479 = vmatpush2.msra.mxu0 0.0
        %2480 = vmatprep.subr.mxu0 0.0
        %2481 = vmatpush2.msra.mxu0 0.0
        %2482 = vmatprep.subr.mxu0 0.0
        %2483 = vmatpush2.msra.mxu0 0.0
        %2484 = vmatprep.subr.mxu0 0.0
        %2485 = vmatpush2.msra.mxu0 0.0
        %2486 = vmatprep.subr.mxu0 0.0
        %2487 = vmatpush2.msra.mxu0 0.0
        %2488 = vmatprep.subr.mxu0 0.0
        %2489 = vmatpush2.msra.mxu0 0.0
        %2490 = vmatprep.subr.mxu0 0.0
        %2491 = vmatpush2.msra.mxu0 0.0
        %2492 = vmatprep.subr.mxu0 0.0
        %2493 = vmatpush2.msra.mxu0 0.0
        %2494 = vmatprep.subr.mxu0 0.0
        %2495 = vmatpush2.msra.mxu0 0.0
        %2496 = vmatprep.subr.mxu0 0.0
        %2497 = vmatpush2.msra.mxu0 0.0
        %2498 = vmatprep.subr.mxu0 0.0
        %2499 = vmatpush2.msra.mxu0 0.0
        %2500 = vmatprep.subr.mxu0 0.0
        %2501 = vmatpush2.msra.mxu0 0.0
        %2502 = vmatprep.subr.mxu0 0.0
        %2503 = vmatpush2.msra.mxu0 0.0
        %2504 = vmatprep.subr.mxu0 0.0
        %2505 = vmatpush2.msra.mxu0 0.0
        %2506 = vmatprep.subr.mxu0 0.0
        %2507 = vmatpush2.msra.mxu0 0.0
        %2508 = vmatprep.mubr.f32.mxu0 0.0
        %2509 = vmatmul.mubr.f32.gmra.mxu0 %v2442
        %v2510 = vpop.f32.mrf.mxu0
        %v2511 = vadd.f32 0.0, %v2510
        %v2512 = vpop.f32.mrf.mxu0
        %2513 = vdwg.mxu0
        %s2514 = scalar_lea.vmem [#allocation18], 160
        %v2515 = vld [vmem:[%s2514] sm:$0xff]
        %v2516 = vld [vmem:[%s2514 + $0x8] sm:$0xff]
        %v2517 = vld [vmem:[%s2514 + $0x10] sm:$0xff]
        %v2518 = vld [vmem:[%s2514 + $0x18] sm:$0xff]
        %v2519 = vld [vmem:[%s2514 + $0x20] sm:$0xff]
        %v2520 = vld [vmem:[%s2514 + $0x28] sm:$0xff]
        %v2521 = vld [vmem:[%s2514 + $0x30] sm:$0xff]
        %v2522 = vld [vmem:[%s2514 + $0x38] sm:$0xff]
        %v2523 = vld [vmem:[%s2514 + $0x40] sm:$0xff]
        %v2524 = vld [vmem:[%s2514 + $0x48] sm:$0xff]
        %v2526 = vsel %vm1840, %v2511, 0
        %2528 = vmatprep.subr.mxu0 0.0
        %2529 = vmatpush1.msra.mxu0 0.0
        %2530 = vmatprep.subr.mxu0 0.0
        %2531 = vmatpush1.msra.mxu0 0.0
        %2532 = vmatprep.subr.mxu0 0.0
        %2533 = vmatpush1.msra.mxu0 0.0
        %2534 = vmatprep.subr.mxu0 0.0
        %2535 = vmatpush1.msra.mxu0 0.0
        %2536 = vmatprep.subr.mxu0 0.0
        %2537 = vmatpush1.msra.mxu0 0.0
        %2538 = vmatprep.subr.mxu0 0.0
        %2539 = vmatpush1.msra.mxu0 0.0
        %2540 = vmatprep.subr.mxu0 0.0
        %2541 = vmatpush1.msra.mxu0 %v2524
        %2542 = vmatprep.subr.mxu0 0.0
        %2543 = vmatpush1.msra.mxu0 %v2523
        %2544 = vmatprep.subr.mxu0 0.0
        %2545 = vmatpush1.msra.mxu0 %v2522
        %2546 = vmatprep.subr.mxu0 0.0
        %2547 = vmatpush1.msra.mxu0 %v2521
        %2548 = vmatprep.subr.mxu0 0.0
        %2549 = vmatpush1.msra.mxu0 %v2520
        %2550 = vmatprep.subr.mxu0 0.0
        %2551 = vmatpush1.msra.mxu0 %v2519
        %2552 = vmatprep.subr.mxu0 0.0
        %2553 = vmatpush1.msra.mxu0 %v2518
        %2554 = vmatprep.subr.mxu0 0.0
        %2555 = vmatpush1.msra.mxu0 %v2517
        %2556 = vmatprep.subr.mxu0 0.0
        %2557 = vmatpush1.msra.mxu0 %v2516
        %2558 = vmatprep.subr.mxu0 0.0
        %2559 = vmatpush1.msra.mxu0 %v2515
        %2560 = vmatprep.subr.mxu0 0.0
        %2561 = vmatpush2.msra.mxu0 0.0
        %2562 = vmatprep.subr.mxu0 0.0
        %2563 = vmatpush2.msra.mxu0 0.0
        %2564 = vmatprep.subr.mxu0 0.0
        %2565 = vmatpush2.msra.mxu0 0.0
        %2566 = vmatprep.subr.mxu0 0.0
        %2567 = vmatpush2.msra.mxu0 0.0
        %2568 = vmatprep.subr.mxu0 0.0
        %2569 = vmatpush2.msra.mxu0 0.0
        %2570 = vmatprep.subr.mxu0 0.0
        %2571 = vmatpush2.msra.mxu0 0.0
        %2572 = vmatprep.subr.mxu0 0.0
        %2573 = vmatpush2.msra.mxu0 0.0
        %2574 = vmatprep.subr.mxu0 0.0
        %2575 = vmatpush2.msra.mxu0 0.0
        %2576 = vmatprep.subr.mxu0 0.0
        %2577 = vmatpush2.msra.mxu0 0.0
        %2578 = vmatprep.subr.mxu0 0.0
        %2579 = vmatpush2.msra.mxu0 0.0
        %2580 = vmatprep.subr.mxu0 0.0
        %2581 = vmatpush2.msra.mxu0 0.0
        %2582 = vmatprep.subr.mxu0 0.0
        %2583 = vmatpush2.msra.mxu0 0.0
        %2584 = vmatprep.subr.mxu0 0.0
        %2585 = vmatpush2.msra.mxu0 0.0
        %2586 = vmatprep.subr.mxu0 0.0
        %2587 = vmatpush2.msra.mxu0 0.0
        %2588 = vmatprep.subr.mxu0 0.0
        %2589 = vmatpush2.msra.mxu0 0.0
        %2590 = vmatprep.subr.mxu0 0.0
        %2591 = vmatpush2.msra.mxu0 0.0
        %2592 = vmatprep.mubr.f32.mxu0 0.0
        %2593 = vmatmul.mubr.f32.gmra.mxu0 %v2526
        %v2594 = vpop.f32.mrf.mxu0
        %v2595 = vadd.f32 0.0, %v2594
        %v2596 = vpop.f32.mrf.mxu0
        %2597 = vdwg.mxu0
        %v2598 = vadd.f32 %v2439, %v2595
        %v2599 = vld [vmem:[#allocation20] sm:$0x1]
        %v2601 = vlaneseq
        %v2602 = vshrl.u32 %v2601, 7
        %v2603 = vsub.s32 0, %v2602
        %v2604 = vrot.slane %v2599, %v2603
        %v2606 = vadd.f32 %v2598, %v2604
        %v2607 = vmul.f32 %v2606, 0.5
        %v2608 = vmul.f32 %v2606, 0.70710677
        %v2609 = verf.f32.pop %v2608
        %v2610 = vadd.f32 %v2609, 1.0
        %v2611 = vmul.f32 %v2607, %v2610
        %vm2612 = vcmask 783360
        %2613 = vst.msk [vmem:[#allocation6] sm:$0x3f] %vm2612, 0.0
        %2615 = vrot.lane.b32.xlu0 %v2611, 16
        %v2616 = vpop.permute.xlu0 %2615
        %vm2618 = vcmask 650368
        %2619 = vst.msk [vmem:[#allocation6 + $0x1] sm:$0xf] %vm2618, %v2616
        %v2620 = vld [vmem:[#allocation6] sm:$0x3f]
        %vm2621 = vcmask 48128
        %v2622 = vsel %vm2621, %v703, 0
        %v2625 = vsel %vm913, %v2620, 0
        %2627 = vmatprep.subr.mxu0 0.0
        %2628 = vmatpush1.msra.mxu0 0.0
        %2629 = vmatprep.subr.mxu0 0.0
        %2630 = vmatpush1.msra.mxu0 0.0
        %2631 = vmatprep.subr.mxu0 0.0
        %2632 = vmatpush1.msra.mxu0 0.0
        %2633 = vmatprep.subr.mxu0 0.0
        %2634 = vmatpush1.msra.mxu0 0.0
        %2635 = vmatprep.subr.mxu0 0.0
        %2636 = vmatpush1.msra.mxu0 0.0
        %2637 = vmatprep.subr.mxu0 0.0
        %2638 = vmatpush1.msra.mxu0 0.0
        %2639 = vmatprep.subr.mxu0 0.0
        %2640 = vmatpush1.msra.mxu0 0.0
        %2641 = vmatprep.subr.mxu0 0.0
        %2642 = vmatpush1.msra.mxu0 0.0
        %2643 = vmatprep.subr.mxu0 0.0
        %2644 = vmatpush1.msra.mxu0 0.0
        %2645 = vmatprep.subr.mxu0 0.0
        %2646 = vmatpush1.msra.mxu0 0.0
        %2647 = vmatprep.subr.mxu0 0.0
        %2648 = vmatpush1.msra.mxu0 0.0
        %2649 = vmatprep.subr.mxu0 0.0
        %2650 = vmatpush1.msra.mxu0 0.0
        %2651 = vmatprep.subr.mxu0 0.0
        %2652 = vmatpush1.msra.mxu0 0.0
        %2653 = vmatprep.subr.mxu0 0.0
        %2654 = vmatpush1.msra.mxu0 0.0
        %2655 = vmatprep.subr.mxu0 0.0
        %2656 = vmatpush1.msra.mxu0 0.0
        %2657 = vmatprep.subr.mxu0 0.0
        %2658 = vmatpush1.msra.mxu0 %v2625
        %2659 = vmatprep.subr.mxu0 0.0
        %2660 = vmatpush2.msra.mxu0 0.0
        %2661 = vmatprep.subr.mxu0 0.0
        %2662 = vmatpush2.msra.mxu0 0.0
        %2663 = vmatprep.subr.mxu0 0.0
        %2664 = vmatpush2.msra.mxu0 0.0
        %2665 = vmatprep.subr.mxu0 0.0
        %2666 = vmatpush2.msra.mxu0 0.0
        %2667 = vmatprep.subr.mxu0 0.0
        %2668 = vmatpush2.msra.mxu0 0.0
        %2669 = vmatprep.subr.mxu0 0.0
        %2670 = vmatpush2.msra.mxu0 0.0
        %2671 = vmatprep.subr.mxu0 0.0
        %2672 = vmatpush2.msra.mxu0 0.0
        %2673 = vmatprep.subr.mxu0 0.0
        %2674 = vmatpush2.msra.mxu0 0.0
        %2675 = vmatprep.subr.mxu0 0.0
        %2676 = vmatpush2.msra.mxu0 0.0
        %2677 = vmatprep.subr.mxu0 0.0
        %2678 = vmatpush2.msra.mxu0 0.0
        %2679 = vmatprep.subr.mxu0 0.0
        %2680 = vmatpush2.msra.mxu0 0.0
        %2681 = vmatprep.subr.mxu0 0.0
        %2682 = vmatpush2.msra.mxu0 0.0
        %2683 = vmatprep.subr.mxu0 0.0
        %2684 = vmatpush2.msra.mxu0 0.0
        %2685 = vmatprep.subr.mxu0 0.0
        %2686 = vmatpush2.msra.mxu0 0.0
        %2687 = vmatprep.subr.mxu0 0.0
        %2688 = vmatpush2.msra.mxu0 0.0
        %2689 = vmatprep.subr.mxu0 0.0
        %2690 = vmatpush2.msra.mxu0 0.0
        %2691 = vmatprep.mubr.f32.mxu0 0.0
        %2692 = vmatmul.mubr.f32.gmra.mxu0 %v2622
        %v2693 = vpop.f32.mrf.mxu0
        %v2694 = vadd.f32 0.0, %v2693
        %v2695 = vpop.f32.mrf.mxu0
        %2696 = vdwg.mxu0
        %v2697 = vld [vmem:[#allocation21] sm:$0xff]
        %v2698 = vld [vmem:[#allocation21 + $0x8] sm:$0xff]
        %v2699 = vld [vmem:[#allocation21 + $0x10] sm:$0xff]
        %v2700 = vld [vmem:[#allocation21 + $0x18] sm:$0xff]
        %v2701 = vld [vmem:[#allocation21 + $0x20] sm:$0xff]
        %v2702 = vld [vmem:[#allocation21 + $0x28] sm:$0xff]
        %v2703 = vld [vmem:[#allocation21 + $0x30] sm:$0xff]
        %v2704 = vld [vmem:[#allocation21 + $0x38] sm:$0xff]
        %v2705 = vld [vmem:[#allocation21 + $0x40] sm:$0xff]
        %v2706 = vld [vmem:[#allocation21 + $0x48] sm:$0xff]
        %v2707 = vld [vmem:[#allocation21 + $0x50] sm:$0xff]
        %v2708 = vld [vmem:[#allocation21 + $0x58] sm:$0xff]
        %v2709 = vsel %vm2621, %v810, 0
        %2711 = vmatprep.subr.mxu0 0.0
        %2712 = vmatpush1.msra.mxu0 0.0
        %2713 = vmatprep.subr.mxu0 0.0
        %2714 = vmatpush1.msra.mxu0 0.0
        %2715 = vmatprep.subr.mxu0 0.0
        %2716 = vmatpush1.msra.mxu0 0.0
        %2717 = vmatprep.subr.mxu0 0.0
        %2718 = vmatpush1.msra.mxu0 0.0
        %2719 = vmatprep.subr.mxu0 0.0
        %2720 = vmatpush1.msra.mxu0 0.0
        %2721 = vmatprep.subr.mxu0 0.0
        %2722 = vmatpush1.msra.mxu0 0.0
        %2723 = vmatprep.subr.mxu0 0.0
        %2724 = vmatpush1.msra.mxu0 0.0
        %2725 = vmatprep.subr.mxu0 0.0
        %2726 = vmatpush1.msra.mxu0 0.0
        %2727 = vmatprep.subr.mxu0 0.0
        %2728 = vmatpush1.msra.mxu0 0.0
        %2729 = vmatprep.subr.mxu0 0.0
        %2730 = vmatpush1.msra.mxu0 0.0
        %2731 = vmatprep.subr.mxu0 0.0
        %2732 = vmatpush1.msra.mxu0 0.0
        %2733 = vmatprep.subr.mxu0 0.0
        %2734 = vmatpush1.msra.mxu0 0.0
        %2735 = vmatprep.subr.mxu0 0.0
        %2736 = vmatpush1.msra.mxu0 0.0
        %2737 = vmatprep.subr.mxu0 0.0
        %2738 = vmatpush1.msra.mxu0 0.0
        %2739 = vmatprep.subr.mxu0 0.0
        %2740 = vmatpush1.msra.mxu0 0.0
        %2741 = vmatprep.subr.mxu0 0.0
        %2742 = vmatpush1.msra.mxu0 %v2625
        %2743 = vmatprep.subr.mxu0 0.0
        %2744 = vmatpush2.msra.mxu0 0.0
        %2745 = vmatprep.subr.mxu0 0.0
        %2746 = vmatpush2.msra.mxu0 0.0
        %2747 = vmatprep.subr.mxu0 0.0
        %2748 = vmatpush2.msra.mxu0 0.0
        %2749 = vmatprep.subr.mxu0 0.0
        %2750 = vmatpush2.msra.mxu0 0.0
        %2751 = vmatprep.subr.mxu0 0.0
        %2752 = vmatpush2.msra.mxu0 0.0
        %2753 = vmatprep.subr.mxu0 0.0
        %2754 = vmatpush2.msra.mxu0 0.0
        %2755 = vmatprep.subr.mxu0 0.0
        %2756 = vmatpush2.msra.mxu0 0.0
        %2757 = vmatprep.subr.mxu0 0.0
        %2758 = vmatpush2.msra.mxu0 0.0
        %2759 = vmatprep.subr.mxu0 0.0
        %2760 = vmatpush2.msra.mxu0 0.0
        %2761 = vmatprep.subr.mxu0 0.0
        %2762 = vmatpush2.msra.mxu0 0.0
        %2763 = vmatprep.subr.mxu0 0.0
        %2764 = vmatpush2.msra.mxu0 0.0
        %2765 = vmatprep.subr.mxu0 0.0
        %2766 = vmatpush2.msra.mxu0 0.0
        %2767 = vmatprep.subr.mxu0 0.0
        %2768 = vmatpush2.msra.mxu0 0.0
        %2769 = vmatprep.subr.mxu0 0.0
        %2770 = vmatpush2.msra.mxu0 0.0
        %2771 = vmatprep.subr.mxu0 0.0
        %2772 = vmatpush2.msra.mxu0 0.0
        %2773 = vmatprep.subr.mxu0 0.0
        %2774 = vmatpush2.msra.mxu0 0.0
        %2775 = vmatprep.mubr.f32.mxu0 0.0
        %2776 = vmatmul.mubr.f32.gmra.mxu0 %v2709
        %v2777 = vpop.f32.mrf.mxu0
        %v2778 = vadd.f32 0.0, %v2777
        %v2779 = vpop.f32.mrf.mxu0
        %2780 = vdwg.mxu0
        %s2781 = scalar_lea.vmem [#allocation21], 96
        %v2782 = vld [vmem:[%s2781] sm:$0xff]
        %v2783 = vld [vmem:[%s2781 + $0x8] sm:$0xff]
        %v2784 = vld [vmem:[%s2781 + $0x10] sm:$0xff]
        %v2785 = vld [vmem:[%s2781 + $0x18] sm:$0xff]
        %v2786 = vld [vmem:[%s2781 + $0x20] sm:$0xff]
        %v2787 = vld [vmem:[%s2781 + $0x28] sm:$0xff]
        %v2788 = vld [vmem:[%s2781 + $0x30] sm:$0xff]
        %v2789 = vld [vmem:[%s2781 + $0x38] sm:$0xff]
        %v2790 = vld [vmem:[%s2781 + $0x40] sm:$0xff]
        %v2791 = vld [vmem:[%s2781 + $0x48] sm:$0xff]
        %v2792 = vld [vmem:[%s2781 + $0x50] sm:$0xff]
        %v2793 = vld [vmem:[%s2781 + $0x58] sm:$0xff]
        %vm2794 = vcmask 785408
        %v2796 = vsel %vm2794, %v2778, 0
        %2798 = vmatprep.subr.mxu0 0.0
        %2799 = vmatpush1.msra.mxu0 0.0
        %2800 = vmatprep.subr.mxu0 0.0
        %2801 = vmatpush1.msra.mxu0 0.0
        %2802 = vmatprep.subr.mxu0 0.0
        %2803 = vmatpush1.msra.mxu0 0.0
        %2804 = vmatprep.subr.mxu0 0.0
        %2805 = vmatpush1.msra.mxu0 0.0
        %2806 = vmatprep.subr.mxu0 0.0
        %2807 = vmatpush1.msra.mxu0 %v2793
        %2808 = vmatprep.subr.mxu0 0.0
        %2809 = vmatpush1.msra.mxu0 %v2792
        %2810 = vmatprep.subr.mxu0 0.0
        %2811 = vmatpush1.msra.mxu0 %v2791
        %2812 = vmatprep.subr.mxu0 0.0
        %2813 = vmatpush1.msra.mxu0 %v2790
        %2814 = vmatprep.subr.mxu0 0.0
        %2815 = vmatpush1.msra.mxu0 %v2789
        %2816 = vmatprep.subr.mxu0 0.0
        %2817 = vmatpush1.msra.mxu0 %v2788
        %2818 = vmatprep.subr.mxu0 0.0
        %2819 = vmatpush1.msra.mxu0 %v2787
        %2820 = vmatprep.subr.mxu0 0.0
        %2821 = vmatpush1.msra.mxu0 %v2786
        %2822 = vmatprep.subr.mxu0 0.0
        %2823 = vmatpush1.msra.mxu0 %v2785
        %2824 = vmatprep.subr.mxu0 0.0
        %2825 = vmatpush1.msra.mxu0 %v2784
        %2826 = vmatprep.subr.mxu0 0.0
        %2827 = vmatpush1.msra.mxu0 %v2783
        %2828 = vmatprep.subr.mxu0 0.0
        %2829 = vmatpush1.msra.mxu0 %v2782
        %2830 = vmatprep.subr.mxu0 0.0
        %2831 = vmatpush2.msra.mxu0 0.0
        %2832 = vmatprep.subr.mxu0 0.0
        %2833 = vmatpush2.msra.mxu0 0.0
        %2834 = vmatprep.subr.mxu0 0.0
        %2835 = vmatpush2.msra.mxu0 0.0
        %2836 = vmatprep.subr.mxu0 0.0
        %2837 = vmatpush2.msra.mxu0 0.0
        %2838 = vmatprep.subr.mxu0 0.0
        %2839 = vmatpush2.msra.mxu0 0.0
        %2840 = vmatprep.subr.mxu0 0.0
        %2841 = vmatpush2.msra.mxu0 0.0
        %2842 = vmatprep.subr.mxu0 0.0
        %2843 = vmatpush2.msra.mxu0 0.0
        %2844 = vmatprep.subr.mxu0 0.0
        %2845 = vmatpush2.msra.mxu0 0.0
        %2846 = vmatprep.subr.mxu0 0.0
        %2847 = vmatpush2.msra.mxu0 0.0
        %2848 = vmatprep.subr.mxu0 0.0
        %2849 = vmatpush2.msra.mxu0 0.0
        %2850 = vmatprep.subr.mxu0 0.0
        %2851 = vmatpush2.msra.mxu0 0.0
        %2852 = vmatprep.subr.mxu0 0.0
        %2853 = vmatpush2.msra.mxu0 0.0
        %2854 = vmatprep.subr.mxu0 0.0
        %2855 = vmatpush2.msra.mxu0 0.0
        %2856 = vmatprep.subr.mxu0 0.0
        %2857 = vmatpush2.msra.mxu0 0.0
        %2858 = vmatprep.subr.mxu0 0.0
        %2859 = vmatpush2.msra.mxu0 0.0
        %2860 = vmatprep.subr.mxu0 0.0
        %2861 = vmatpush2.msra.mxu0 0.0
        %2862 = vmatprep.mubr.f32.mxu0 0.0
        %2863 = vmatmul.mubr.f32.gmra.mxu0 %v2796
        %v2864 = vpop.f32.mrf.mxu0
        %v2865 = vadd.f32 0.0, %v2864
        %v2866 = vpop.f32.mrf.mxu0
        %2867 = vdwg.mxu0
        %v2869 = vsel %vm2794, %v2694, 0
        %2871 = vmatprep.subr.mxu0 0.0
        %2872 = vmatpush1.msra.mxu0 0.0
        %2873 = vmatprep.subr.mxu0 0.0
        %2874 = vmatpush1.msra.mxu0 0.0
        %2875 = vmatprep.subr.mxu0 0.0
        %2876 = vmatpush1.msra.mxu0 0.0
        %2877 = vmatprep.subr.mxu0 0.0
        %2878 = vmatpush1.msra.mxu0 0.0
        %2879 = vmatprep.subr.mxu0 0.0
        %2880 = vmatpush1.msra.mxu0 %v2708
        %2881 = vmatprep.subr.mxu0 0.0
        %2882 = vmatpush1.msra.mxu0 %v2707
        %2883 = vmatprep.subr.mxu0 0.0
        %2884 = vmatpush1.msra.mxu0 %v2706
        %2885 = vmatprep.subr.mxu0 0.0
        %2886 = vmatpush1.msra.mxu0 %v2705
        %2887 = vmatprep.subr.mxu0 0.0
        %2888 = vmatpush1.msra.mxu0 %v2704
        %2889 = vmatprep.subr.mxu0 0.0
        %2890 = vmatpush1.msra.mxu0 %v2703
        %2891 = vmatprep.subr.mxu0 0.0
        %2892 = vmatpush1.msra.mxu0 %v2702
        %2893 = vmatprep.subr.mxu0 0.0
        %2894 = vmatpush1.msra.mxu0 %v2701
        %2895 = vmatprep.subr.mxu0 0.0
        %2896 = vmatpush1.msra.mxu0 %v2700
        %2897 = vmatprep.subr.mxu0 0.0
        %2898 = vmatpush1.msra.mxu0 %v2699
        %2899 = vmatprep.subr.mxu0 0.0
        %2900 = vmatpush1.msra.mxu0 %v2698
        %2901 = vmatprep.subr.mxu0 0.0
        %2902 = vmatpush1.msra.mxu0 %v2697
        %2903 = vmatprep.subr.mxu0 0.0
        %2904 = vmatpush2.msra.mxu0 0.0
        %2905 = vmatprep.subr.mxu0 0.0
        %2906 = vmatpush2.msra.mxu0 0.0
        %2907 = vmatprep.subr.mxu0 0.0
        %2908 = vmatpush2.msra.mxu0 0.0
        %2909 = vmatprep.subr.mxu0 0.0
        %2910 = vmatpush2.msra.mxu0 0.0
        %2911 = vmatprep.subr.mxu0 0.0
        %2912 = vmatpush2.msra.mxu0 0.0
        %2913 = vmatprep.subr.mxu0 0.0
        %2914 = vmatpush2.msra.mxu0 0.0
        %2915 = vmatprep.subr.mxu0 0.0
        %2916 = vmatpush2.msra.mxu0 0.0
        %2917 = vmatprep.subr.mxu0 0.0
        %2918 = vmatpush2.msra.mxu0 0.0
        %2919 = vmatprep.subr.mxu0 0.0
        %2920 = vmatpush2.msra.mxu0 0.0
        %2921 = vmatprep.subr.mxu0 0.0
        %2922 = vmatpush2.msra.mxu0 0.0
        %2923 = vmatprep.subr.mxu0 0.0
        %2924 = vmatpush2.msra.mxu0 0.0
        %2925 = vmatprep.subr.mxu0 0.0
        %2926 = vmatpush2.msra.mxu0 0.0
        %2927 = vmatprep.subr.mxu0 0.0
        %2928 = vmatpush2.msra.mxu0 0.0
        %2929 = vmatprep.subr.mxu0 0.0
        %2930 = vmatpush2.msra.mxu0 0.0
        %2931 = vmatprep.subr.mxu0 0.0
        %2932 = vmatpush2.msra.mxu0 0.0
        %2933 = vmatprep.subr.mxu0 0.0
        %2934 = vmatpush2.msra.mxu0 0.0
        %2935 = vmatprep.mubr.f32.mxu0 0.0
        %2936 = vmatmul.mubr.f32.gmra.mxu0 %v2869
        %v2937 = vpop.f32.mrf.mxu0
        %v2938 = vadd.f32 %v2865, %v2937
        %v2939 = vpop.f32.mrf.mxu0
        %2940 = vdwg.mxu0
        %v2941 = vsel %vm2621, %v1082, 0
        %2943 = vmatprep.subr.mxu0 0.0
        %2944 = vmatpush1.msra.mxu0 0.0
        %2945 = vmatprep.subr.mxu0 0.0
        %2946 = vmatpush1.msra.mxu0 0.0
        %2947 = vmatprep.subr.mxu0 0.0
        %2948 = vmatpush1.msra.mxu0 0.0
        %2949 = vmatprep.subr.mxu0 0.0
        %2950 = vmatpush1.msra.mxu0 0.0
        %2951 = vmatprep.subr.mxu0 0.0
        %2952 = vmatpush1.msra.mxu0 0.0
        %2953 = vmatprep.subr.mxu0 0.0
        %2954 = vmatpush1.msra.mxu0 0.0
        %2955 = vmatprep.subr.mxu0 0.0
        %2956 = vmatpush1.msra.mxu0 0.0
        %2957 = vmatprep.subr.mxu0 0.0
        %2958 = vmatpush1.msra.mxu0 0.0
        %2959 = vmatprep.subr.mxu0 0.0
        %2960 = vmatpush1.msra.mxu0 0.0
        %2961 = vmatprep.subr.mxu0 0.0
        %2962 = vmatpush1.msra.mxu0 0.0
        %2963 = vmatprep.subr.mxu0 0.0
        %2964 = vmatpush1.msra.mxu0 0.0
        %2965 = vmatprep.subr.mxu0 0.0
        %2966 = vmatpush1.msra.mxu0 0.0
        %2967 = vmatprep.subr.mxu0 0.0
        %2968 = vmatpush1.msra.mxu0 0.0
        %2969 = vmatprep.subr.mxu0 0.0
        %2970 = vmatpush1.msra.mxu0 0.0
        %2971 = vmatprep.subr.mxu0 0.0
        %2972 = vmatpush1.msra.mxu0 0.0
        %2973 = vmatprep.subr.mxu0 0.0
        %2974 = vmatpush1.msra.mxu0 %v2625
        %2975 = vmatprep.subr.mxu0 0.0
        %2976 = vmatpush2.msra.mxu0 0.0
        %2977 = vmatprep.subr.mxu0 0.0
        %2978 = vmatpush2.msra.mxu0 0.0
        %2979 = vmatprep.subr.mxu0 0.0
        %2980 = vmatpush2.msra.mxu0 0.0
        %2981 = vmatprep.subr.mxu0 0.0
        %2982 = vmatpush2.msra.mxu0 0.0
        %2983 = vmatprep.subr.mxu0 0.0
        %2984 = vmatpush2.msra.mxu0 0.0
        %2985 = vmatprep.subr.mxu0 0.0
        %2986 = vmatpush2.msra.mxu0 0.0
        %2987 = vmatprep.subr.mxu0 0.0
        %2988 = vmatpush2.msra.mxu0 0.0
        %2989 = vmatprep.subr.mxu0 0.0
        %2990 = vmatpush2.msra.mxu0 0.0
        %2991 = vmatprep.subr.mxu0 0.0
        %2992 = vmatpush2.msra.mxu0 0.0
        %2993 = vmatprep.subr.mxu0 0.0
        %2994 = vmatpush2.msra.mxu0 0.0
        %2995 = vmatprep.subr.mxu0 0.0
        %2996 = vmatpush2.msra.mxu0 0.0
        %2997 = vmatprep.subr.mxu0 0.0
        %2998 = vmatpush2.msra.mxu0 0.0
        %2999 = vmatprep.subr.mxu0 0.0
        %3000 = vmatpush2.msra.mxu0 0.0
        %3001 = vmatprep.subr.mxu0 0.0
        %3002 = vmatpush2.msra.mxu0 0.0
        %3003 = vmatprep.subr.mxu0 0.0
        %3004 = vmatpush2.msra.mxu0 0.0
        %3005 = vmatprep.subr.mxu0 0.0
        %3006 = vmatpush2.msra.mxu0 0.0
        %3007 = vmatprep.mubr.f32.mxu0 0.0
        %3008 = vmatmul.mubr.f32.gmra.mxu0 %v2941
        %v3009 = vpop.f32.mrf.mxu0
        %v3010 = vadd.f32 0.0, %v3009
        %v3011 = vpop.f32.mrf.mxu0
        %3012 = vdwg.mxu0
        %s3013 = scalar_lea.vmem [#allocation21], 192
        %v3014 = vld [vmem:[%s3013] sm:$0xff]
        %v3015 = vld [vmem:[%s3013 + $0x8] sm:$0xff]
        %v3016 = vld [vmem:[%s3013 + $0x10] sm:$0xff]
        %v3017 = vld [vmem:[%s3013 + $0x18] sm:$0xff]
        %v3018 = vld [vmem:[%s3013 + $0x20] sm:$0xff]
        %v3019 = vld [vmem:[%s3013 + $0x28] sm:$0xff]
        %v3020 = vld [vmem:[%s3013 + $0x30] sm:$0xff]
        %v3021 = vld [vmem:[%s3013 + $0x38] sm:$0xff]
        %v3022 = vld [vmem:[%s3013 + $0x40] sm:$0xff]
        %v3023 = vld [vmem:[%s3013 + $0x48] sm:$0xff]
        %v3024 = vld [vmem:[%s3013 + $0x50] sm:$0xff]
        %v3025 = vld [vmem:[%s3013 + $0x58] sm:$0xff]
        %v3027 = vsel %vm2794, %v3010, 0
        %3029 = vmatprep.subr.mxu0 0.0
        %3030 = vmatpush1.msra.mxu0 0.0
        %3031 = vmatprep.subr.mxu0 0.0
        %3032 = vmatpush1.msra.mxu0 0.0
        %3033 = vmatprep.subr.mxu0 0.0
        %3034 = vmatpush1.msra.mxu0 0.0
        %3035 = vmatprep.subr.mxu0 0.0
        %3036 = vmatpush1.msra.mxu0 0.0
        %3037 = vmatprep.subr.mxu0 0.0
        %3038 = vmatpush1.msra.mxu0 %v3025
        %3039 = vmatprep.subr.mxu0 0.0
        %3040 = vmatpush1.msra.mxu0 %v3024
        %3041 = vmatprep.subr.mxu0 0.0
        %3042 = vmatpush1.msra.mxu0 %v3023
        %3043 = vmatprep.subr.mxu0 0.0
        %3044 = vmatpush1.msra.mxu0 %v3022
        %3045 = vmatprep.subr.mxu0 0.0
        %3046 = vmatpush1.msra.mxu0 %v3021
        %3047 = vmatprep.subr.mxu0 0.0
        %3048 = vmatpush1.msra.mxu0 %v3020
        %3049 = vmatprep.subr.mxu0 0.0
        %3050 = vmatpush1.msra.mxu0 %v3019
        %3051 = vmatprep.subr.mxu0 0.0
        %3052 = vmatpush1.msra.mxu0 %v3018
        %3053 = vmatprep.subr.mxu0 0.0
        %3054 = vmatpush1.msra.mxu0 %v3017
        %3055 = vmatprep.subr.mxu0 0.0
        %3056 = vmatpush1.msra.mxu0 %v3016
        %3057 = vmatprep.subr.mxu0 0.0
        %3058 = vmatpush1.msra.mxu0 %v3015
        %3059 = vmatprep.subr.mxu0 0.0
        %3060 = vmatpush1.msra.mxu0 %v3014
        %3061 = vmatprep.subr.mxu0 0.0
        %3062 = vmatpush2.msra.mxu0 0.0
        %3063 = vmatprep.subr.mxu0 0.0
        %3064 = vmatpush2.msra.mxu0 0.0
        %3065 = vmatprep.subr.mxu0 0.0
        %3066 = vmatpush2.msra.mxu0 0.0
        %3067 = vmatprep.subr.mxu0 0.0
        %3068 = vmatpush2.msra.mxu0 0.0
        %3069 = vmatprep.subr.mxu0 0.0
        %3070 = vmatpush2.msra.mxu0 0.0
        %3071 = vmatprep.subr.mxu0 0.0
        %3072 = vmatpush2.msra.mxu0 0.0
        %3073 = vmatprep.subr.mxu0 0.0
        %3074 = vmatpush2.msra.mxu0 0.0
        %3075 = vmatprep.subr.mxu0 0.0
        %3076 = vmatpush2.msra.mxu0 0.0
        %3077 = vmatprep.subr.mxu0 0.0
        %3078 = vmatpush2.msra.mxu0 0.0
        %3079 = vmatprep.subr.mxu0 0.0
        %3080 = vmatpush2.msra.mxu0 0.0
        %3081 = vmatprep.subr.mxu0 0.0
        %3082 = vmatpush2.msra.mxu0 0.0
        %3083 = vmatprep.subr.mxu0 0.0
        %3084 = vmatpush2.msra.mxu0 0.0
        %3085 = vmatprep.subr.mxu0 0.0
        %3086 = vmatpush2.msra.mxu0 0.0
        %3087 = vmatprep.subr.mxu0 0.0
        %3088 = vmatpush2.msra.mxu0 0.0
        %3089 = vmatprep.subr.mxu0 0.0
        %3090 = vmatpush2.msra.mxu0 0.0
        %3091 = vmatprep.subr.mxu0 0.0
        %3092 = vmatpush2.msra.mxu0 0.0
        %3093 = vmatprep.mubr.f32.mxu0 0.0
        %3094 = vmatmul.mubr.f32.gmra.mxu0 %v3027
        %v3095 = vpop.f32.mrf.mxu0
        %v3096 = vadd.f32 0.0, %v3095
        %v3097 = vpop.f32.mrf.mxu0
        %3098 = vdwg.mxu0
        %v3099 = vadd.f32 %v2938, %v3096
        %v3100 = vld [vmem:[#allocation23] sm:$0x1]
        %v3102 = vlaneseq
        %v3103 = vshrl.u32 %v3102, 7
        %v3104 = vsub.s32 0, %v3103
        %v3105 = vrot.slane %v3100, %v3104
        %v3107 = vadd.f32 %v3099, %v3105
        %v3108 = vmul.f32 %v3107, 0.5
        %v3109 = vmul.f32 %v3107, 0.70710677
        %v3110 = verf.f32.pop %v3109
        %v3111 = vadd.f32 %v3110, 1.0
        %v3112 = vmul.f32 %v3108, %v3111
        %vm3113 = vcmask 519168
        %3114 = vst.msk [vmem:[#allocation7] sm:$0xf] %vm3113, 0.0
        %3116 = vrot.lane.b32.xlu0 %v3112, 16
        %v3117 = vpop.permute.xlu0 %3116
        %vm3119 = vcmask 386176
        %3120 = vst.msk [vmem:[#allocation7 + $0x1] sm:$0x3] %vm3119, %v3117
        %v3121 = vld [vmem:[#allocation7] sm:$0x3]
        %v3122 = vld [vmem:[#allocation24] sm:$0xff]
        %v3123 = vld [vmem:[#allocation24 + $0x8] sm:$0xff]
        %v3124 = vld [vmem:[#allocation24 + $0x10] sm:$0xff]
        %v3125 = vld [vmem:[#allocation24 + $0x18] sm:$0xff]
        %v3126 = vld [vmem:[#allocation24 + $0x20] sm:$0xff]
        %v3127 = vld [vmem:[#allocation24 + $0x28] sm:$0xff]
        %v3128 = vld [vmem:[#allocation24 + $0x30] sm:$0xff]
        %v3129 = vld [vmem:[#allocation24 + $0x38] sm:$0xff]
        %v3130 = vld [vmem:[#allocation7 + $0x1] sm:$0x3]
        %s3131 = scalar_lea.vmem [#allocation24], 64
        %v3132 = vld [vmem:[%s3131] sm:$0xff]
        %v3133 = vld [vmem:[%s3131 + $0x8] sm:$0xff]
        %v3134 = vld [vmem:[%s3131 + $0x10] sm:$0xff]
        %v3135 = vld [vmem:[%s3131 + $0x18] sm:$0xff]
        %v3136 = vld [vmem:[%s3131 + $0x20] sm:$0xff]
        %v3137 = vld [vmem:[%s3131 + $0x28] sm:$0xff]
        %v3138 = vld [vmem:[%s3131 + $0x30] sm:$0xff]
        %v3139 = vld [vmem:[%s3131 + $0x38] sm:$0xff]
        %vm3140 = vcmask 523264
        %v3142 = vsel %vm3140, %v3130, 0
        %3144 = vmatprep.subr.mxu0 0.0
        %3145 = vmatpush1.msra.mxu0 0.0
        %3146 = vmatprep.subr.mxu0 0.0
        %3147 = vmatpush1.msra.mxu0 0.0
        %3148 = vmatprep.subr.mxu0 0.0
        %3149 = vmatpush1.msra.mxu0 0.0
        %3150 = vmatprep.subr.mxu0 0.0
        %3151 = vmatpush1.msra.mxu0 0.0
        %3152 = vmatprep.subr.mxu0 0.0
        %3153 = vmatpush1.msra.mxu0 0.0
        %3154 = vmatprep.subr.mxu0 0.0
        %3155 = vmatpush1.msra.mxu0 0.0
        %3156 = vmatprep.subr.mxu0 0.0
        %3157 = vmatpush1.msra.mxu0 0.0
        %3158 = vmatprep.subr.mxu0 0.0
        %3159 = vmatpush1.msra.mxu0 0.0
        %3160 = vmatprep.subr.mxu0 0.0
        %3161 = vmatpush1.msra.mxu0 %v3139
        %3162 = vmatprep.subr.mxu0 0.0
        %3163 = vmatpush1.msra.mxu0 %v3138
        %3164 = vmatprep.subr.mxu0 0.0
        %3165 = vmatpush1.msra.mxu0 %v3137
        %3166 = vmatprep.subr.mxu0 0.0
        %3167 = vmatpush1.msra.mxu0 %v3136
        %3168 = vmatprep.subr.mxu0 0.0
        %3169 = vmatpush1.msra.mxu0 %v3135
        %3170 = vmatprep.subr.mxu0 0.0
        %3171 = vmatpush1.msra.mxu0 %v3134
        %3172 = vmatprep.subr.mxu0 0.0
        %3173 = vmatpush1.msra.mxu0 %v3133
        %3174 = vmatprep.subr.mxu0 0.0
        %3175 = vmatpush1.msra.mxu0 %v3132
        %3176 = vmatprep.subr.mxu0 0.0
        %3177 = vmatpush2.msra.mxu0 0.0
        %3178 = vmatprep.subr.mxu0 0.0
        %3179 = vmatpush2.msra.mxu0 0.0
        %3180 = vmatprep.subr.mxu0 0.0
        %3181 = vmatpush2.msra.mxu0 0.0
        %3182 = vmatprep.subr.mxu0 0.0
        %3183 = vmatpush2.msra.mxu0 0.0
        %3184 = vmatprep.subr.mxu0 0.0
        %3185 = vmatpush2.msra.mxu0 0.0
        %3186 = vmatprep.subr.mxu0 0.0
        %3187 = vmatpush2.msra.mxu0 0.0
        %3188 = vmatprep.subr.mxu0 0.0
        %3189 = vmatpush2.msra.mxu0 0.0
        %3190 = vmatprep.subr.mxu0 0.0
        %3191 = vmatpush2.msra.mxu0 0.0
        %3192 = vmatprep.subr.mxu0 0.0
        %3193 = vmatpush2.msra.mxu0 0.0
        %3194 = vmatprep.subr.mxu0 0.0
        %3195 = vmatpush2.msra.mxu0 0.0
        %3196 = vmatprep.subr.mxu0 0.0
        %3197 = vmatpush2.msra.mxu0 0.0
        %3198 = vmatprep.subr.mxu0 0.0
        %3199 = vmatpush2.msra.mxu0 0.0
        %3200 = vmatprep.subr.mxu0 0.0
        %3201 = vmatpush2.msra.mxu0 0.0
        %3202 = vmatprep.subr.mxu0 0.0
        %3203 = vmatpush2.msra.mxu0 0.0
        %3204 = vmatprep.subr.mxu0 0.0
        %3205 = vmatpush2.msra.mxu0 0.0
        %3206 = vmatprep.subr.mxu0 0.0
        %3207 = vmatpush2.msra.mxu0 0.0
        %3208 = vmatprep.mubr.f32.mxu0 0.0
        %3209 = vmatmul.mubr.f32.gmra.mxu0 %v3142
        %v3210 = vpop.f32.mrf.mxu0
        %v3211 = vadd.f32 0.0, %v3210
        %v3212 = vpop.f32.mrf.mxu0
        %3213 = vdwg.mxu0
        %v3215 = vsel %vm3140, %v3121, 0
        %3217 = vmatprep.subr.mxu0 0.0
        %3218 = vmatpush1.msra.mxu0 0.0
        %3219 = vmatprep.subr.mxu0 0.0
        %3220 = vmatpush1.msra.mxu0 0.0
        %3221 = vmatprep.subr.mxu0 0.0
        %3222 = vmatpush1.msra.mxu0 0.0
        %3223 = vmatprep.subr.mxu0 0.0
        %3224 = vmatpush1.msra.mxu0 0.0
        %3225 = vmatprep.subr.mxu0 0.0
        %3226 = vmatpush1.msra.mxu0 0.0
        %3227 = vmatprep.subr.mxu0 0.0
        %3228 = vmatpush1.msra.mxu0 0.0
        %3229 = vmatprep.subr.mxu0 0.0
        %3230 = vmatpush1.msra.mxu0 0.0
        %3231 = vmatprep.subr.mxu0 0.0
        %3232 = vmatpush1.msra.mxu0 0.0
        %3233 = vmatprep.subr.mxu0 0.0
        %3234 = vmatpush1.msra.mxu0 %v3129
        %3235 = vmatprep.subr.mxu0 0.0
        %3236 = vmatpush1.msra.mxu0 %v3128
        %3237 = vmatprep.subr.mxu0 0.0
        %3238 = vmatpush1.msra.mxu0 %v3127
        %3239 = vmatprep.subr.mxu0 0.0
        %3240 = vmatpush1.msra.mxu0 %v3126
        %3241 = vmatprep.subr.mxu0 0.0
        %3242 = vmatpush1.msra.mxu0 %v3125
        %3243 = vmatprep.subr.mxu0 0.0
        %3244 = vmatpush1.msra.mxu0 %v3124
        %3245 = vmatprep.subr.mxu0 0.0
        %3246 = vmatpush1.msra.mxu0 %v3123
        %3247 = vmatprep.subr.mxu0 0.0
        %3248 = vmatpush1.msra.mxu0 %v3122
        %3249 = vmatprep.subr.mxu0 0.0
        %3250 = vmatpush2.msra.mxu0 0.0
        %3251 = vmatprep.subr.mxu0 0.0
        %3252 = vmatpush2.msra.mxu0 0.0
        %3253 = vmatprep.subr.mxu0 0.0
        %3254 = vmatpush2.msra.mxu0 0.0
        %3255 = vmatprep.subr.mxu0 0.0
        %3256 = vmatpush2.msra.mxu0 0.0
        %3257 = vmatprep.subr.mxu0 0.0
        %3258 = vmatpush2.msra.mxu0 0.0
        %3259 = vmatprep.subr.mxu0 0.0
        %3260 = vmatpush2.msra.mxu0 0.0
        %3261 = vmatprep.subr.mxu0 0.0
        %3262 = vmatpush2.msra.mxu0 0.0
        %3263 = vmatprep.subr.mxu0 0.0
        %3264 = vmatpush2.msra.mxu0 0.0
        %3265 = vmatprep.subr.mxu0 0.0
        %3266 = vmatpush2.msra.mxu0 0.0
        %3267 = vmatprep.subr.mxu0 0.0
        %3268 = vmatpush2.msra.mxu0 0.0
        %3269 = vmatprep.subr.mxu0 0.0
        %3270 = vmatpush2.msra.mxu0 0.0
        %3271 = vmatprep.subr.mxu0 0.0
        %3272 = vmatpush2.msra.mxu0 0.0
        %3273 = vmatprep.subr.mxu0 0.0
        %3274 = vmatpush2.msra.mxu0 0.0
        %3275 = vmatprep.subr.mxu0 0.0
        %3276 = vmatpush2.msra.mxu0 0.0
        %3277 = vmatprep.subr.mxu0 0.0
        %3278 = vmatpush2.msra.mxu0 0.0
        %3279 = vmatprep.subr.mxu0 0.0
        %3280 = vmatpush2.msra.mxu0 0.0
        %3281 = vmatprep.mubr.f32.mxu0 0.0
        %3282 = vmatmul.mubr.f32.gmra.mxu0 %v3215
        %v3283 = vpop.f32.mrf.mxu0
        %v3284 = vadd.f32 %v3211, %v3283
        %v3285 = vpop.f32.mrf.mxu0
        %3286 = vdwg.mxu0
        %v3287 = vld [vmem:[#allocation7 + $0x2] sm:$0x3]
        %s3288 = scalar_lea.vmem [#allocation24], 128
        %v3289 = vld [vmem:[%s3288] sm:$0xff]
        %v3290 = vld [vmem:[%s3288 + $0x8] sm:$0xff]
        %v3291 = vld [vmem:[%s3288 + $0x10] sm:$0xff]
        %v3292 = vld [vmem:[%s3288 + $0x18] sm:$0xff]
        %v3293 = vld [vmem:[%s3288 + $0x20] sm:$0xff]
        %v3294 = vld [vmem:[%s3288 + $0x28] sm:$0xff]
        %v3295 = vld [vmem:[%s3288 + $0x30] sm:$0xff]
        %v3296 = vld [vmem:[%s3288 + $0x38] sm:$0xff]
        %v3298 = vsel %vm3140, %v3287, 0
        %3300 = vmatprep.subr.mxu0 0.0
        %3301 = vmatpush1.msra.mxu0 0.0
        %3302 = vmatprep.subr.mxu0 0.0
        %3303 = vmatpush1.msra.mxu0 0.0
        %3304 = vmatprep.subr.mxu0 0.0
        %3305 = vmatpush1.msra.mxu0 0.0
        %3306 = vmatprep.subr.mxu0 0.0
        %3307 = vmatpush1.msra.mxu0 0.0
        %3308 = vmatprep.subr.mxu0 0.0
        %3309 = vmatpush1.msra.mxu0 0.0
        %3310 = vmatprep.subr.mxu0 0.0
        %3311 = vmatpush1.msra.mxu0 0.0
        %3312 = vmatprep.subr.mxu0 0.0
        %3313 = vmatpush1.msra.mxu0 0.0
        %3314 = vmatprep.subr.mxu0 0.0
        %3315 = vmatpush1.msra.mxu0 0.0
        %3316 = vmatprep.subr.mxu0 0.0
        %3317 = vmatpush1.msra.mxu0 %v3296
        %3318 = vmatprep.subr.mxu0 0.0
        %3319 = vmatpush1.msra.mxu0 %v3295
        %3320 = vmatprep.subr.mxu0 0.0
        %3321 = vmatpush1.msra.mxu0 %v3294
        %3322 = vmatprep.subr.mxu0 0.0
        %3323 = vmatpush1.msra.mxu0 %v3293
        %3324 = vmatprep.subr.mxu0 0.0
        %3325 = vmatpush1.msra.mxu0 %v3292
        %3326 = vmatprep.subr.mxu0 0.0
        %3327 = vmatpush1.msra.mxu0 %v3291
        %3328 = vmatprep.subr.mxu0 0.0
        %3329 = vmatpush1.msra.mxu0 %v3290
        %3330 = vmatprep.subr.mxu0 0.0
        %3331 = vmatpush1.msra.mxu0 %v3289
        %3332 = vmatprep.subr.mxu0 0.0
        %3333 = vmatpush2.msra.mxu0 0.0
        %3334 = vmatprep.subr.mxu0 0.0
        %3335 = vmatpush2.msra.mxu0 0.0
        %3336 = vmatprep.subr.mxu0 0.0
        %3337 = vmatpush2.msra.mxu0 0.0
        %3338 = vmatprep.subr.mxu0 0.0
        %3339 = vmatpush2.msra.mxu0 0.0
        %3340 = vmatprep.subr.mxu0 0.0
        %3341 = vmatpush2.msra.mxu0 0.0
        %3342 = vmatprep.subr.mxu0 0.0
        %3343 = vmatpush2.msra.mxu0 0.0
        %3344 = vmatprep.subr.mxu0 0.0
        %3345 = vmatpush2.msra.mxu0 0.0
        %3346 = vmatprep.subr.mxu0 0.0
        %3347 = vmatpush2.msra.mxu0 0.0
        %3348 = vmatprep.subr.mxu0 0.0
        %3349 = vmatpush2.msra.mxu0 0.0
        %3350 = vmatprep.subr.mxu0 0.0
        %3351 = vmatpush2.msra.mxu0 0.0
        %3352 = vmatprep.subr.mxu0 0.0
        %3353 = vmatpush2.msra.mxu0 0.0
        %3354 = vmatprep.subr.mxu0 0.0
        %3355 = vmatpush2.msra.mxu0 0.0
        %3356 = vmatprep.subr.mxu0 0.0
        %3357 = vmatpush2.msra.mxu0 0.0
        %3358 = vmatprep.subr.mxu0 0.0
        %3359 = vmatpush2.msra.mxu0 0.0
        %3360 = vmatprep.subr.mxu0 0.0
        %3361 = vmatpush2.msra.mxu0 0.0
        %3362 = vmatprep.subr.mxu0 0.0
        %3363 = vmatpush2.msra.mxu0 0.0
        %3364 = vmatprep.mubr.f32.mxu0 0.0
        %3365 = vmatmul.mubr.f32.gmra.mxu0 %v3298
        %v3366 = vpop.f32.mrf.mxu0
        %v3367 = vadd.f32 0.0, %v3366
        %v3368 = vpop.f32.mrf.mxu0
        %3369 = vdwg.mxu0
        %v3370 = vadd.f32 %v3284, %v3367
        %v3371 = vld [vmem:[%s12] sm:$0x1]
        %v3373 = vlaneseq
        %v3374 = vshrl.u32 %v3373, 7
        %v3375 = vsub.s32 0, %v3374
        %v3376 = vrot.slane %v3371, %v3375
        %v3378 = vadd.f32 %v3370, %v3376
        %v3379 = vmul.f32 %v3378, 0.5
        %v3380 = vmul.f32 %v3378, 0.70710677
        %v3381 = verf.f32.pop %v3380
        %v3382 = vadd.f32 %v3381, 1.0
        %v3383 = vmul.f32 %v3379, %v3382
        %3384 = vst.msk [vmem:[#allocation8] sm:$0xf] %vm3113, 0.0
        %3386 = vrot.lane.b32.xlu0 %v3383, 16
        %v3387 = vpop.permute.xlu0 %3386
        %3389 = vst.msk [vmem:[#allocation8 + $0x1] sm:$0x3] %vm3119, %v3387
        %v3390 = vld [vmem:[#allocation8] sm:$0xf]
        %vm3391 = vcmask 31744
        %v3392 = vsel %vm3391, %v703, 0
        %vm3394 = vcmask 1043456
        %v3396 = vsel %vm3394, %v3390, 0
        %3398 = vmatprep.subr.mxu0 0.0
        %3399 = vmatpush1.msra.mxu0 0.0
        %3400 = vmatprep.subr.mxu0 0.0
        %3401 = vmatpush1.msra.mxu0 0.0
        %3402 = vmatprep.subr.mxu0 0.0
        %3403 = vmatpush1.msra.mxu0 0.0
        %3404 = vmatprep.subr.mxu0 0.0
        %3405 = vmatpush1.msra.mxu0 0.0
        %3406 = vmatprep.subr.mxu0 0.0
        %3407 = vmatpush1.msra.mxu0 0.0
        %3408 = vmatprep.subr.mxu0 0.0
        %3409 = vmatpush1.msra.mxu0 0.0
        %3410 = vmatprep.subr.mxu0 0.0
        %3411 = vmatpush1.msra.mxu0 0.0
        %3412 = vmatprep.subr.mxu0 0.0
        %3413 = vmatpush1.msra.mxu0 0.0
        %3414 = vmatprep.subr.mxu0 0.0
        %3415 = vmatpush1.msra.mxu0 0.0
        %3416 = vmatprep.subr.mxu0 0.0
        %3417 = vmatpush1.msra.mxu0 0.0
        %3418 = vmatprep.subr.mxu0 0.0
        %3419 = vmatpush1.msra.mxu0 0.0
        %3420 = vmatprep.subr.mxu0 0.0
        %3421 = vmatpush1.msra.mxu0 0.0
        %3422 = vmatprep.subr.mxu0 0.0
        %3423 = vmatpush1.msra.mxu0 0.0
        %3424 = vmatprep.subr.mxu0 0.0
        %3425 = vmatpush1.msra.mxu0 0.0
        %3426 = vmatprep.subr.mxu0 0.0
        %3427 = vmatpush1.msra.mxu0 0.0
        %3428 = vmatprep.subr.mxu0 0.0
        %3429 = vmatpush1.msra.mxu0 %v3396
        %3430 = vmatprep.subr.mxu0 0.0
        %3431 = vmatpush2.msra.mxu0 0.0
        %3432 = vmatprep.subr.mxu0 0.0
        %3433 = vmatpush2.msra.mxu0 0.0
        %3434 = vmatprep.subr.mxu0 0.0
        %3435 = vmatpush2.msra.mxu0 0.0
        %3436 = vmatprep.subr.mxu0 0.0
        %3437 = vmatpush2.msra.mxu0 0.0
        %3438 = vmatprep.subr.mxu0 0.0
        %3439 = vmatpush2.msra.mxu0 0.0
        %3440 = vmatprep.subr.mxu0 0.0
        %3441 = vmatpush2.msra.mxu0 0.0
        %3442 = vmatprep.subr.mxu0 0.0
        %3443 = vmatpush2.msra.mxu0 0.0
        %3444 = vmatprep.subr.mxu0 0.0
        %3445 = vmatpush2.msra.mxu0 0.0
        %3446 = vmatprep.subr.mxu0 0.0
        %3447 = vmatpush2.msra.mxu0 0.0
        %3448 = vmatprep.subr.mxu0 0.0
        %3449 = vmatpush2.msra.mxu0 0.0
        %3450 = vmatprep.subr.mxu0 0.0
        %3451 = vmatpush2.msra.mxu0 0.0
        %3452 = vmatprep.subr.mxu0 0.0
        %3453 = vmatpush2.msra.mxu0 0.0
        %3454 = vmatprep.subr.mxu0 0.0
        %3455 = vmatpush2.msra.mxu0 0.0
        %3456 = vmatprep.subr.mxu0 0.0
        %3457 = vmatpush2.msra.mxu0 0.0
        %3458 = vmatprep.subr.mxu0 0.0
        %3459 = vmatpush2.msra.mxu0 0.0
        %3460 = vmatprep.subr.mxu0 0.0
        %3461 = vmatpush2.msra.mxu0 0.0
        %3462 = vmatprep.mubr.f32.mxu0 0.0
        %3463 = vmatmul.mubr.f32.gmra.mxu0 %v3392
        %v3464 = vpop.f32.mrf.mxu0
        %v3465 = vadd.f32 0.0, %v3464
        %v3466 = vpop.f32.mrf.mxu0
        %3467 = vdwg.mxu0
        %v3468 = vld [vmem:[%s13] sm:$0xff]
        %v3469 = vld [vmem:[%s13 + $0x8] sm:$0xff]
        %v3470 = vld [vmem:[%s13 + $0x10] sm:$0xff]
        %v3471 = vld [vmem:[%s13 + $0x18] sm:$0xff]
        %v3472 = vld [vmem:[%s13 + $0x20] sm:$0xff]
        %v3473 = vld [vmem:[%s13 + $0x28] sm:$0xff]
        %v3474 = vld [vmem:[%s13 + $0x30] sm:$0xff]
        %v3475 = vld [vmem:[%s13 + $0x38] sm:$0xff]
        %v3476 = vsel %vm3391, %v810, 0
        %3478 = vmatprep.subr.mxu0 0.0
        %3479 = vmatpush1.msra.mxu0 0.0
        %3480 = vmatprep.subr.mxu0 0.0
        %3481 = vmatpush1.msra.mxu0 0.0
        %3482 = vmatprep.subr.mxu0 0.0
        %3483 = vmatpush1.msra.mxu0 0.0
        %3484 = vmatprep.subr.mxu0 0.0
        %3485 = vmatpush1.msra.mxu0 0.0
        %3486 = vmatprep.subr.mxu0 0.0
        %3487 = vmatpush1.msra.mxu0 0.0
        %3488 = vmatprep.subr.mxu0 0.0
        %3489 = vmatpush1.msra.mxu0 0.0
        %3490 = vmatprep.subr.mxu0 0.0
        %3491 = vmatpush1.msra.mxu0 0.0
        %3492 = vmatprep.subr.mxu0 0.0
        %3493 = vmatpush1.msra.mxu0 0.0
        %3494 = vmatprep.subr.mxu0 0.0
        %3495 = vmatpush1.msra.mxu0 0.0
        %3496 = vmatprep.subr.mxu0 0.0
        %3497 = vmatpush1.msra.mxu0 0.0
        %3498 = vmatprep.subr.mxu0 0.0
        %3499 = vmatpush1.msra.mxu0 0.0
        %3500 = vmatprep.subr.mxu0 0.0
        %3501 = vmatpush1.msra.mxu0 0.0
        %3502 = vmatprep.subr.mxu0 0.0
        %3503 = vmatpush1.msra.mxu0 0.0
        %3504 = vmatprep.subr.mxu0 0.0
        %3505 = vmatpush1.msra.mxu0 0.0
        %3506 = vmatprep.subr.mxu0 0.0
        %3507 = vmatpush1.msra.mxu0 0.0
        %3508 = vmatprep.subr.mxu0 0.0
        %3509 = vmatpush1.msra.mxu0 %v3396
        %3510 = vmatprep.subr.mxu0 0.0
        %3511 = vmatpush2.msra.mxu0 0.0
        %3512 = vmatprep.subr.mxu0 0.0
        %3513 = vmatpush2.msra.mxu0 0.0
        %3514 = vmatprep.subr.mxu0 0.0
        %3515 = vmatpush2.msra.mxu0 0.0
        %3516 = vmatprep.subr.mxu0 0.0
        %3517 = vmatpush2.msra.mxu0 0.0
        %3518 = vmatprep.subr.mxu0 0.0
        %3519 = vmatpush2.msra.mxu0 0.0
        %3520 = vmatprep.subr.mxu0 0.0
        %3521 = vmatpush2.msra.mxu0 0.0
        %3522 = vmatprep.subr.mxu0 0.0
        %3523 = vmatpush2.msra.mxu0 0.0
        %3524 = vmatprep.subr.mxu0 0.0
        %3525 = vmatpush2.msra.mxu0 0.0
        %3526 = vmatprep.subr.mxu0 0.0
        %3527 = vmatpush2.msra.mxu0 0.0
        %3528 = vmatprep.subr.mxu0 0.0
        %3529 = vmatpush2.msra.mxu0 0.0
        %3530 = vmatprep.subr.mxu0 0.0
        %3531 = vmatpush2.msra.mxu0 0.0
        %3532 = vmatprep.subr.mxu0 0.0
        %3533 = vmatpush2.msra.mxu0 0.0
        %3534 = vmatprep.subr.mxu0 0.0
        %3535 = vmatpush2.msra.mxu0 0.0
        %3536 = vmatprep.subr.mxu0 0.0
        %3537 = vmatpush2.msra.mxu0 0.0
        %3538 = vmatprep.subr.mxu0 0.0
        %3539 = vmatpush2.msra.mxu0 0.0
        %3540 = vmatprep.subr.mxu0 0.0
        %3541 = vmatpush2.msra.mxu0 0.0
        %3542 = vmatprep.mubr.f32.mxu0 0.0
        %3543 = vmatmul.mubr.f32.gmra.mxu0 %v3476
        %v3544 = vpop.f32.mrf.mxu0
        %v3545 = vadd.f32 0.0, %v3544
        %v3546 = vpop.f32.mrf.mxu0
        %3547 = vdwg.mxu0
        %s3548 = scalar_lea.vmem %s13, 64
        %v3549 = vld [vmem:[%s3548] sm:$0xff]
        %v3550 = vld [vmem:[%s3548 + $0x8] sm:$0xff]
        %v3551 = vld [vmem:[%s3548 + $0x10] sm:$0xff]
        %v3552 = vld [vmem:[%s3548 + $0x18] sm:$0xff]
        %v3553 = vld [vmem:[%s3548 + $0x20] sm:$0xff]
        %v3554 = vld [vmem:[%s3548 + $0x28] sm:$0xff]
        %v3555 = vld [vmem:[%s3548 + $0x30] sm:$0xff]
        %v3556 = vld [vmem:[%s3548 + $0x38] sm:$0xff]
        %v3558 = vsel %vm3140, %v3545, 0
        %3560 = vmatprep.subr.mxu0 0.0
        %3561 = vmatpush1.msra.mxu0 0.0
        %3562 = vmatprep.subr.mxu0 0.0
        %3563 = vmatpush1.msra.mxu0 0.0
        %3564 = vmatprep.subr.mxu0 0.0
        %3565 = vmatpush1.msra.mxu0 0.0
        %3566 = vmatprep.subr.mxu0 0.0
        %3567 = vmatpush1.msra.mxu0 0.0
        %3568 = vmatprep.subr.mxu0 0.0
        %3569 = vmatpush1.msra.mxu0 0.0
        %3570 = vmatprep.subr.mxu0 0.0
        %3571 = vmatpush1.msra.mxu0 0.0
        %3572 = vmatprep.subr.mxu0 0.0
        %3573 = vmatpush1.msra.mxu0 0.0
        %3574 = vmatprep.subr.mxu0 0.0
        %3575 = vmatpush1.msra.mxu0 0.0
        %3576 = vmatprep.subr.mxu0 0.0
        %3577 = vmatpush1.msra.mxu0 %v3556
        %3578 = vmatprep.subr.mxu0 0.0
        %3579 = vmatpush1.msra.mxu0 %v3555
        %3580 = vmatprep.subr.mxu0 0.0
        %3581 = vmatpush1.msra.mxu0 %v3554
        %3582 = vmatprep.subr.mxu0 0.0
        %3583 = vmatpush1.msra.mxu0 %v3553
        %3584 = vmatprep.subr.mxu0 0.0
        %3585 = vmatpush1.msra.mxu0 %v3552
        %3586 = vmatprep.subr.mxu0 0.0
        %3587 = vmatpush1.msra.mxu0 %v3551
        %3588 = vmatprep.subr.mxu0 0.0
        %3589 = vmatpush1.msra.mxu0 %v3550
        %3590 = vmatprep.subr.mxu0 0.0
        %3591 = vmatpush1.msra.mxu0 %v3549
        %3592 = vmatprep.subr.mxu0 0.0
        %3593 = vmatpush2.msra.mxu0 0.0
        %3594 = vmatprep.subr.mxu0 0.0
        %3595 = vmatpush2.msra.mxu0 0.0
        %3596 = vmatprep.subr.mxu0 0.0
        %3597 = vmatpush2.msra.mxu0 0.0
        %3598 = vmatprep.subr.mxu0 0.0
        %3599 = vmatpush2.msra.mxu0 0.0
        %3600 = vmatprep.subr.mxu0 0.0
        %3601 = vmatpush2.msra.mxu0 0.0
        %3602 = vmatprep.subr.mxu0 0.0
        %3603 = vmatpush2.msra.mxu0 0.0
        %3604 = vmatprep.subr.mxu0 0.0
        %3605 = vmatpush2.msra.mxu0 0.0
        %3606 = vmatprep.subr.mxu0 0.0
        %3607 = vmatpush2.msra.mxu0 0.0
        %3608 = vmatprep.subr.mxu0 0.0
        %3609 = vmatpush2.msra.mxu0 0.0
        %3610 = vmatprep.subr.mxu0 0.0
        %3611 = vmatpush2.msra.mxu0 0.0
        %3612 = vmatprep.subr.mxu0 0.0
        %3613 = vmatpush2.msra.mxu0 0.0
        %3614 = vmatprep.subr.mxu0 0.0
        %3615 = vmatpush2.msra.mxu0 0.0
        %3616 = vmatprep.subr.mxu0 0.0
        %3617 = vmatpush2.msra.mxu0 0.0
        %3618 = vmatprep.subr.mxu0 0.0
        %3619 = vmatpush2.msra.mxu0 0.0
        %3620 = vmatprep.subr.mxu0 0.0
        %3621 = vmatpush2.msra.mxu0 0.0
        %3622 = vmatprep.subr.mxu0 0.0
        %3623 = vmatpush2.msra.mxu0 0.0
        %3624 = vmatprep.mubr.f32.mxu0 0.0
        %3625 = vmatmul.mubr.f32.gmra.mxu0 %v3558
        %v3626 = vpop.f32.mrf.mxu0
        %v3627 = vadd.f32 0.0, %v3626
        %v3628 = vpop.f32.mrf.mxu0
        %3629 = vdwg.mxu0
        %v3631 = vsel %vm3140, %v3465, 0
        %3633 = vmatprep.subr.mxu0 0.0
        %3634 = vmatpush1.msra.mxu0 0.0
        %3635 = vmatprep.subr.mxu0 0.0
        %3636 = vmatpush1.msra.mxu0 0.0
        %3637 = vmatprep.subr.mxu0 0.0
        %3638 = vmatpush1.msra.mxu0 0.0
        %3639 = vmatprep.subr.mxu0 0.0
        %3640 = vmatpush1.msra.mxu0 0.0
        %3641 = vmatprep.subr.mxu0 0.0
        %3642 = vmatpush1.msra.mxu0 0.0
        %3643 = vmatprep.subr.mxu0 0.0
        %3644 = vmatpush1.msra.mxu0 0.0
        %3645 = vmatprep.subr.mxu0 0.0
        %3646 = vmatpush1.msra.mxu0 0.0
        %3647 = vmatprep.subr.mxu0 0.0
        %3648 = vmatpush1.msra.mxu0 0.0
        %3649 = vmatprep.subr.mxu0 0.0
        %3650 = vmatpush1.msra.mxu0 %v3475
        %3651 = vmatprep.subr.mxu0 0.0
        %3652 = vmatpush1.msra.mxu0 %v3474
        %3653 = vmatprep.subr.mxu0 0.0
        %3654 = vmatpush1.msra.mxu0 %v3473
        %3655 = vmatprep.subr.mxu0 0.0
        %3656 = vmatpush1.msra.mxu0 %v3472
        %3657 = vmatprep.subr.mxu0 0.0
        %3658 = vmatpush1.msra.mxu0 %v3471
        %3659 = vmatprep.subr.mxu0 0.0
        %3660 = vmatpush1.msra.mxu0 %v3470
        %3661 = vmatprep.subr.mxu0 0.0
        %3662 = vmatpush1.msra.mxu0 %v3469
        %3663 = vmatprep.subr.mxu0 0.0
        %3664 = vmatpush1.msra.mxu0 %v3468
        %3665 = vmatprep.subr.mxu0 0.0
        %3666 = vmatpush2.msra.mxu0 0.0
        %3667 = vmatprep.subr.mxu0 0.0
        %3668 = vmatpush2.msra.mxu0 0.0
        %3669 = vmatprep.subr.mxu0 0.0
        %3670 = vmatpush2.msra.mxu0 0.0
        %3671 = vmatprep.subr.mxu0 0.0
        %3672 = vmatpush2.msra.mxu0 0.0
        %3673 = vmatprep.subr.mxu0 0.0
        %3674 = vmatpush2.msra.mxu0 0.0
        %3675 = vmatprep.subr.mxu0 0.0
        %3676 = vmatpush2.msra.mxu0 0.0
        %3677 = vmatprep.subr.mxu0 0.0
        %3678 = vmatpush2.msra.mxu0 0.0
        %3679 = vmatprep.subr.mxu0 0.0
        %3680 = vmatpush2.msra.mxu0 0.0
        %3681 = vmatprep.subr.mxu0 0.0
        %3682 = vmatpush2.msra.mxu0 0.0
        %3683 = vmatprep.subr.mxu0 0.0
        %3684 = vmatpush2.msra.mxu0 0.0
        %3685 = vmatprep.subr.mxu0 0.0
        %3686 = vmatpush2.msra.mxu0 0.0
        %3687 = vmatprep.subr.mxu0 0.0
        %3688 = vmatpush2.msra.mxu0 0.0
        %3689 = vmatprep.subr.mxu0 0.0
        %3690 = vmatpush2.msra.mxu0 0.0
        %3691 = vmatprep.subr.mxu0 0.0
        %3692 = vmatpush2.msra.mxu0 0.0
        %3693 = vmatprep.subr.mxu0 0.0
        %3694 = vmatpush2.msra.mxu0 0.0
        %3695 = vmatprep.subr.mxu0 0.0
        %3696 = vmatpush2.msra.mxu0 0.0
        %3697 = vmatprep.mubr.f32.mxu0 0.0
        %3698 = vmatmul.mubr.f32.gmra.mxu0 %v3631
        %v3699 = vpop.f32.mrf.mxu0
        %v3700 = vadd.f32 %v3627, %v3699
        %v3701 = vpop.f32.mrf.mxu0
        %3702 = vdwg.mxu0
        %v3703 = vsel %vm3391, %v1082, 0
        %3705 = vmatprep.subr.mxu0 0.0
        %3706 = vmatpush1.msra.mxu0 0.0
        %3707 = vmatprep.subr.mxu0 0.0
        %3708 = vmatpush1.msra.mxu0 0.0
        %3709 = vmatprep.subr.mxu0 0.0
        %3710 = vmatpush1.msra.mxu0 0.0
        %3711 = vmatprep.subr.mxu0 0.0
        %3712 = vmatpush1.msra.mxu0 0.0
        %3713 = vmatprep.subr.mxu0 0.0
        %3714 = vmatpush1.msra.mxu0 0.0
        %3715 = vmatprep.subr.mxu0 0.0
        %3716 = vmatpush1.msra.mxu0 0.0
        %3717 = vmatprep.subr.mxu0 0.0
        %3718 = vmatpush1.msra.mxu0 0.0
        %3719 = vmatprep.subr.mxu0 0.0
        %3720 = vmatpush1.msra.mxu0 0.0
        %3721 = vmatprep.subr.mxu0 0.0
        %3722 = vmatpush1.msra.mxu0 0.0
        %3723 = vmatprep.subr.mxu0 0.0
        %3724 = vmatpush1.msra.mxu0 0.0
        %3725 = vmatprep.subr.mxu0 0.0
        %3726 = vmatpush1.msra.mxu0 0.0
        %3727 = vmatprep.subr.mxu0 0.0
        %3728 = vmatpush1.msra.mxu0 0.0
        %3729 = vmatprep.subr.mxu0 0.0
        %3730 = vmatpush1.msra.mxu0 0.0
        %3731 = vmatprep.subr.mxu0 0.0
        %3732 = vmatpush1.msra.mxu0 0.0
        %3733 = vmatprep.subr.mxu0 0.0
        %3734 = vmatpush1.msra.mxu0 0.0
        %3735 = vmatprep.subr.mxu0 0.0
        %3736 = vmatpush1.msra.mxu0 %v3396
        %3737 = vmatprep.subr.mxu0 0.0
        %3738 = vmatpush2.msra.mxu0 0.0
        %3739 = vmatprep.subr.mxu0 0.0
        %3740 = vmatpush2.msra.mxu0 0.0
        %3741 = vmatprep.subr.mxu0 0.0
        %3742 = vmatpush2.msra.mxu0 0.0
        %3743 = vmatprep.subr.mxu0 0.0
        %3744 = vmatpush2.msra.mxu0 0.0
        %3745 = vmatprep.subr.mxu0 0.0
        %3746 = vmatpush2.msra.mxu0 0.0
        %3747 = vmatprep.subr.mxu0 0.0
        %3748 = vmatpush2.msra.mxu0 0.0
        %3749 = vmatprep.subr.mxu0 0.0
        %3750 = vmatpush2.msra.mxu0 0.0
        %3751 = vmatprep.subr.mxu0 0.0
        %3752 = vmatpush2.msra.mxu0 0.0
        %3753 = vmatprep.subr.mxu0 0.0
        %3754 = vmatpush2.msra.mxu0 0.0
        %3755 = vmatprep.subr.mxu0 0.0
        %3756 = vmatpush2.msra.mxu0 0.0
        %3757 = vmatprep.subr.mxu0 0.0
        %3758 = vmatpush2.msra.mxu0 0.0
        %3759 = vmatprep.subr.mxu0 0.0
        %3760 = vmatpush2.msra.mxu0 0.0
        %3761 = vmatprep.subr.mxu0 0.0
        %3762 = vmatpush2.msra.mxu0 0.0
        %3763 = vmatprep.subr.mxu0 0.0
        %3764 = vmatpush2.msra.mxu0 0.0
        %3765 = vmatprep.subr.mxu0 0.0
        %3766 = vmatpush2.msra.mxu0 0.0
        %3767 = vmatprep.subr.mxu0 0.0
        %3768 = vmatpush2.msra.mxu0 0.0
        %3769 = vmatprep.mubr.f32.mxu0 0.0
        %3770 = vmatmul.mubr.f32.gmra.mxu0 %v3703
        %v3771 = vpop.f32.mrf.mxu0
        %v3772 = vadd.f32 0.0, %v3771
        %v3773 = vpop.f32.mrf.mxu0
        %3774 = vdwg.mxu0
        %s3775 = scalar_lea.vmem %s13, 128
        %v3776 = vld [vmem:[%s3775] sm:$0xff]
        %v3777 = vld [vmem:[%s3775 + $0x8] sm:$0xff]
        %v3778 = vld [vmem:[%s3775 + $0x10] sm:$0xff]
        %v3779 = vld [vmem:[%s3775 + $0x18] sm:$0xff]
        %v3780 = vld [vmem:[%s3775 + $0x20] sm:$0xff]
        %v3781 = vld [vmem:[%s3775 + $0x28] sm:$0xff]
        %v3782 = vld [vmem:[%s3775 + $0x30] sm:$0xff]
        %v3783 = vld [vmem:[%s3775 + $0x38] sm:$0xff]
        %v3785 = vsel %vm3140, %v3772, 0
        %3787 = vmatprep.subr.mxu0 0.0
        %3788 = vmatpush1.msra.mxu0 0.0
        %3789 = vmatprep.subr.mxu0 0.0
        %3790 = vmatpush1.msra.mxu0 0.0
        %3791 = vmatprep.subr.mxu0 0.0
        %3792 = vmatpush1.msra.mxu0 0.0
        %3793 = vmatprep.subr.mxu0 0.0
        %3794 = vmatpush1.msra.mxu0 0.0
        %3795 = vmatprep.subr.mxu0 0.0
        %3796 = vmatpush1.msra.mxu0 0.0
        %3797 = vmatprep.subr.mxu0 0.0
        %3798 = vmatpush1.msra.mxu0 0.0
        %3799 = vmatprep.subr.mxu0 0.0
        %3800 = vmatpush1.msra.mxu0 0.0
        %3801 = vmatprep.subr.mxu0 0.0
        %3802 = vmatpush1.msra.mxu0 0.0
        %3803 = vmatprep.subr.mxu0 0.0
        %3804 = vmatpush1.msra.mxu0 %v3783
        %3805 = vmatprep.subr.mxu0 0.0
        %3806 = vmatpush1.msra.mxu0 %v3782
        %3807 = vmatprep.subr.mxu0 0.0
        %3808 = vmatpush1.msra.mxu0 %v3781
        %3809 = vmatprep.subr.mxu0 0.0
        %3810 = vmatpush1.msra.mxu0 %v3780
        %3811 = vmatprep.subr.mxu0 0.0
        %3812 = vmatpush1.msra.mxu0 %v3779
        %3813 = vmatprep.subr.mxu0 0.0
        %3814 = vmatpush1.msra.mxu0 %v3778
        %3815 = vmatprep.subr.mxu0 0.0
        %3816 = vmatpush1.msra.mxu0 %v3777
        %3817 = vmatprep.subr.mxu0 0.0
        %3818 = vmatpush1.msra.mxu0 %v3776
        %3819 = vmatprep.subr.mxu0 0.0
        %3820 = vmatpush2.msra.mxu0 0.0
        %3821 = vmatprep.subr.mxu0 0.0
        %3822 = vmatpush2.msra.mxu0 0.0
        %3823 = vmatprep.subr.mxu0 0.0
        %3824 = vmatpush2.msra.mxu0 0.0
        %3825 = vmatprep.subr.mxu0 0.0
        %3826 = vmatpush2.msra.mxu0 0.0
        %3827 = vmatprep.subr.mxu0 0.0
        %3828 = vmatpush2.msra.mxu0 0.0
        %3829 = vmatprep.subr.mxu0 0.0
        %3830 = vmatpush2.msra.mxu0 0.0
        %3831 = vmatprep.subr.mxu0 0.0
        %3832 = vmatpush2.msra.mxu0 0.0
        %3833 = vmatprep.subr.mxu0 0.0
        %3834 = vmatpush2.msra.mxu0 0.0
        %3835 = vmatprep.subr.mxu0 0.0
        %3836 = vmatpush2.msra.mxu0 0.0
        %3837 = vmatprep.subr.mxu0 0.0
        %3838 = vmatpush2.msra.mxu0 0.0
        %3839 = vmatprep.subr.mxu0 0.0
        %3840 = vmatpush2.msra.mxu0 0.0
        %3841 = vmatprep.subr.mxu0 0.0
        %3842 = vmatpush2.msra.mxu0 0.0
        %3843 = vmatprep.subr.mxu0 0.0
        %3844 = vmatpush2.msra.mxu0 0.0
        %3845 = vmatprep.subr.mxu0 0.0
        %3846 = vmatpush2.msra.mxu0 0.0
        %3847 = vmatprep.subr.mxu0 0.0
        %3848 = vmatpush2.msra.mxu0 0.0
        %3849 = vmatprep.subr.mxu0 0.0
        %3850 = vmatpush2.msra.mxu0 0.0
        %3851 = vmatprep.mubr.f32.mxu0 0.0
        %3852 = vmatmul.mubr.f32.gmra.mxu0 %v3785
        %v3853 = vpop.f32.mrf.mxu0
        %v3854 = vadd.f32 0.0, %v3853
        %v3855 = vpop.f32.mrf.mxu0
        %3856 = vdwg.mxu0
        %v3857 = vadd.f32 %v3700, %v3854
        %v3858 = vld [vmem:[%s14] sm:$0x1]
        %v3859 = vadd.f32 %v3857, %v3858
        %v3860 = vmul.f32 %v3859, 0.5
        %v3861 = vmul.f32 %v3859, 0.70710677
        %v3862 = verf.f32.pop %v3861
        %v3863 = vadd.f32 %v3862, 1.0
        %v3864 = vmul.f32 %v3860, %v3863
        %v3865 = vadd.f32 %v3864, 0.0
        %v3866 = vld [vmem:[%s15] sm:$0xff]
        %v3867 = vld [vmem:[%s15 + $0x8] sm:$0xff]
        %v3868 = vld [vmem:[%s15 + $0x10] sm:$0xff]
        %v3869 = vld [vmem:[%s15 + $0x18] sm:$0xff]
        %vm3870 = vcmask 261120
        %v3872 = vsel %vm3870, %v3865, 0
        %3874 = vmatprep.subr.mxu0 0.0
        %3875 = vmatpush1.msra.mxu0 0.0
        %3876 = vmatprep.subr.mxu0 0.0
        %3877 = vmatpush1.msra.mxu0 0.0
        %3878 = vmatprep.subr.mxu0 0.0
        %3879 = vmatpush1.msra.mxu0 0.0
        %3880 = vmatprep.subr.mxu0 0.0
        %3881 = vmatpush1.msra.mxu0 0.0
        %3882 = vmatprep.subr.mxu0 0.0
        %3883 = vmatpush1.msra.mxu0 0.0
        %3884 = vmatprep.subr.mxu0 0.0
        %3885 = vmatpush1.msra.mxu0 0.0
        %3886 = vmatprep.subr.mxu0 0.0
        %3887 = vmatpush1.msra.mxu0 0.0
        %3888 = vmatprep.subr.mxu0 0.0
        %3889 = vmatpush1.msra.mxu0 0.0
        %3890 = vmatprep.subr.mxu0 0.0
        %3891 = vmatpush1.msra.mxu0 0.0
        %3892 = vmatprep.subr.mxu0 0.0
        %3893 = vmatpush1.msra.mxu0 0.0
        %3894 = vmatprep.subr.mxu0 0.0
        %3895 = vmatpush1.msra.mxu0 0.0
        %3896 = vmatprep.subr.mxu0 0.0
        %3897 = vmatpush1.msra.mxu0 0.0
        %3898 = vmatprep.subr.mxu0 0.0
        %3899 = vmatpush1.msra.mxu0 %v3869
        %3900 = vmatprep.subr.mxu0 0.0
        %3901 = vmatpush1.msra.mxu0 %v3868
        %3902 = vmatprep.subr.mxu0 0.0
        %3903 = vmatpush1.msra.mxu0 %v3867
        %3904 = vmatprep.subr.mxu0 0.0
        %3905 = vmatpush1.msra.mxu0 %v3866
        %3906 = vmatprep.subr.mxu0 0.0
        %3907 = vmatpush2.msra.mxu0 0.0
        %3908 = vmatprep.subr.mxu0 0.0
        %3909 = vmatpush2.msra.mxu0 0.0
        %3910 = vmatprep.subr.mxu0 0.0
        %3911 = vmatpush2.msra.mxu0 0.0
        %3912 = vmatprep.subr.mxu0 0.0
        %3913 = vmatpush2.msra.mxu0 0.0
        %3914 = vmatprep.subr.mxu0 0.0
        %3915 = vmatpush2.msra.mxu0 0.0
        %3916 = vmatprep.subr.mxu0 0.0
        %3917 = vmatpush2.msra.mxu0 0.0
        %3918 = vmatprep.subr.mxu0 0.0
        %3919 = vmatpush2.msra.mxu0 0.0
        %3920 = vmatprep.subr.mxu0 0.0
        %3921 = vmatpush2.msra.mxu0 0.0
        %3922 = vmatprep.subr.mxu0 0.0
        %3923 = vmatpush2.msra.mxu0 0.0
        %3924 = vmatprep.subr.mxu0 0.0
        %3925 = vmatpush2.msra.mxu0 0.0
        %3926 = vmatprep.subr.mxu0 0.0
        %3927 = vmatpush2.msra.mxu0 0.0
        %3928 = vmatprep.subr.mxu0 0.0
        %3929 = vmatpush2.msra.mxu0 0.0
        %3930 = vmatprep.subr.mxu0 0.0
        %3931 = vmatpush2.msra.mxu0 0.0
        %3932 = vmatprep.subr.mxu0 0.0
        %3933 = vmatpush2.msra.mxu0 0.0
        %3934 = vmatprep.subr.mxu0 0.0
        %3935 = vmatpush2.msra.mxu0 0.0
        %3936 = vmatprep.subr.mxu0 0.0
        %3937 = vmatpush2.msra.mxu0 0.0
        %3938 = vmatprep.mubr.f32.mxu0 0.0
        %3939 = vmatmul.mubr.f32.gmra.mxu0 %v3872
        %v3940 = vpop.f32.mrf.mxu0
        %v3941 = vadd.f32 0.0, %v3940
        %v3942 = vpop.f32.mrf.mxu0
        %3943 = vdwg.mxu0
        %vm3944 = vcmask 204800
        %3945 = vst.msk [vmem:[%s649] sm:$0x1] %vm3944, %v3941
        %s3946 = sand.u32 %s385, 1
        %s3947 = scalar_lea.sflag [#allocation11], %s3946
        %s3948 = sand.u32 %s385, 1
        %s3949 = scalar_lea.vmem [#allocation26], %s3948
        // Predicated region
        $region125: #{_lambda_.1} parent=83 // pred_check
          %p3950 = pneg %p395
        $region126: #{_lambda_.1} parent=83 // pred_check_branch
          %3952 = sbr.rel (%p3950) target = $region128
        $region127: #{_lambda_.1} parent=83 // pred_region
          %s3954 = ssub.s32 16, 16
          %3955 = vsyncadd %s3947, %s3954
          %s3956 = smul.addr %s36, 16
          %s3957 = scalar_lea.hbm %s16, %s3956
          %s3959 = sshll.u32 %s3949, 4
          %s3960 = int_to_ptr.vmem [resolvable:$true] %s3959
          %3962 = dma.vmem_to_hbm [thread:$0]  %s3960, 16, %s3957, %s3947
        $region128: #{_lambda_.1} parent=83 // pred_fallthru
          _
      $region84: #{_lambda_.1} parent=5 // pred_fallthru
        _
      %p3963 = scmp.le.s32.totalorder 2, %s31
      // Predicated region
      $region129: #{_lambda_.1} parent=5 // pred_check
        %p3964 = pneg %p3963
      $region130: #{_lambda_.1} parent=5 // pred_check_branch
        %3966 = sbr.rel (%p3964) target = $region132
      $region131: #{_lambda_.1} parent=5 // pred_region
        %s3967 = ssub.s32 %s31, 2
        // Predicated region
        $region133: #{_lambda_.1} parent=131 // pred_check
          %p3968 = pneg %p401
        $region134: #{_lambda_.1} parent=131 // pred_check_branch
          %3970 = sbr.rel (%p3968) target = $region136
        $region135: #{_lambda_.1} parent=131 // pred_region
          %s3971 = sand.u32 %s386, 1
          %s3972 = scalar_lea.sflag [#allocation11], %s3971
          %s3973 = sand.u32 %s386, 1
          %s3974 = scalar_lea.vmem [#allocation26], %s3973
          %3975 = dma.done %s3972, 16
        $region136: #{_lambda_.1} parent=131 // pred_fallthru
          _
      $region132: #{_lambda_.1} parent=5 // pred_fallthru
        _
    $region6: #{_lambda_.1} parent=1 // loop_footer
      %s35 = sadd.s32 1, %s31
    $region7: #{_lambda_.1} parent=1 // loop_footer_branch
      %30 = sbr.rel target = $region3
    $region8: #{_lambda_.1} parent=1 // loop_exit
      _
    %3976 = vsyncpa [#allocation10], 1
    %s3977 = scalar_lea.sflag [#allocation10], 1
    %3978 = vsyncpa %s3977, 1
    %3979 = vsyncpa [#allocation13], 1
    %3980 = vsyncpa [#allocation16], 1
    %3981 = vsyncpa [#allocation19], 1
    %3982 = vsyncpa [#allocation22], 1
    %3983 = vsyncpa [#allocation25], 1
    %3984 = vsyncpa [#allocation11], 1
    %s3985 = scalar_lea.sflag [#allocation11], 1
    %3986 = vsyncpa %s3985, 1

</llo_original>
